<compile_context>
chip_gen: v7x
topology: tpu7x:2x2x1
jax: 0.10.0
libtpu: 0.0.40
codegen_flags: <defaults>
</compile_context>

<pallas_src>
import functools
import math

import jax
import jax.numpy as jnp
from jax.experimental import pallas as pl
from jax.experimental.pallas import tpu as pltpu

HIDDEN = 256


def mlp2_kernel(x_ref,
                w1_ref, b1_ref,
                w2_ref, b2_ref,
                w3_ref, b3_ref,
                w4_ref, b4_ref,
                w5_ref, b5_ref,
                o_ref):
    """Fused forward pass for one batch tile (batch on lanes).

    x_ref: (1, TM) f32            w1: (256, 1)   b1: (256, 1)
    w2..w4: (256, 256) (out, in)  b2..b4: (256, 1)
    w5: (1, 256)                  b5: (1, 1)
    o_ref: (1, TM)
    """
    x = x_ref[...]                                              # (1, TM) f32

    # Layer 1: K=1 -> rank-1 outer product on the VPU (no MXU fill/drain).
    h = w1_ref[...].astype(jnp.float32) * x + b1_ref[...]       # (256, TM)
    h = jnp.maximum(h, 0.0)

    # Layers 2-4: W(out,in) @ h(in,TM) on the MXU, f32 accumulation,
    # bias-add / ReLU in f32 on the VPU.
    for w_ref, b_ref in ((w2_ref, b2_ref), (w3_ref, b3_ref), (w4_ref, b4_ref)):
        h = jnp.dot(w_ref[...], h.astype(w_ref.dtype),
                    preferred_element_type=jnp.float32) + b_ref[...]
        h = jnp.maximum(h, 0.0)

    # Layer 5: (1,256) @ (256,TM) -> (1,TM) — lane-dense output tile.
    out = jnp.dot(w5_ref[...], h.astype(w5_ref.dtype),
                  preferred_element_type=jnp.float32) + b5_ref[...]
    o_ref[...] = out.astype(o_ref.dtype)


def _full_spec(arr):
    """Whole-array (untiled) BlockSpec with a constant index_map."""
    zeros = (0,) * arr.ndim
    return pl.BlockSpec(arr.shape, lambda i: zeros)


@functools.partial(jax.jit, static_argnames=("tile_m", "weight_dtype"))
def mlp2_forward(x, params, tile_m=512, weight_dtype=jnp.bfloat16):
    """x: (N, 1) float32. params: torch-layout w1..w5 (out,in), b1..b5 (out,).

    Returns (N, 1) float32.
    """
    N = x.shape[0]
    assert tile_m % 128 == 0, "tile_m must be a multiple of 128 (lane width)"
    n_tiles = (N + tile_m - 1) // tile_m
    Nt = n_tiles * tile_m

    # Batch on the lane axis.
    xt = x.reshape(1, N)
    if Nt != N:
        xt = jnp.pad(xt, ((0, 0), (0, Nt - N)))

    ws = [params[f"w{i}"].astype(weight_dtype) for i in range(1, 6)]
    bs = [params[f"b{i}"].astype(jnp.float32).reshape(-1, 1) for i in range(1, 6)]

    args, in_specs = [xt], [pl.BlockSpec((1, tile_m), lambda i: (0, i))]
    for w, b in zip(ws, bs):
        args += [w, b]
        in_specs += [_full_spec(w), _full_spec(b)]

    out = pl.pallas_call(
        mlp2_kernel,
        out_shape=jax.ShapeDtypeStruct((1, Nt), x.dtype),
        grid_spec=pltpu.PrefetchScalarGridSpec(
            num_scalar_prefetch=0,
            grid=(n_tiles,),
            in_specs=in_specs,
            out_specs=pl.BlockSpec((1, tile_m), lambda i: (0, i)),
        ),
        compiler_params=pltpu.CompilerParams(
            dimension_semantics=("parallel",)),
    )(*args)

    return out[0, :N].reshape(N, 1)


def init_params(key):
    """Deterministic parameters in PyTorch-native layout: w (out,in), b (out,)."""
    dims = [(HIDDEN, 1), (HIDDEN, HIDDEN), (HIDDEN, HIDDEN),
            (HIDDEN, HIDDEN), (1, HIDDEN)]
    params = {}
    for idx, (fan_out, fan_in) in enumerate(dims, start=1):
        key, kw, kb = jax.random.split(key, 3)
        bound = 1.0 / math.sqrt(fan_in)       # torch default Linear init bound
        params[f"w{idx}"] = jax.random.uniform(
            kw, (fan_out, fan_in), jnp.float32, -bound, bound)
        params[f"b{idx}"] = jax.random.uniform(
            kb, (fan_out,), jnp.float32, -bound, bound)
    return params


def reference_forward(x, params):
    """Pure-JAX reference with torch semantics: h = x @ W.T + b."""
    h = x
    for idx in range(1, 5):
        h = jnp.maximum(h @ params[f"w{idx}"].T + params[f"b{idx}"], 0.0)
    return h @ params["w5"].T + params["b5"]


if __name__ == "__main__":
    key = jax.random.PRNGKey(0)
    key, kx = jax.random.split(key)

    N = 1024                     # batch of scalar inputs; grid = 2 (v7x-friendly)
    x = jax.random.normal(kx, (N, 1), jnp.float32)
    params = init_params(key)
    ref = reference_forward(x, params)

    # f32-weight path: tight correctness check.
    out_f32 = jax.block_until_ready(
        mlp2_forward(x, params, tile_m=512, weight_dtype=jnp.float32))
    assert out_f32.shape == (N, 1)
    assert jnp.allclose(out_f32, ref, atol=1e-3, rtol=1e-3), "f32 mismatch vs reference"

    # bf16-weight path (MXU-native on v6e/v7x): looser tolerance.
    out_bf16 = jax.block_until_ready(
        mlp2_forward(x, params, tile_m=512, weight_dtype=jnp.bfloat16))
    assert out_bf16.shape == (N, 1)
    assert jnp.allclose(out_bf16, ref, atol=5e-2, rtol=5e-2), "bf16 mismatch vs reference"

    print("KERNEL_OK")
</pallas_src>

<mosaic_0001>
module attributes {stable_mosaic.version = 11 : i64} {
  func.func @mlp2_kernel(%arg0: i32, %arg1: memref<1x512xf32, #tpu.memory_space<vmem>>, %arg2: memref<256x1xf32, #tpu.memory_space<vmem>>, %arg3: memref<256x1xf32, #tpu.memory_space<vmem>>, %arg4: memref<256x256xf32, #tpu.memory_space<vmem>>, %arg5: memref<256x1xf32, #tpu.memory_space<vmem>>, %arg6: memref<256x256xf32, #tpu.memory_space<vmem>>, %arg7: memref<256x1xf32, #tpu.memory_space<vmem>>, %arg8: memref<256x256xf32, #tpu.memory_space<vmem>>, %arg9: memref<256x1xf32, #tpu.memory_space<vmem>>, %arg10: memref<1x256xf32, #tpu.memory_space<vmem>>, %arg11: memref<1x1xf32, #tpu.memory_space<vmem>>, %arg12: memref<1x512xf32, #tpu.memory_space<vmem>>) attributes {dimension_semantics = [#tpu.dimension_semantics<parallel>], iteration_bounds = array<i64: 2>, scalar_prefetch = 0 : i64, scratch_operands = 0 : i64, tpu.core_type = #tpu.core_type<tc>, window_params = [{transform_indices = @transform_0, window_bounds = array<i64: 1, 512>}, {pipeline_mode = #tpu.pipeline_mode<synchronous>, transform_indices = @transform_1, window_bounds = array<i64: 256, 1>}, {pipeline_mode = #tpu.pipeline_mode<synchronous>, transform_indices = @transform_2, window_bounds = array<i64: 256, 1>}, {pipeline_mode = #tpu.pipeline_mode<synchronous>, transform_indices = @transform_3, window_bounds = array<i64: 256, 256>}, {pipeline_mode = #tpu.pipeline_mode<synchronous>, transform_indices = @transform_4, window_bounds = array<i64: 256, 1>}, {pipeline_mode = #tpu.pipeline_mode<synchronous>, transform_indices = @transform_5, window_bounds = array<i64: 256, 256>}, {pipeline_mode = #tpu.pipeline_mode<synchronous>, transform_indices = @transform_6, window_bounds = array<i64: 256, 1>}, {pipeline_mode = #tpu.pipeline_mode<synchronous>, transform_indices = @transform_7, window_bounds = array<i64: 256, 256>}, {pipeline_mode = #tpu.pipeline_mode<synchronous>, transform_indices = @transform_8, window_bounds = array<i64: 256, 1>}, {pipeline_mode = #tpu.pipeline_mode<synchronous>, transform_indices = @transform_9, window_bounds = array<i64: 1, 256>}, {pipeline_mode = #tpu.pipeline_mode<synchronous>, transform_indices = @transform_10, window_bounds = array<i64: 1, 1>}, {transform_indices = @transform_11, window_bounds = array<i64: 1, 512>}]} {
    %c0 = arith.constant 0 : index
    %c0_0 = arith.constant 0 : index
    %0 = vector.load %arg1[%c0, %c0_0] : memref<1x512xf32, #tpu.memory_space<vmem>>, vector<1x512xf32>
    %c0_1 = arith.constant 0 : index
    %c0_2 = arith.constant 0 : index
    %1 = vector.load %arg2[%c0_1, %c0_2] : memref<256x1xf32, #tpu.memory_space<vmem>>, vector<256x1xf32>
    %2 = vector.broadcast %1 : vector<256x1xf32> to vector<256x512xf32>
    %3 = vector.broadcast %0 : vector<1x512xf32> to vector<256x512xf32>
    %4 = arith.mulf %2, %3 : vector<256x512xf32>
    %c0_3 = arith.constant 0 : index
    %c0_4 = arith.constant 0 : index
    %5 = vector.load %arg3[%c0_3, %c0_4] : memref<256x1xf32, #tpu.memory_space<vmem>>, vector<256x1xf32>
    %6 = vector.broadcast %5 : vector<256x1xf32> to vector<256x512xf32>
    %7 = arith.addf %4, %6 : vector<256x512xf32>
    %cst = arith.constant 0.000000e+00 : f32
    %8 = vector.broadcast %cst : f32 to vector<256x512xf32>
    %9 = arith.maximumf %7, %8 : vector<256x512xf32>
    %c0_5 = arith.constant 0 : index
    %c0_6 = arith.constant 0 : index
    %10 = vector.load %arg4[%c0_5, %c0_6] : memref<256x256xf32, #tpu.memory_space<vmem>>, vector<256x256xf32>
    %cst_7 = arith.constant dense<0.000000e+00> : vector<256x512xf32>
    %11 = tpu.matmul %10, %9, %cst_7 {dimension_numbers = #tpu.dot_dimension_numbers<[1], [0], [0], [1], [0, 0, 1, 1], [], []>} : vector<256x256xf32>, vector<256x512xf32>, vector<256x512xf32> -> vector<256x512xf32>
    %c0_8 = arith.constant 0 : index
    %c0_9 = arith.constant 0 : index
    %12 = vector.load %arg5[%c0_8, %c0_9] : memref<256x1xf32, #tpu.memory_space<vmem>>, vector<256x1xf32>
    %13 = vector.broadcast %12 : vector<256x1xf32> to vector<256x512xf32>
    %14 = arith.addf %11, %13 : vector<256x512xf32>
    %cst_10 = arith.constant 0.000000e+00 : f32
    %15 = vector.broadcast %cst_10 : f32 to vector<256x512xf32>
    %16 = arith.maximumf %14, %15 : vector<256x512xf32>
    %c0_11 = arith.constant 0 : index
    %c0_12 = arith.constant 0 : index
    %17 = vector.load %arg6[%c0_11, %c0_12] : memref<256x256xf32, #tpu.memory_space<vmem>>, vector<256x256xf32>
    %cst_13 = arith.constant dense<0.000000e+00> : vector<256x512xf32>
    %18 = tpu.matmul %17, %16, %cst_13 {dimension_numbers = #tpu.dot_dimension_numbers<[1], [0], [0], [1], [0, 0, 1, 1], [], []>} : vector<256x256xf32>, vector<256x512xf32>, vector<256x512xf32> -> vector<256x512xf32>
    %c0_14 = arith.constant 0 : index
    %c0_15 = arith.constant 0 : index
    %19 = vector.load %arg7[%c0_14, %c0_15] : memref<256x1xf32, #tpu.memory_space<vmem>>, vector<256x1xf32>
    %20 = vector.broadcast %19 : vector<256x1xf32> to vector<256x512xf32>
    %21 = arith.addf %18, %20 : vector<256x512xf32>
    %cst_16 = arith.constant 0.000000e+00 : f32
    %22 = vector.broadcast %cst_16 : f32 to vector<256x512xf32>
    %23 = arith.maximumf %21, %22 : vector<256x512xf32>
    %c0_17 = arith.constant 0 : index
    %c0_18 = arith.constant 0 : index
    %24 = vector.load %arg8[%c0_17, %c0_18] : memref<256x256xf32, #tpu.memory_space<vmem>>, vector<256x256xf32>
    %cst_19 = arith.constant dense<0.000000e+00> : vector<256x512xf32>
    %25 = tpu.matmul %24, %23, %cst_19 {dimension_numbers = #tpu.dot_dimension_numbers<[1], [0], [0], [1], [0, 0, 1, 1], [], []>} : vector<256x256xf32>, vector<256x512xf32>, vector<256x512xf32> -> vector<256x512xf32>
    %c0_20 = arith.constant 0 : index
    %c0_21 = arith.constant 0 : index
    %26 = vector.load %arg9[%c0_20, %c0_21] : memref<256x1xf32, #tpu.memory_space<vmem>>, vector<256x1xf32>
    %27 = vector.broadcast %26 : vector<256x1xf32> to vector<256x512xf32>
    %28 = arith.addf %25, %27 : vector<256x512xf32>
    %cst_22 = arith.constant 0.000000e+00 : f32
    %29 = vector.broadcast %cst_22 : f32 to vector<256x512xf32>
    %30 = arith.maximumf %28, %29 : vector<256x512xf32>
    %c0_23 = arith.constant 0 : index
    %c0_24 = arith.constant 0 : index
    %31 = vector.load %arg10[%c0_23, %c0_24] : memref<1x256xf32, #tpu.memory_space<vmem>>, vector<1x256xf32>
    %cst_25 = arith.constant dense<0.000000e+00> : vector<1x512xf32>
    %32 = tpu.matmul %31, %30, %cst_25 {dimension_numbers = #tpu.dot_dimension_numbers<[1], [0], [0], [1], [0, 0, 1, 1], [], []>} : vector<1x256xf32>, vector<256x512xf32>, vector<1x512xf32> -> vector<1x512xf32>
    %c0_26 = arith.constant 0 : index
    %c0_27 = arith.constant 0 : index
    %33 = vector.load %arg11[%c0_26, %c0_27] : memref<1x1xf32, #tpu.memory_space<vmem>>, vector<1x1xf32>
    %34 = vector.broadcast %33 : vector<1x1xf32> to vector<1x512xf32>
    %35 = arith.addf %32, %34 : vector<1x512xf32>
    %c0_28 = arith.constant 0 : index
    %c0_29 = arith.constant 0 : index
    %36 = vector.load %arg12[%c0_28, %c0_29] : memref<1x512xf32, #tpu.memory_space<vmem>>, vector<1x512xf32>
    tpu.vector_store %arg12[%c0_28, %c0_29], %35 {strides = array<i32>} : memref<1x512xf32, #tpu.memory_space<vmem>>, vector<1x512xf32>,
    return
  }
  func.func @transform_0(%arg0: i32) -> (i32, i32) {
    %c0_i32 = arith.constant 0 : i32
    %c0_i32_0 = arith.constant 0 : i32
    return %c0_i32, %arg0 : i32, i32
  }
  func.func @transform_1(%arg0: i32) -> (i32, i32) {
    %c0_i32 = arith.constant 0 : i32
    %c0_i32_0 = arith.constant 0 : i32
    %c0_i32_1 = arith.constant 0 : i32
    return %c0_i32, %c0_i32_0 : i32, i32
  }
  func.func @transform_2(%arg0: i32) -> (i32, i32) {
    %c0_i32 = arith.constant 0 : i32
    %c0_i32_0 = arith.constant 0 : i32
    %c0_i32_1 = arith.constant 0 : i32
    return %c0_i32, %c0_i32_0 : i32, i32
  }
  func.func @transform_3(%arg0: i32) -> (i32, i32) {
    %c0_i32 = arith.constant 0 : i32
    %c0_i32_0 = arith.constant 0 : i32
    %c0_i32_1 = arith.constant 0 : i32
    return %c0_i32, %c0_i32_0 : i32, i32
  }
  func.func @transform_4(%arg0: i32) -> (i32, i32) {
    %c0_i32 = arith.constant 0 : i32
    %c0_i32_0 = arith.constant 0 : i32
    %c0_i32_1 = arith.constant 0 : i32
    return %c0_i32, %c0_i32_0 : i32, i32
  }
  func.func @transform_5(%arg0: i32) -> (i32, i32) {
    %c0_i32 = arith.constant 0 : i32
    %c0_i32_0 = arith.constant 0 : i32
    %c0_i32_1 = arith.constant 0 : i32
    return %c0_i32, %c0_i32_0 : i32, i32
  }
  func.func @transform_6(%arg0: i32) -> (i32, i32) {
    %c0_i32 = arith.constant 0 : i32
    %c0_i32_0 = arith.constant 0 : i32
    %c0_i32_1 = arith.constant 0 : i32
    return %c0_i32, %c0_i32_0 : i32, i32
  }
  func.func @transform_7(%arg0: i32) -> (i32, i32) {
    %c0_i32 = arith.constant 0 : i32
    %c0_i32_0 = arith.constant 0 : i32
    %c0_i32_1 = arith.constant 0 : i32
    return %c0_i32, %c0_i32_0 : i32, i32
  }
  func.func @transform_8(%arg0: i32) -> (i32, i32) {
    %c0_i32 = arith.constant 0 : i32
    %c0_i32_0 = arith.constant 0 : i32
    %c0_i32_1 = arith.constant 0 : i32
    return %c0_i32, %c0_i32_0 : i32, i32
  }
  func.func @transform_9(%arg0: i32) -> (i32, i32) {
    %c0_i32 = arith.constant 0 : i32
    %c0_i32_0 = arith.constant 0 : i32
    %c0_i32_1 = arith.constant 0 : i32
    return %c0_i32, %c0_i32_0 : i32, i32
  }
  func.func @transform_10(%arg0: i32) -> (i32, i32) {
    %c0_i32 = arith.constant 0 : i32
    %c0_i32_0 = arith.constant 0 : i32
    %c0_i32_1 = arith.constant 0 : i32
    return %c0_i32, %c0_i32_0 : i32, i32
  }
  func.func @transform_11(%arg0: i32) -> (i32, i32) {
    %c0_i32 = arith.constant 0 : i32
    %c0_i32_0 = arith.constant 0 : i32
    return %c0_i32, %arg0 : i32, i32
  }
}

</mosaic_0001>

<llo_original>
// kernel: mlp2_forward.1
$region0: #{mlp2_forward.1}
  #allocation0 [shape = 'u32[]', space=smem, size = 0x4, offset = 0x4, fixed_abs, tag = 'smem constant byte address 0x4 - core index']
  #allocation1 [shape = 'u32[144,128]{1,0:T(1,128)}', space=vmem, size = 0x12000, scoped, tag = 'internal scratch']
  #allocation2 [shape = 'f32[1,1]{1,0:T(1,128)S(1)}', space=vmem, size = 0x200, scoped, tag = 'scoped memory for mlp2_forward.1']
  %s0 = inlined_call_operand.vmem [shape: f32[1,1024], index: 0, kind: input, shape index: {}]
  %s1 = inlined_call_operand.vmem [shape: f32[256,1], index: 1, kind: input, shape index: {}]
  %s2 = inlined_call_operand.vmem [shape: f32[256,1], index: 2, kind: input, shape index: {}]
  %s3 = inlined_call_operand.vmem [shape: f32[256,256], index: 3, kind: input, shape index: {}]
  %s4 = inlined_call_operand.vmem [shape: f32[256,1], index: 4, kind: input, shape index: {}]
  %s5 = inlined_call_operand.vmem [shape: f32[256,256], index: 5, kind: input, shape index: {}]
  %s6 = inlined_call_operand.vmem [shape: f32[256,1], index: 6, kind: input, shape index: {}]
  %s7 = inlined_call_operand.hbm [shape: f32[256,256], index: 7, kind: input, shape index: {}]
  %s8 = inlined_call_operand.vmem [shape: f32[256,1], index: 8, kind: input, shape index: {}]
  %s9 = inlined_call_operand.vmem [shape: f32[1,256], index: 9, kind: input, shape index: {}]
  %s10 = inlined_call_operand.<no memory space> [shape: f32[1,1], index: 10, kind: input, shape index: {}]
  %s11 = inlined_call_operand.hbm [shape: f32[1,1024], index: 11, kind: output, shape index: {}]
  %s12 = sld [smem:[#allocation0]]
  $region81: #{mlp2_forward.1} parent=0
    _
  %s14 = ssub.s32 1, %s12
  %s15 = scalar_select 0, %s14, %s12
  %v16 = vstv %s10
  %17 = vst [vmem:[#allocation2] sm:$0x1] %v16
  $region1: #{mlp2_forward.1} parent=0
    #allocation3 [shape = 'u8[262144]{0}', space=vmem, size = 0x40000, scoped, tag = 'input window, operand 7, single buffered']
    #allocation4 [shape = 's32[2]{0}', space=sflag, size = 0x8, scoped, tag = 'scoped memory for mlp2_forward.1']
    #allocation5 [shape = 's32[2]{0}', space=sflag, size = 0x8, scoped, tag = 'scoped memory for mlp2_forward.1']
    #allocation6 [shape = 'u8[4096]{0}', space=vmem, size = 0x1000, scoped, tag = 'output window, operand 0']
    %18 = vsyncpa [#allocation4], 0
    %19 = vsyncpa [#allocation5], 0
    %s20 = scalar_lea.sflag [#allocation5], 1
    %21 = vsyncpa %s20, 0
    loop: start=0, step=1, limit=4
    $region2: #{mlp2_forward.1} parent=1 // loop_pre_header
      _
    $region3: #{mlp2_forward.1} parent=1 // loop_header
      %s23 = sphi 0, %s27
      %p24 = scmp.ge.s32.totalorder %s23, 4
      %s33 = sphi 0, %s35
      %s36 = sphi 0, %s33
      %s37 = sphi 0, %s36
      %s53 = sphi 0, %s37
      %s57 = sphi 0, %s57
      %s59 = sphi 0, %s57
      %s60 = sphi 0, %s59
      %s74 = sphi 0, %s60
      %s78 = sphi 0, %s78
      %s80 = sphi 0, %s78
      %s81 = sphi 0, %s80
      %s95 = sphi 0, %s81
      %s99 = sphi 0, %s99
      %s101 = sphi 0, %s99
      %s102 = sphi 0, %s101
      %s116 = sphi 0, %s102
      %s120 = sphi 0, %s120
      %s122 = sphi 0, %s120
      %s123 = sphi 0, %s122
      %s137 = sphi 0, %s123
      %s141 = sphi 0, %s141
      %s143 = sphi 0, %s141
      %s144 = sphi 0, %s143
      %s158 = sphi 0, %s144
      %s162 = sphi 0, %s162
      %s164 = sphi 0, %s162
      %s165 = sphi 0, %s164
      %s179 = sphi 0, %s165
      %s183 = sphi 0, %s183
      %s185 = sphi 0, %s183
      %s186 = sphi 0, %s185
      %s200 = sphi 0, %s186
      %s204 = sphi 0, %s204
      %s206 = sphi 0, %s204
      %s207 = sphi 0, %s206
      %s221 = sphi 0, %s207
      %s225 = sphi 0, %s225
      %s227 = sphi 0, %s225
      %s228 = sphi 0, %s227
      %s242 = sphi 0, %s228
      %s246 = sphi 0, %s246
      %s248 = sphi 0, %s246
      %s249 = sphi 0, %s248
      %s263 = sphi 0, %s249
      %s269 = sphi 0, %s271
      %s272 = sphi 0, %s269
      %s273 = sphi 0, %s272
      %s289 = sphi 0, %s273
    $region4: #{mlp2_forward.1} parent=1 // loop_header_branch
      %26 = sbr.rel (%p24) target = $region8
    $region5: #{mlp2_forward.1} parent=1 // loop_body
      %s28 = ssub.s32 %s23, 1
      %s29 = ssub.s32 %s23, 2
      %s30 = sadd.s32 %s23, 1
      %s31 = ssub.s32 %s23, %s30
      %p32 = scmp.eq.s32.totalorder %s31, 0
      %s34 = sadd.s32 %s33, 1
      %s35 = scalar_select %p32, %s33, %s34
      %p38 = pneg %p32
      %p39 = scmp.eq.s32.totalorder %s23, 1
      %p40 = por %p38, %p39
      %p41 = scmp.ne.s32.totalorder %s33, %s36
      %p42 = scmp.eq.s32.totalorder %s23, 0
      %p43 = por %p41, %p42
      %p44 = scmp.ne.s32.totalorder %s33, %s36
      %p45 = scmp.eq.s32.totalorder %s28, 1
      %p46 = por %p44, %p45
      %p47 = scmp.ne.s32.totalorder %s36, %s37
      %p48 = scmp.eq.s32.totalorder %s28, 0
      %p49 = por %p47, %p48
      %p50 = scmp.ne.s32.totalorder %s36, %s37
      %p51 = scmp.eq.s32.totalorder %s29, 1
      %p52 = por %p50, %p51
      %p54 = scmp.ne.s32.totalorder %s37, %s53
      %p55 = scmp.eq.s32.totalorder %s29, 0
      %p56 = por %p54, %p55
      %s58 = sadd.s32 %s57, 1
      %p61 = scmp.eq.s32.totalorder %s23, 1
      %p62 = scmp.ne.s32.totalorder %s57, %s59
      %p63 = scmp.eq.s32.totalorder %s23, 0
      %p64 = por %p62, %p63
      %p65 = scmp.ne.s32.totalorder %s57, %s59
      %p66 = scmp.eq.s32.totalorder %s28, 1
      %p67 = por %p65, %p66
      %p68 = scmp.ne.s32.totalorder %s59, %s60
      %p69 = scmp.eq.s32.totalorder %s28, 0
      %p70 = por %p68, %p69
      %p71 = scmp.ne.s32.totalorder %s59, %s60
      %p72 = scmp.eq.s32.totalorder %s29, 1
      %p73 = por %p71, %p72
      %p75 = scmp.ne.s32.totalorder %s60, %s74
      %p76 = scmp.eq.s32.totalorder %s29, 0
      %p77 = por %p75, %p76
      %s79 = sadd.s32 %s78, 1
      %p82 = scmp.eq.s32.totalorder %s23, 1
      %p83 = scmp.ne.s32.totalorder %s78, %s80
      %p84 = scmp.eq.s32.totalorder %s23, 0
      %p85 = por %p83, %p84
      %p86 = scmp.ne.s32.totalorder %s78, %s80
      %p87 = scmp.eq.s32.totalorder %s28, 1
      %p88 = por %p86, %p87
      %p89 = scmp.ne.s32.totalorder %s80, %s81
      %p90 = scmp.eq.s32.totalorder %s28, 0
      %p91 = por %p89, %p90
      %p92 = scmp.ne.s32.totalorder %s80, %s81
      %p93 = scmp.eq.s32.totalorder %s29, 1
      %p94 = por %p92, %p93
      %p96 = scmp.ne.s32.totalorder %s81, %s95
      %p97 = scmp.eq.s32.totalorder %s29, 0
      %p98 = por %p96, %p97
      %s100 = sadd.s32 %s99, 1
      %p103 = scmp.eq.s32.totalorder %s23, 1
      %p104 = scmp.ne.s32.totalorder %s99, %s101
      %p105 = scmp.eq.s32.totalorder %s23, 0
      %p106 = por %p104, %p105
      %p107 = scmp.ne.s32.totalorder %s99, %s101
      %p108 = scmp.eq.s32.totalorder %s28, 1
      %p109 = por %p107, %p108
      %p110 = scmp.ne.s32.totalorder %s101, %s102
      %p111 = scmp.eq.s32.totalorder %s28, 0
      %p112 = por %p110, %p111
      %p113 = scmp.ne.s32.totalorder %s101, %s102
      %p114 = scmp.eq.s32.totalorder %s29, 1
      %p115 = por %p113, %p114
      %p117 = scmp.ne.s32.totalorder %s102, %s116
      %p118 = scmp.eq.s32.totalorder %s29, 0
      %p119 = por %p117, %p118
      %s121 = sadd.s32 %s120, 1
      %p124 = scmp.eq.s32.totalorder %s23, 1
      %p125 = scmp.ne.s32.totalorder %s120, %s122
      %p126 = scmp.eq.s32.totalorder %s23, 0
      %p127 = por %p125, %p126
      %p128 = scmp.ne.s32.totalorder %s120, %s122
      %p129 = scmp.eq.s32.totalorder %s28, 1
      %p130 = por %p128, %p129
      %p131 = scmp.ne.s32.totalorder %s122, %s123
      %p132 = scmp.eq.s32.totalorder %s28, 0
      %p133 = por %p131, %p132
      %p134 = scmp.ne.s32.totalorder %s122, %s123
      %p135 = scmp.eq.s32.totalorder %s29, 1
      %p136 = por %p134, %p135
      %p138 = scmp.ne.s32.totalorder %s123, %s137
      %p139 = scmp.eq.s32.totalorder %s29, 0
      %p140 = por %p138, %p139
      %s142 = sadd.s32 %s141, 1
      %p145 = scmp.eq.s32.totalorder %s23, 1
      %p146 = scmp.ne.s32.totalorder %s141, %s143
      %p147 = scmp.eq.s32.totalorder %s23, 0
      %p148 = por %p146, %p147
      %p149 = scmp.ne.s32.totalorder %s141, %s143
      %p150 = scmp.eq.s32.totalorder %s28, 1
      %p151 = por %p149, %p150
      %p152 = scmp.ne.s32.totalorder %s143, %s144
      %p153 = scmp.eq.s32.totalorder %s28, 0
      %p154 = por %p152, %p153
      %p155 = scmp.ne.s32.totalorder %s143, %s144
      %p156 = scmp.eq.s32.totalorder %s29, 1
      %p157 = por %p155, %p156
      %p159 = scmp.ne.s32.totalorder %s144, %s158
      %p160 = scmp.eq.s32.totalorder %s29, 0
      %p161 = por %p159, %p160
      %s163 = sadd.s32 %s162, 1
      %p166 = scmp.eq.s32.totalorder %s23, 1
      %p167 = scmp.ne.s32.totalorder %s162, %s164
      %p168 = scmp.eq.s32.totalorder %s23, 0
      %p169 = por %p167, %p168
      %p170 = scmp.ne.s32.totalorder %s162, %s164
      %p171 = scmp.eq.s32.totalorder %s28, 1
      %p172 = por %p170, %p171
      %p173 = scmp.ne.s32.totalorder %s164, %s165
      %p174 = scmp.eq.s32.totalorder %s28, 0
      %p175 = por %p173, %p174
      %p176 = scmp.ne.s32.totalorder %s164, %s165
      %p177 = scmp.eq.s32.totalorder %s29, 1
      %p178 = por %p176, %p177
      %p180 = scmp.ne.s32.totalorder %s165, %s179
      %p181 = scmp.eq.s32.totalorder %s29, 0
      %p182 = por %p180, %p181
      %s184 = sadd.s32 %s183, 1
      %p187 = scmp.eq.s32.totalorder %s23, 1
      %p188 = scmp.ne.s32.totalorder %s183, %s185
      %p189 = scmp.eq.s32.totalorder %s23, 0
      %p190 = por %p188, %p189
      %p191 = scmp.ne.s32.totalorder %s183, %s185
      %p192 = scmp.eq.s32.totalorder %s28, 1
      %p193 = por %p191, %p192
      %p194 = scmp.ne.s32.totalorder %s185, %s186
      %p195 = scmp.eq.s32.totalorder %s28, 0
      %p196 = por %p194, %p195
      %p197 = scmp.ne.s32.totalorder %s185, %s186
      %p198 = scmp.eq.s32.totalorder %s29, 1
      %p199 = por %p197, %p198
      %p201 = scmp.ne.s32.totalorder %s186, %s200
      %p202 = scmp.eq.s32.totalorder %s29, 0
      %p203 = por %p201, %p202
      %s205 = sadd.s32 %s204, 1
      %p208 = scmp.eq.s32.totalorder %s23, 1
      %p209 = scmp.ne.s32.totalorder %s204, %s206
      %p210 = scmp.eq.s32.totalorder %s23, 0
      %p211 = por %p209, %p210
      %p212 = scmp.ne.s32.totalorder %s204, %s206
      %p213 = scmp.eq.s32.totalorder %s28, 1
      %p214 = por %p212, %p213
      %p215 = scmp.ne.s32.totalorder %s206, %s207
      %p216 = scmp.eq.s32.totalorder %s28, 0
      %p217 = por %p215, %p216
      %p218 = scmp.ne.s32.totalorder %s206, %s207
      %p219 = scmp.eq.s32.totalorder %s29, 1
      %p220 = por %p218, %p219
      %p222 = scmp.ne.s32.totalorder %s207, %s221
      %p223 = scmp.eq.s32.totalorder %s29, 0
      %p224 = por %p222, %p223
      %s226 = sadd.s32 %s225, 1
      %p229 = scmp.eq.s32.totalorder %s23, 1
      %p230 = scmp.ne.s32.totalorder %s225, %s227
      %p231 = scmp.eq.s32.totalorder %s23, 0
      %p232 = por %p230, %p231
      %p233 = scmp.ne.s32.totalorder %s225, %s227
      %p234 = scmp.eq.s32.totalorder %s28, 1
      %p235 = por %p233, %p234
      %p236 = scmp.ne.s32.totalorder %s227, %s228
      %p237 = scmp.eq.s32.totalorder %s28, 0
      %p238 = por %p236, %p237
      %p239 = scmp.ne.s32.totalorder %s227, %s228
      %p240 = scmp.eq.s32.totalorder %s29, 1
      %p241 = por %p239, %p240
      %p243 = scmp.ne.s32.totalorder %s228, %s242
      %p244 = scmp.eq.s32.totalorder %s29, 0
      %p245 = por %p243, %p244
      %s247 = sadd.s32 %s246, 1
      %p250 = scmp.eq.s32.totalorder %s23, 1
      %p251 = scmp.ne.s32.totalorder %s246, %s248
      %p252 = scmp.eq.s32.totalorder %s23, 0
      %p253 = por %p251, %p252
      %p254 = scmp.ne.s32.totalorder %s246, %s248
      %p255 = scmp.eq.s32.totalorder %s28, 1
      %p256 = por %p254, %p255
      %p257 = scmp.ne.s32.totalorder %s248, %s249
      %p258 = scmp.eq.s32.totalorder %s28, 0
      %p259 = por %p257, %p258
      %p260 = scmp.ne.s32.totalorder %s248, %s249
      %p261 = scmp.eq.s32.totalorder %s29, 1
      %p262 = por %p260, %p261
      %p264 = scmp.ne.s32.totalorder %s249, %s263
      %p265 = scmp.eq.s32.totalorder %s29, 0
      %p266 = por %p264, %p265
      %s267 = ssub.s32 %s23, %s30
      %p268 = scmp.eq.s32.totalorder %s267, 0
      %s270 = sadd.s32 %s269, 1
      %s271 = scalar_select %p268, %s269, %s270
      %p274 = pneg %p268
      %p275 = scmp.eq.s32.totalorder %s23, 1
      %p276 = por %p274, %p275
      %p277 = scmp.ne.s32.totalorder %s269, %s272
      %p278 = scmp.eq.s32.totalorder %s23, 0
      %p279 = por %p277, %p278
      %p280 = scmp.ne.s32.totalorder %s269, %s272
      %p281 = scmp.eq.s32.totalorder %s28, 1
      %p282 = por %p280, %p281
      %p283 = scmp.ne.s32.totalorder %s272, %s273
      %p284 = scmp.eq.s32.totalorder %s28, 0
      %p285 = por %p283, %p284
      %p286 = scmp.ne.s32.totalorder %s272, %s273
      %p287 = scmp.eq.s32.totalorder %s29, 1
      %p288 = por %p286, %p287
      %p290 = scmp.ne.s32.totalorder %s273, %s289
      %p291 = scmp.eq.s32.totalorder %s29, 0
      %p292 = por %p290, %p291
      %p293 = scmp.le.s32.totalorder 1, %s23
      %p294 = scmp.lt.s32.totalorder %s23, 3
      %p295 = pnand %p293, %p294
      %p296 = pneg %p295
      // Predicated region
      $region9: #{mlp2_forward.1} parent=5 // pred_check
        _
      $region10: #{mlp2_forward.1} parent=5 // pred_check_branch
        %298 = sbr.rel (%p295) target = $region12
      $region11: #{mlp2_forward.1} parent=5 // pred_region
        %s299 = ssub.s32 %s23, 1
        // Predicated region
        $region13: #{mlp2_forward.1} parent=11 // pred_check
          %p300 = pneg %p70
        $region14: #{mlp2_forward.1} parent=11 // pred_check_branch
          %302 = sbr.rel (%p300) target = $region16
        $region15: #{mlp2_forward.1} parent=11 // pred_region
          _
        $region16: #{mlp2_forward.1} parent=11 // pred_fallthru
          _
        // Predicated region
        $region17: #{mlp2_forward.1} parent=11 // pred_check
          %p303 = pneg %p91
        $region18: #{mlp2_forward.1} parent=11 // pred_check_branch
          %305 = sbr.rel (%p303) target = $region20
        $region19: #{mlp2_forward.1} parent=11 // pred_region
          _
        $region20: #{mlp2_forward.1} parent=11 // pred_fallthru
          _
        // Predicated region
        $region21: #{mlp2_forward.1} parent=11 // pred_check
          %p306 = pneg %p112
        $region22: #{mlp2_forward.1} parent=11 // pred_check_branch
          %308 = sbr.rel (%p306) target = $region24
        $region23: #{mlp2_forward.1} parent=11 // pred_region
          _
        $region24: #{mlp2_forward.1} parent=11 // pred_fallthru
          _
        // Predicated region
        $region25: #{mlp2_forward.1} parent=11 // pred_check
          %p309 = pneg %p133
        $region26: #{mlp2_forward.1} parent=11 // pred_check_branch
          %311 = sbr.rel (%p309) target = $region28
        $region27: #{mlp2_forward.1} parent=11 // pred_region
          _
        $region28: #{mlp2_forward.1} parent=11 // pred_fallthru
          _
        // Predicated region
        $region29: #{mlp2_forward.1} parent=11 // pred_check
          %p312 = pneg %p154
        $region30: #{mlp2_forward.1} parent=11 // pred_check_branch
          %314 = sbr.rel (%p312) target = $region32
        $region31: #{mlp2_forward.1} parent=11 // pred_region
          _
        $region32: #{mlp2_forward.1} parent=11 // pred_fallthru
          _
        // Predicated region
        $region33: #{mlp2_forward.1} parent=11 // pred_check
          %p315 = pneg %p175
        $region34: #{mlp2_forward.1} parent=11 // pred_check_branch
          %317 = sbr.rel (%p315) target = $region36
        $region35: #{mlp2_forward.1} parent=11 // pred_region
          _
        $region36: #{mlp2_forward.1} parent=11 // pred_fallthru
          _
        // Predicated region
        $region37: #{mlp2_forward.1} parent=11 // pred_check
          %p318 = pneg %p196
        $region38: #{mlp2_forward.1} parent=11 // pred_check_branch
          %320 = sbr.rel (%p318) target = $region40
        $region39: #{mlp2_forward.1} parent=11 // pred_region
          %s322 = ssub.s32 8192, 8192
          %323 = vsyncadd [#allocation4], %s322
          %s324 = sshll.u32 [#allocation3], 4
          %s325 = int_to_ptr.vmem [resolvable:$true] %s324
          %330 = dma.hbm_to_vmem [thread:$0]  %s7, 8192, %s325, [#allocation4], 256, 256, 16
        $region40: #{mlp2_forward.1} parent=11 // pred_fallthru
          _
        // Predicated region
        $region41: #{mlp2_forward.1} parent=11 // pred_check
          %p331 = pneg %p217
        $region42: #{mlp2_forward.1} parent=11 // pred_check_branch
          %333 = sbr.rel (%p331) target = $region44
        $region43: #{mlp2_forward.1} parent=11 // pred_region
          _
        $region44: #{mlp2_forward.1} parent=11 // pred_fallthru
          _
        // Predicated region
        $region45: #{mlp2_forward.1} parent=11 // pred_check
          %p334 = pneg %p238
        $region46: #{mlp2_forward.1} parent=11 // pred_check_branch
          %336 = sbr.rel (%p334) target = $region48
        $region47: #{mlp2_forward.1} parent=11 // pred_region
          _
        $region48: #{mlp2_forward.1} parent=11 // pred_fallthru
          _
        // Predicated region
        $region49: #{mlp2_forward.1} parent=11 // pred_check
          %p337 = pneg %p259
        $region50: #{mlp2_forward.1} parent=11 // pred_check_branch
          %339 = sbr.rel (%p337) target = $region52
        $region51: #{mlp2_forward.1} parent=11 // pred_region
          _
        $region52: #{mlp2_forward.1} parent=11 // pred_fallthru
          _
      $region12: #{mlp2_forward.1} parent=5 // pred_fallthru
        _
      %p340 = scmp.lt.s32.totalorder %s23, 2
      // Predicated region
      $region53: #{mlp2_forward.1} parent=5 // pred_check
        %p341 = pneg %p340
      $region54: #{mlp2_forward.1} parent=5 // pred_check_branch
        %343 = sbr.rel (%p341) target = $region56
      $region55: #{mlp2_forward.1} parent=5 // pred_region
        // Predicated region
        $region57: #{mlp2_forward.1} parent=55 // pred_check
          %p344 = pneg %p43
        $region58: #{mlp2_forward.1} parent=55 // pred_check_branch
          %346 = sbr.rel (%p344) target = $region60
        $region59: #{mlp2_forward.1} parent=55 // pred_region
          %s347 = smul.u32 4, %s23
          %p348 = scmp.lt.s32.totalorder %s347, 7
          %s349 = scalar_select %p348, %s347, 7
          %s350 = scalar_lea.vmem %s0, %s349
          %s351 = smul.u32 4, %s23
        $region60: #{mlp2_forward.1} parent=55 // pred_fallthru
          _
      $region56: #{mlp2_forward.1} parent=5 // pred_fallthru
        _
      %p352 = scmp.le.s32.totalorder 1, %s23
      %p353 = scmp.lt.s32.totalorder %s23, 3
      %p354 = pnand %p352, %p353
      %p355 = pneg %p354
      // Predicated region
      $region61: #{mlp2_forward.1} parent=5 // pred_check
        _
      $region62: #{mlp2_forward.1} parent=5 // pred_check_branch
        %357 = sbr.rel (%p354) target = $region64
      $region63: #{mlp2_forward.1} parent=5 // pred_region
        %s358 = ssub.s32 %s23, 1
        // Predicated region
        $region65: #{mlp2_forward.1} parent=63 // pred_check
          %p359 = pneg %p196
        $region66: #{mlp2_forward.1} parent=63 // pred_check_branch
          %361 = sbr.rel (%p359) target = $region68
        $region67: #{mlp2_forward.1} parent=63 // pred_region
          %362 = dma.done [#allocation4], 8192
        $region68: #{mlp2_forward.1} parent=63 // pred_fallthru
          _
        %s363 = smul.u32 4, %s28
        %p364 = scmp.lt.s32.totalorder %s363, 7
        %s365 = scalar_select %p364, %s363, 7
        %s366 = scalar_lea.vmem %s0, %s365
        %p367 = pneg %p49
        %p368 = pneg %p46
        %p369 = pneg %p70
        %p370 = pneg %p67
        %p371 = pneg %p91
        %p372 = pneg %p88
        %p373 = pneg %p112
        %p374 = pneg %p109
        %p375 = pneg %p133
        %p376 = pneg %p130
        %p377 = pneg %p154
        %p378 = pneg %p151
        %p379 = pneg %p175
        %p380 = pneg %p172
        %p381 = pneg %p196
        %p382 = pneg %p193
        %p383 = pneg %p217
        %p384 = pneg %p214
        %p385 = pneg %p238
        %p386 = pneg %p235
        %p387 = pneg %p259
        %p388 = pneg %p256
        %p389 = pneg %p285
        %p390 = pneg %p282
        %s391 = sand.u32 %s272, 1
        %s392 = scalar_lea.sflag [#allocation5], %s391
        %s393 = sand.u32 %s272, 1
        %s394 = smul.addr %s393, 4
        %s395 = scalar_lea.vmem [#allocation6], %s394
        %s396 = smul.u32 4, %s28
        %p397 = scmp.lt.s32.totalorder %s396, 7
        %s398 = scalar_select %p397, %s396, 7
        %s399 = scalar_lea.vmem %s0, %s398
        %s400 = smul.u32 4, %s28
        %s401 = smul.u32 4, %s28
        %v402 = vld [vmem:[%s399] sm:$0xf]
        %v403 = vld [vmem:[%s1] sm:$0xff]
        %v404 = vld [vmem:[%s1 + $0x8] sm:$0xff]
        %v405 = vld [vmem:[%s1 + $0x10] sm:$0xff]
        %v406 = vld [vmem:[%s1 + $0x18] sm:$0xff]
        %v407 = vld [vmem:[%s1 + $0x20] sm:$0xff]
        %v408 = vld [vmem:[%s1 + $0x28] sm:$0xff]
        %v409 = vld [vmem:[%s1 + $0x30] sm:$0xff]
        %v410 = vld [vmem:[%s1 + $0x38] sm:$0xff]
        %v411 = vld [vmem:[%s1 + $0x40] sm:$0xff]
        %v412 = vld [vmem:[%s1 + $0x48] sm:$0xff]
        %v413 = vld [vmem:[%s1 + $0x50] sm:$0xff]
        %v414 = vld [vmem:[%s1 + $0x58] sm:$0xff]
        %v415 = vld [vmem:[%s1 + $0x60] sm:$0xff]
        %v416 = vld [vmem:[%s1 + $0x68] sm:$0xff]
        %v417 = vld [vmem:[%s1 + $0x70] sm:$0xff]
        %v418 = vld [vmem:[%s1 + $0x78] sm:$0xff]
        %v419 = vld [vmem:[%s1 + $0x80] sm:$0xff]
        %v420 = vld [vmem:[%s1 + $0x88] sm:$0xff]
        %v421 = vld [vmem:[%s1 + $0x90] sm:$0xff]
        %v422 = vld [vmem:[%s1 + $0x98] sm:$0xff]
        %v423 = vld [vmem:[%s1 + $0xa0] sm:$0xff]
        %v424 = vld [vmem:[%s1 + $0xa8] sm:$0xff]
        %v425 = vld [vmem:[%s1 + $0xb0] sm:$0xff]
        %v426 = vld [vmem:[%s1 + $0xb8] sm:$0xff]
        %v427 = vld [vmem:[%s1 + $0xc0] sm:$0xff]
        %v428 = vld [vmem:[%s1 + $0xc8] sm:$0xff]
        %v429 = vld [vmem:[%s1 + $0xd0] sm:$0xff]
        %v430 = vld [vmem:[%s1 + $0xd8] sm:$0xff]
        %v431 = vld [vmem:[%s1 + $0xe0] sm:$0xff]
        %v432 = vld [vmem:[%s1 + $0xe8] sm:$0xff]
        %v433 = vld [vmem:[%s1 + $0xf0] sm:$0xff]
        %v434 = vld [vmem:[%s1 + $0xf8] sm:$0xff]
        %436 = vset.pattern.permute.xlu0 0
        %437 = vperm.xlu0 %436, %v403
        %v438 = vpop.permute.xlu0 %437
        %441 = vset.pattern.permute.xlu0 0
        %442 = vperm.xlu0 %441, %v404
        %v443 = vpop.permute.xlu0 %442
        %446 = vset.pattern.permute.xlu0 0
        %447 = vperm.xlu0 %446, %v405
        %v448 = vpop.permute.xlu0 %447
        %451 = vset.pattern.permute.xlu0 0
        %452 = vperm.xlu0 %451, %v406
        %v453 = vpop.permute.xlu0 %452
        %456 = vset.pattern.permute.xlu0 0
        %457 = vperm.xlu0 %456, %v407
        %v458 = vpop.permute.xlu0 %457
        %461 = vset.pattern.permute.xlu0 0
        %462 = vperm.xlu0 %461, %v408
        %v463 = vpop.permute.xlu0 %462
        %466 = vset.pattern.permute.xlu0 0
        %467 = vperm.xlu0 %466, %v409
        %v468 = vpop.permute.xlu0 %467
        %471 = vset.pattern.permute.xlu0 0
        %472 = vperm.xlu0 %471, %v410
        %v473 = vpop.permute.xlu0 %472
        %476 = vset.pattern.permute.xlu0 0
        %477 = vperm.xlu0 %476, %v411
        %v478 = vpop.permute.xlu0 %477
        %481 = vset.pattern.permute.xlu0 0
        %482 = vperm.xlu0 %481, %v412
        %v483 = vpop.permute.xlu0 %482
        %486 = vset.pattern.permute.xlu0 0
        %487 = vperm.xlu0 %486, %v413
        %v488 = vpop.permute.xlu0 %487
        %491 = vset.pattern.permute.xlu0 0
        %492 = vperm.xlu0 %491, %v414
        %v493 = vpop.permute.xlu0 %492
        %496 = vset.pattern.permute.xlu0 0
        %497 = vperm.xlu0 %496, %v415
        %v498 = vpop.permute.xlu0 %497
        %501 = vset.pattern.permute.xlu0 0
        %502 = vperm.xlu0 %501, %v416
        %v503 = vpop.permute.xlu0 %502
        %506 = vset.pattern.permute.xlu0 0
        %507 = vperm.xlu0 %506, %v417
        %v508 = vpop.permute.xlu0 %507
        %511 = vset.pattern.permute.xlu0 0
        %512 = vperm.xlu0 %511, %v418
        %v513 = vpop.permute.xlu0 %512
        %516 = vset.pattern.permute.xlu0 0
        %517 = vperm.xlu0 %516, %v419
        %v518 = vpop.permute.xlu0 %517
        %521 = vset.pattern.permute.xlu0 0
        %522 = vperm.xlu0 %521, %v420
        %v523 = vpop.permute.xlu0 %522
        %526 = vset.pattern.permute.xlu0 0
        %527 = vperm.xlu0 %526, %v421
        %v528 = vpop.permute.xlu0 %527
        %531 = vset.pattern.permute.xlu0 0
        %532 = vperm.xlu0 %531, %v422
        %v533 = vpop.permute.xlu0 %532
        %536 = vset.pattern.permute.xlu0 0
        %537 = vperm.xlu0 %536, %v423
        %v538 = vpop.permute.xlu0 %537
        %541 = vset.pattern.permute.xlu0 0
        %542 = vperm.xlu0 %541, %v424
        %v543 = vpop.permute.xlu0 %542
        %546 = vset.pattern.permute.xlu0 0
        %547 = vperm.xlu0 %546, %v425
        %v548 = vpop.permute.xlu0 %547
        %551 = vset.pattern.permute.xlu0 0
        %552 = vperm.xlu0 %551, %v426
        %v553 = vpop.permute.xlu0 %552
        %556 = vset.pattern.permute.xlu0 0
        %557 = vperm.xlu0 %556, %v427
        %v558 = vpop.permute.xlu0 %557
        %561 = vset.pattern.permute.xlu0 0
        %562 = vperm.xlu0 %561, %v428
        %v563 = vpop.permute.xlu0 %562
        %566 = vset.pattern.permute.xlu0 0
        %567 = vperm.xlu0 %566, %v429
        %v568 = vpop.permute.xlu0 %567
        %571 = vset.pattern.permute.xlu0 0
        %572 = vperm.xlu0 %571, %v430
        %v573 = vpop.permute.xlu0 %572
        %576 = vset.pattern.permute.xlu0 0
        %577 = vperm.xlu0 %576, %v431
        %v578 = vpop.permute.xlu0 %577
        %581 = vset.pattern.permute.xlu0 0
        %582 = vperm.xlu0 %581, %v432
        %v583 = vpop.permute.xlu0 %582
        %586 = vset.pattern.permute.xlu0 0
        %587 = vperm.xlu0 %586, %v433
        %v588 = vpop.permute.xlu0 %587
        %591 = vset.pattern.permute.xlu0 0
        %592 = vperm.xlu0 %591, %v434
        %v593 = vpop.permute.xlu0 %592
        %v596 = vlaneseq
        %v597 = vshrl.u32 %v596, 7
        %v598 = vsub.s32 0, %v597
        %v599 = vrot.slane %v402, %v598
        %v600 = vlaneseq
        %v601 = vshrl.u32 %v600, 7
        %v602 = vsub.s32 1, %v601
        %v603 = vrot.slane %v402, %v602
        %v604 = vlaneseq
        %v605 = vshrl.u32 %v604, 7
        %v606 = vsub.s32 2, %v605
        %v607 = vrot.slane %v402, %v606
        %v608 = vlaneseq
        %v609 = vshrl.u32 %v608, 7
        %v610 = vsub.s32 3, %v609
        %v611 = vrot.slane %v402, %v610
        %v616 = vmul.f32 %v438, %v599
        %v617 = vmul.f32 %v438, %v603
        %v618 = vmul.f32 %v438, %v607
        %v619 = vmul.f32 %v438, %v611
        %v620 = vmul.f32 %v443, %v599
        %v621 = vmul.f32 %v443, %v603
        %v622 = vmul.f32 %v443, %v607
        %v623 = vmul.f32 %v443, %v611
        %v624 = vmul.f32 %v448, %v599
        %v625 = vmul.f32 %v448, %v603
        %v626 = vmul.f32 %v448, %v607
        %v627 = vmul.f32 %v448, %v611
        %v628 = vmul.f32 %v453, %v599
        %v629 = vmul.f32 %v453, %v603
        %v630 = vmul.f32 %v453, %v607
        %v631 = vmul.f32 %v453, %v611
        %v632 = vmul.f32 %v458, %v599
        %v633 = vmul.f32 %v458, %v603
        %v634 = vmul.f32 %v458, %v607
        %v635 = vmul.f32 %v458, %v611
        %v636 = vmul.f32 %v463, %v599
        %v637 = vmul.f32 %v463, %v603
        %v638 = vmul.f32 %v463, %v607
        %v639 = vmul.f32 %v463, %v611
        %v640 = vmul.f32 %v468, %v599
        %v641 = vmul.f32 %v468, %v603
        %v642 = vmul.f32 %v468, %v607
        %v643 = vmul.f32 %v468, %v611
        %v644 = vmul.f32 %v473, %v599
        %v645 = vmul.f32 %v473, %v603
        %v646 = vmul.f32 %v473, %v607
        %v647 = vmul.f32 %v473, %v611
        %v648 = vmul.f32 %v478, %v599
        %v649 = vmul.f32 %v478, %v603
        %v650 = vmul.f32 %v478, %v607
        %v651 = vmul.f32 %v478, %v611
        %v652 = vmul.f32 %v483, %v599
        %v653 = vmul.f32 %v483, %v603
        %v654 = vmul.f32 %v483, %v607
        %v655 = vmul.f32 %v483, %v611
        %v656 = vmul.f32 %v488, %v599
        %v657 = vmul.f32 %v488, %v603
        %v658 = vmul.f32 %v488, %v607
        %v659 = vmul.f32 %v488, %v611
        %v660 = vmul.f32 %v493, %v599
        %v661 = vmul.f32 %v493, %v603
        %v662 = vmul.f32 %v493, %v607
        %v663 = vmul.f32 %v493, %v611
        %v664 = vmul.f32 %v498, %v599
        %v665 = vmul.f32 %v498, %v603
        %v666 = vmul.f32 %v498, %v607
        %v667 = vmul.f32 %v498, %v611
        %v668 = vmul.f32 %v503, %v599
        %v669 = vmul.f32 %v503, %v603
        %v670 = vmul.f32 %v503, %v607
        %v671 = vmul.f32 %v503, %v611
        %v672 = vmul.f32 %v508, %v599
        %v673 = vmul.f32 %v508, %v603
        %v674 = vmul.f32 %v508, %v607
        %v675 = vmul.f32 %v508, %v611
        %v676 = vmul.f32 %v513, %v599
        %v677 = vmul.f32 %v513, %v603
        %v678 = vmul.f32 %v513, %v607
        %v679 = vmul.f32 %v513, %v611
        %v680 = vmul.f32 %v518, %v599
        %v681 = vmul.f32 %v518, %v603
        %v682 = vmul.f32 %v518, %v607
        %v683 = vmul.f32 %v518, %v611
        %v684 = vmul.f32 %v523, %v599
        %v685 = vmul.f32 %v523, %v603
        %v686 = vmul.f32 %v523, %v607
        %v687 = vmul.f32 %v523, %v611
        %v688 = vmul.f32 %v528, %v599
        %v689 = vmul.f32 %v528, %v603
        %v690 = vmul.f32 %v528, %v607
        %v691 = vmul.f32 %v528, %v611
        %v692 = vmul.f32 %v533, %v599
        %v693 = vmul.f32 %v533, %v603
        %v694 = vmul.f32 %v533, %v607
        %v695 = vmul.f32 %v533, %v611
        %v696 = vmul.f32 %v538, %v599
        %v697 = vmul.f32 %v538, %v603
        %v698 = vmul.f32 %v538, %v607
        %v699 = vmul.f32 %v538, %v611
        %v700 = vmul.f32 %v543, %v599
        %v701 = vmul.f32 %v543, %v603
        %v702 = vmul.f32 %v543, %v607
        %v703 = vmul.f32 %v543, %v611
        %v704 = vmul.f32 %v548, %v599
        %v705 = vmul.f32 %v548, %v603
        %v706 = vmul.f32 %v548, %v607
        %v707 = vmul.f32 %v548, %v611
        %v708 = vmul.f32 %v553, %v599
        %v709 = vmul.f32 %v553, %v603
        %v710 = vmul.f32 %v553, %v607
        %v711 = vmul.f32 %v553, %v611
        %v712 = vmul.f32 %v558, %v599
        %v713 = vmul.f32 %v558, %v603
        %v714 = vmul.f32 %v558, %v607
        %v715 = vmul.f32 %v558, %v611
        %v716 = vmul.f32 %v563, %v599
        %v717 = vmul.f32 %v563, %v603
        %v718 = vmul.f32 %v563, %v607
        %v719 = vmul.f32 %v563, %v611
        %v720 = vmul.f32 %v568, %v599
        %v721 = vmul.f32 %v568, %v603
        %v722 = vmul.f32 %v568, %v607
        %v723 = vmul.f32 %v568, %v611
        %v724 = vmul.f32 %v573, %v599
        %v725 = vmul.f32 %v573, %v603
        %v726 = vmul.f32 %v573, %v607
        %v727 = vmul.f32 %v573, %v611
        %v728 = vmul.f32 %v578, %v599
        %v729 = vmul.f32 %v578, %v603
        %v730 = vmul.f32 %v578, %v607
        %v731 = vmul.f32 %v578, %v611
        %v732 = vmul.f32 %v583, %v599
        %v733 = vmul.f32 %v583, %v603
        %v734 = vmul.f32 %v583, %v607
        %v735 = vmul.f32 %v583, %v611
        %v736 = vmul.f32 %v588, %v599
        %v737 = vmul.f32 %v588, %v603
        %v738 = vmul.f32 %v588, %v607
        %v739 = vmul.f32 %v588, %v611
        %v740 = vmul.f32 %v593, %v599
        %v741 = vmul.f32 %v593, %v603
        %v742 = vmul.f32 %v593, %v607
        %v743 = vmul.f32 %v593, %v611
        %v744 = vld [vmem:[%s2] sm:$0xff]
        %v745 = vld [vmem:[%s2 + $0x8] sm:$0xff]
        %v746 = vld [vmem:[%s2 + $0x10] sm:$0xff]
        %v747 = vld [vmem:[%s2 + $0x18] sm:$0xff]
        %v748 = vld [vmem:[%s2 + $0x20] sm:$0xff]
        %v749 = vld [vmem:[%s2 + $0x28] sm:$0xff]
        %v750 = vld [vmem:[%s2 + $0x30] sm:$0xff]
        %v751 = vld [vmem:[%s2 + $0x38] sm:$0xff]
        %v752 = vld [vmem:[%s2 + $0x40] sm:$0xff]
        %v753 = vld [vmem:[%s2 + $0x48] sm:$0xff]
        %v754 = vld [vmem:[%s2 + $0x50] sm:$0xff]
        %v755 = vld [vmem:[%s2 + $0x58] sm:$0xff]
        %v756 = vld [vmem:[%s2 + $0x60] sm:$0xff]
        %v757 = vld [vmem:[%s2 + $0x68] sm:$0xff]
        %v758 = vld [vmem:[%s2 + $0x70] sm:$0xff]
        %v759 = vld [vmem:[%s2 + $0x78] sm:$0xff]
        %v760 = vld [vmem:[%s2 + $0x80] sm:$0xff]
        %v761 = vld [vmem:[%s2 + $0x88] sm:$0xff]
        %v762 = vld [vmem:[%s2 + $0x90] sm:$0xff]
        %v763 = vld [vmem:[%s2 + $0x98] sm:$0xff]
        %v764 = vld [vmem:[%s2 + $0xa0] sm:$0xff]
        %v765 = vld [vmem:[%s2 + $0xa8] sm:$0xff]
        %v766 = vld [vmem:[%s2 + $0xb0] sm:$0xff]
        %v767 = vld [vmem:[%s2 + $0xb8] sm:$0xff]
        %v768 = vld [vmem:[%s2 + $0xc0] sm:$0xff]
        %v769 = vld [vmem:[%s2 + $0xc8] sm:$0xff]
        %v770 = vld [vmem:[%s2 + $0xd0] sm:$0xff]
        %v771 = vld [vmem:[%s2 + $0xd8] sm:$0xff]
        %v772 = vld [vmem:[%s2 + $0xe0] sm:$0xff]
        %v773 = vld [vmem:[%s2 + $0xe8] sm:$0xff]
        %v774 = vld [vmem:[%s2 + $0xf0] sm:$0xff]
        %v775 = vld [vmem:[%s2 + $0xf8] sm:$0xff]
        %777 = vset.pattern.permute.xlu0 0
        %778 = vperm.xlu0 %777, %v744
        %v779 = vpop.permute.xlu0 %778
        %782 = vset.pattern.permute.xlu0 0
        %783 = vperm.xlu0 %782, %v745
        %v784 = vpop.permute.xlu0 %783
        %787 = vset.pattern.permute.xlu0 0
        %788 = vperm.xlu0 %787, %v746
        %v789 = vpop.permute.xlu0 %788
        %792 = vset.pattern.permute.xlu0 0
        %793 = vperm.xlu0 %792, %v747
        %v794 = vpop.permute.xlu0 %793
        %797 = vset.pattern.permute.xlu0 0
        %798 = vperm.xlu0 %797, %v748
        %v799 = vpop.permute.xlu0 %798
        %802 = vset.pattern.permute.xlu0 0
        %803 = vperm.xlu0 %802, %v749
        %v804 = vpop.permute.xlu0 %803
        %807 = vset.pattern.permute.xlu0 0
        %808 = vperm.xlu0 %807, %v750
        %v809 = vpop.permute.xlu0 %808
        %812 = vset.pattern.permute.xlu0 0
        %813 = vperm.xlu0 %812, %v751
        %v814 = vpop.permute.xlu0 %813
        %817 = vset.pattern.permute.xlu0 0
        %818 = vperm.xlu0 %817, %v752
        %v819 = vpop.permute.xlu0 %818
        %822 = vset.pattern.permute.xlu0 0
        %823 = vperm.xlu0 %822, %v753
        %v824 = vpop.permute.xlu0 %823
        %827 = vset.pattern.permute.xlu0 0
        %828 = vperm.xlu0 %827, %v754
        %v829 = vpop.permute.xlu0 %828
        %832 = vset.pattern.permute.xlu0 0
        %833 = vperm.xlu0 %832, %v755
        %v834 = vpop.permute.xlu0 %833
        %837 = vset.pattern.permute.xlu0 0
        %838 = vperm.xlu0 %837, %v756
        %v839 = vpop.permute.xlu0 %838
        %842 = vset.pattern.permute.xlu0 0
        %843 = vperm.xlu0 %842, %v757
        %v844 = vpop.permute.xlu0 %843
        %847 = vset.pattern.permute.xlu0 0
        %848 = vperm.xlu0 %847, %v758
        %v849 = vpop.permute.xlu0 %848
        %852 = vset.pattern.permute.xlu0 0
        %853 = vperm.xlu0 %852, %v759
        %v854 = vpop.permute.xlu0 %853
        %857 = vset.pattern.permute.xlu0 0
        %858 = vperm.xlu0 %857, %v760
        %v859 = vpop.permute.xlu0 %858
        %862 = vset.pattern.permute.xlu0 0
        %863 = vperm.xlu0 %862, %v761
        %v864 = vpop.permute.xlu0 %863
        %867 = vset.pattern.permute.xlu0 0
        %868 = vperm.xlu0 %867, %v762
        %v869 = vpop.permute.xlu0 %868
        %872 = vset.pattern.permute.xlu0 0
        %873 = vperm.xlu0 %872, %v763
        %v874 = vpop.permute.xlu0 %873
        %877 = vset.pattern.permute.xlu0 0
        %878 = vperm.xlu0 %877, %v764
        %v879 = vpop.permute.xlu0 %878
        %882 = vset.pattern.permute.xlu0 0
        %883 = vperm.xlu0 %882, %v765
        %v884 = vpop.permute.xlu0 %883
        %887 = vset.pattern.permute.xlu0 0
        %888 = vperm.xlu0 %887, %v766
        %v889 = vpop.permute.xlu0 %888
        %892 = vset.pattern.permute.xlu0 0
        %893 = vperm.xlu0 %892, %v767
        %v894 = vpop.permute.xlu0 %893
        %897 = vset.pattern.permute.xlu0 0
        %898 = vperm.xlu0 %897, %v768
        %v899 = vpop.permute.xlu0 %898
        %902 = vset.pattern.permute.xlu0 0
        %903 = vperm.xlu0 %902, %v769
        %v904 = vpop.permute.xlu0 %903
        %907 = vset.pattern.permute.xlu0 0
        %908 = vperm.xlu0 %907, %v770
        %v909 = vpop.permute.xlu0 %908
        %912 = vset.pattern.permute.xlu0 0
        %913 = vperm.xlu0 %912, %v771
        %v914 = vpop.permute.xlu0 %913
        %917 = vset.pattern.permute.xlu0 0
        %918 = vperm.xlu0 %917, %v772
        %v919 = vpop.permute.xlu0 %918
        %922 = vset.pattern.permute.xlu0 0
        %923 = vperm.xlu0 %922, %v773
        %v924 = vpop.permute.xlu0 %923
        %927 = vset.pattern.permute.xlu0 0
        %928 = vperm.xlu0 %927, %v774
        %v929 = vpop.permute.xlu0 %928
        %932 = vset.pattern.permute.xlu0 0
        %933 = vperm.xlu0 %932, %v775
        %v934 = vpop.permute.xlu0 %933
        %v936 = vadd.f32 %v616, %v779
        %v937 = vadd.f32 %v617, %v779
        %v938 = vadd.f32 %v618, %v779
        %v939 = vadd.f32 %v619, %v779
        %v940 = vadd.f32 %v620, %v784
        %v941 = vadd.f32 %v621, %v784
        %v942 = vadd.f32 %v622, %v784
        %v943 = vadd.f32 %v623, %v784
        %v944 = vadd.f32 %v624, %v789
        %v945 = vadd.f32 %v625, %v789
        %v946 = vadd.f32 %v626, %v789
        %v947 = vadd.f32 %v627, %v789
        %v948 = vadd.f32 %v628, %v794
        %v949 = vadd.f32 %v629, %v794
        %v950 = vadd.f32 %v630, %v794
        %v951 = vadd.f32 %v631, %v794
        %v952 = vadd.f32 %v632, %v799
        %v953 = vadd.f32 %v633, %v799
        %v954 = vadd.f32 %v634, %v799
        %v955 = vadd.f32 %v635, %v799
        %v956 = vadd.f32 %v636, %v804
        %v957 = vadd.f32 %v637, %v804
        %v958 = vadd.f32 %v638, %v804
        %v959 = vadd.f32 %v639, %v804
        %v960 = vadd.f32 %v640, %v809
        %v961 = vadd.f32 %v641, %v809
        %v962 = vadd.f32 %v642, %v809
        %v963 = vadd.f32 %v643, %v809
        %v964 = vadd.f32 %v644, %v814
        %v965 = vadd.f32 %v645, %v814
        %v966 = vadd.f32 %v646, %v814
        %v967 = vadd.f32 %v647, %v814
        %v968 = vadd.f32 %v648, %v819
        %v969 = vadd.f32 %v649, %v819
        %v970 = vadd.f32 %v650, %v819
        %v971 = vadd.f32 %v651, %v819
        %v972 = vadd.f32 %v652, %v824
        %v973 = vadd.f32 %v653, %v824
        %v974 = vadd.f32 %v654, %v824
        %v975 = vadd.f32 %v655, %v824
        %v976 = vadd.f32 %v656, %v829
        %v977 = vadd.f32 %v657, %v829
        %v978 = vadd.f32 %v658, %v829
        %v979 = vadd.f32 %v659, %v829
        %v980 = vadd.f32 %v660, %v834
        %v981 = vadd.f32 %v661, %v834
        %v982 = vadd.f32 %v662, %v834
        %v983 = vadd.f32 %v663, %v834
        %v984 = vadd.f32 %v664, %v839
        %v985 = vadd.f32 %v665, %v839
        %v986 = vadd.f32 %v666, %v839
        %v987 = vadd.f32 %v667, %v839
        %v988 = vadd.f32 %v668, %v844
        %v989 = vadd.f32 %v669, %v844
        %v990 = vadd.f32 %v670, %v844
        %v991 = vadd.f32 %v671, %v844
        %v992 = vadd.f32 %v672, %v849
        %v993 = vadd.f32 %v673, %v849
        %v994 = vadd.f32 %v674, %v849
        %v995 = vadd.f32 %v675, %v849
        %v996 = vadd.f32 %v676, %v854
        %v997 = vadd.f32 %v677, %v854
        %v998 = vadd.f32 %v678, %v854
        %v999 = vadd.f32 %v679, %v854
        %v1000 = vadd.f32 %v680, %v859
        %v1001 = vadd.f32 %v681, %v859
        %v1002 = vadd.f32 %v682, %v859
        %v1003 = vadd.f32 %v683, %v859
        %v1004 = vadd.f32 %v684, %v864
        %v1005 = vadd.f32 %v685, %v864
        %v1006 = vadd.f32 %v686, %v864
        %v1007 = vadd.f32 %v687, %v864
        %v1008 = vadd.f32 %v688, %v869
        %v1009 = vadd.f32 %v689, %v869
        %v1010 = vadd.f32 %v690, %v869
        %v1011 = vadd.f32 %v691, %v869
        %v1012 = vadd.f32 %v692, %v874
        %v1013 = vadd.f32 %v693, %v874
        %v1014 = vadd.f32 %v694, %v874
        %v1015 = vadd.f32 %v695, %v874
        %v1016 = vadd.f32 %v696, %v879
        %v1017 = vadd.f32 %v697, %v879
        %v1018 = vadd.f32 %v698, %v879
        %v1019 = vadd.f32 %v699, %v879
        %v1020 = vadd.f32 %v700, %v884
        %v1021 = vadd.f32 %v701, %v884
        %v1022 = vadd.f32 %v702, %v884
        %v1023 = vadd.f32 %v703, %v884
        %v1024 = vadd.f32 %v704, %v889
        %v1025 = vadd.f32 %v705, %v889
        %v1026 = vadd.f32 %v706, %v889
        %v1027 = vadd.f32 %v707, %v889
        %v1028 = vadd.f32 %v708, %v894
        %v1029 = vadd.f32 %v709, %v894
        %v1030 = vadd.f32 %v710, %v894
        %v1031 = vadd.f32 %v711, %v894
        %v1032 = vadd.f32 %v712, %v899
        %v1033 = vadd.f32 %v713, %v899
        %v1034 = vadd.f32 %v714, %v899
        %v1035 = vadd.f32 %v715, %v899
        %v1036 = vadd.f32 %v716, %v904
        %v1037 = vadd.f32 %v717, %v904
        %v1038 = vadd.f32 %v718, %v904
        %v1039 = vadd.f32 %v719, %v904
        %v1040 = vadd.f32 %v720, %v909
        %v1041 = vadd.f32 %v721, %v909
        %v1042 = vadd.f32 %v722, %v909
        %v1043 = vadd.f32 %v723, %v909
        %v1044 = vadd.f32 %v724, %v914
        %v1045 = vadd.f32 %v725, %v914
        %v1046 = vadd.f32 %v726, %v914
        %v1047 = vadd.f32 %v727, %v914
        %v1048 = vadd.f32 %v728, %v919
        %v1049 = vadd.f32 %v729, %v919
        %v1050 = vadd.f32 %v730, %v919
        %v1051 = vadd.f32 %v731, %v919
        %v1052 = vadd.f32 %v732, %v924
        %v1053 = vadd.f32 %v733, %v924
        %v1054 = vadd.f32 %v734, %v924
        %v1055 = vadd.f32 %v735, %v924
        %v1056 = vadd.f32 %v736, %v929
        %v1057 = vadd.f32 %v737, %v929
        %v1058 = vadd.f32 %v738, %v929
        %v1059 = vadd.f32 %v739, %v929
        %v1060 = vadd.f32 %v740, %v934
        %v1061 = vadd.f32 %v741, %v934
        %v1062 = vadd.f32 %v742, %v934
        %v1063 = vadd.f32 %v743, %v934
        %v1064 = vmax.f32 %v936, 0.0
        %v1065 = vmax.f32 %v937, 0.0
        %v1066 = vmax.f32 %v938, 0.0
        %v1067 = vmax.f32 %v939, 0.0
        %v1068 = vmax.f32 %v940, 0.0
        %v1069 = vmax.f32 %v941, 0.0
        %v1070 = vmax.f32 %v942, 0.0
        %v1071 = vmax.f32 %v943, 0.0
        %v1072 = vmax.f32 %v944, 0.0
        %v1073 = vmax.f32 %v945, 0.0
        %v1074 = vmax.f32 %v946, 0.0
        %v1075 = vmax.f32 %v947, 0.0
        %v1076 = vmax.f32 %v948, 0.0
        %v1077 = vmax.f32 %v949, 0.0
        %v1078 = vmax.f32 %v950, 0.0
        %v1079 = vmax.f32 %v951, 0.0
        %v1080 = vmax.f32 %v952, 0.0
        %v1081 = vmax.f32 %v953, 0.0
        %v1082 = vmax.f32 %v954, 0.0
        %v1083 = vmax.f32 %v955, 0.0
        %v1084 = vmax.f32 %v956, 0.0
        %v1085 = vmax.f32 %v957, 0.0
        %v1086 = vmax.f32 %v958, 0.0
        %v1087 = vmax.f32 %v959, 0.0
        %v1088 = vmax.f32 %v960, 0.0
        %v1089 = vmax.f32 %v961, 0.0
        %v1090 = vmax.f32 %v962, 0.0
        %v1091 = vmax.f32 %v963, 0.0
        %v1092 = vmax.f32 %v964, 0.0
        %v1093 = vmax.f32 %v965, 0.0
        %v1094 = vmax.f32 %v966, 0.0
        %v1095 = vmax.f32 %v967, 0.0
        %v1096 = vmax.f32 %v968, 0.0
        %v1097 = vmax.f32 %v969, 0.0
        %v1098 = vmax.f32 %v970, 0.0
        %v1099 = vmax.f32 %v971, 0.0
        %v1100 = vmax.f32 %v972, 0.0
        %v1101 = vmax.f32 %v973, 0.0
        %v1102 = vmax.f32 %v974, 0.0
        %v1103 = vmax.f32 %v975, 0.0
        %v1104 = vmax.f32 %v976, 0.0
        %v1105 = vmax.f32 %v977, 0.0
        %v1106 = vmax.f32 %v978, 0.0
        %v1107 = vmax.f32 %v979, 0.0
        %v1108 = vmax.f32 %v980, 0.0
        %v1109 = vmax.f32 %v981, 0.0
        %v1110 = vmax.f32 %v982, 0.0
        %v1111 = vmax.f32 %v983, 0.0
        %v1112 = vmax.f32 %v984, 0.0
        %v1113 = vmax.f32 %v985, 0.0
        %v1114 = vmax.f32 %v986, 0.0
        %v1115 = vmax.f32 %v987, 0.0
        %v1116 = vmax.f32 %v988, 0.0
        %v1117 = vmax.f32 %v989, 0.0
        %v1118 = vmax.f32 %v990, 0.0
        %v1119 = vmax.f32 %v991, 0.0
        %v1120 = vmax.f32 %v992, 0.0
        %v1121 = vmax.f32 %v993, 0.0
        %v1122 = vmax.f32 %v994, 0.0
        %v1123 = vmax.f32 %v995, 0.0
        %v1124 = vmax.f32 %v996, 0.0
        %v1125 = vmax.f32 %v997, 0.0
        %v1126 = vmax.f32 %v998, 0.0
        %v1127 = vmax.f32 %v999, 0.0
        %v1128 = vmax.f32 %v1000, 0.0
        %v1129 = vmax.f32 %v1001, 0.0
        %v1130 = vmax.f32 %v1002, 0.0
        %v1131 = vmax.f32 %v1003, 0.0
        %v1132 = vmax.f32 %v1004, 0.0
        %v1133 = vmax.f32 %v1005, 0.0
        %v1134 = vmax.f32 %v1006, 0.0
        %v1135 = vmax.f32 %v1007, 0.0
        %v1136 = vmax.f32 %v1008, 0.0
        %v1137 = vmax.f32 %v1009, 0.0
        %v1138 = vmax.f32 %v1010, 0.0
        %v1139 = vmax.f32 %v1011, 0.0
        %v1140 = vmax.f32 %v1012, 0.0
        %v1141 = vmax.f32 %v1013, 0.0
        %v1142 = vmax.f32 %v1014, 0.0
        %v1143 = vmax.f32 %v1015, 0.0
        %v1144 = vmax.f32 %v1016, 0.0
        %v1145 = vmax.f32 %v1017, 0.0
        %v1146 = vmax.f32 %v1018, 0.0
        %v1147 = vmax.f32 %v1019, 0.0
        %v1148 = vmax.f32 %v1020, 0.0
        %v1149 = vmax.f32 %v1021, 0.0
        %v1150 = vmax.f32 %v1022, 0.0
        %v1151 = vmax.f32 %v1023, 0.0
        %v1152 = vmax.f32 %v1024, 0.0
        %v1153 = vmax.f32 %v1025, 0.0
        %v1154 = vmax.f32 %v1026, 0.0
        %v1155 = vmax.f32 %v1027, 0.0
        %v1156 = vmax.f32 %v1028, 0.0
        %v1157 = vmax.f32 %v1029, 0.0
        %v1158 = vmax.f32 %v1030, 0.0
        %v1159 = vmax.f32 %v1031, 0.0
        %v1160 = vmax.f32 %v1032, 0.0
        %v1161 = vmax.f32 %v1033, 0.0
        %v1162 = vmax.f32 %v1034, 0.0
        %v1163 = vmax.f32 %v1035, 0.0
        %v1164 = vmax.f32 %v1036, 0.0
        %v1165 = vmax.f32 %v1037, 0.0
        %v1166 = vmax.f32 %v1038, 0.0
        %v1167 = vmax.f32 %v1039, 0.0
        %v1168 = vmax.f32 %v1040, 0.0
        %v1169 = vmax.f32 %v1041, 0.0
        %v1170 = vmax.f32 %v1042, 0.0
        %v1171 = vmax.f32 %v1043, 0.0
        %v1172 = vmax.f32 %v1044, 0.0
        %v1173 = vmax.f32 %v1045, 0.0
        %v1174 = vmax.f32 %v1046, 0.0
        %v1175 = vmax.f32 %v1047, 0.0
        %v1176 = vmax.f32 %v1048, 0.0
        %v1177 = vmax.f32 %v1049, 0.0
        %v1178 = vmax.f32 %v1050, 0.0
        %v1179 = vmax.f32 %v1051, 0.0
        %v1180 = vmax.f32 %v1052, 0.0
        %v1181 = vmax.f32 %v1053, 0.0
        %v1182 = vmax.f32 %v1054, 0.0
        %v1183 = vmax.f32 %v1055, 0.0
        %v1184 = vmax.f32 %v1056, 0.0
        %v1185 = vmax.f32 %v1057, 0.0
        %v1186 = vmax.f32 %v1058, 0.0
        %v1187 = vmax.f32 %v1059, 0.0
        %v1188 = vmax.f32 %v1060, 0.0
        %v1189 = vmax.f32 %v1061, 0.0
        %v1190 = vmax.f32 %v1062, 0.0
        %v1191 = vmax.f32 %v1063, 0.0
        %v1192 = vld [vmem:[%s3] sm:$0xff]
        %v1193 = vld [vmem:[%s3 + $0x8] sm:$0xff]
        %v1194 = vld [vmem:[%s3 + $0x10] sm:$0xff]
        %v1195 = vld [vmem:[%s3 + $0x18] sm:$0xff]
        %v1196 = vld [vmem:[%s3 + $0x20] sm:$0xff]
        %v1197 = vld [vmem:[%s3 + $0x28] sm:$0xff]
        %v1198 = vld [vmem:[%s3 + $0x30] sm:$0xff]
        %v1199 = vld [vmem:[%s3 + $0x38] sm:$0xff]
        %v1200 = vld [vmem:[%s3 + $0x40] sm:$0xff]
        %v1201 = vld [vmem:[%s3 + $0x48] sm:$0xff]
        %v1202 = vld [vmem:[%s3 + $0x50] sm:$0xff]
        %v1203 = vld [vmem:[%s3 + $0x58] sm:$0xff]
        %v1204 = vld [vmem:[%s3 + $0x60] sm:$0xff]
        %v1205 = vld [vmem:[%s3 + $0x68] sm:$0xff]
        %v1206 = vld [vmem:[%s3 + $0x70] sm:$0xff]
        %v1207 = vld [vmem:[%s3 + $0x78] sm:$0xff]
        %v1208 = vld [vmem:[%s3 + $0x80] sm:$0xff]
        %v1209 = vld [vmem:[%s3 + $0x88] sm:$0xff]
        %v1210 = vld [vmem:[%s3 + $0x90] sm:$0xff]
        %v1211 = vld [vmem:[%s3 + $0x98] sm:$0xff]
        %v1212 = vld [vmem:[%s3 + $0xa0] sm:$0xff]
        %v1213 = vld [vmem:[%s3 + $0xa8] sm:$0xff]
        %v1214 = vld [vmem:[%s3 + $0xb0] sm:$0xff]
        %v1215 = vld [vmem:[%s3 + $0xb8] sm:$0xff]
        %v1216 = vld [vmem:[%s3 + $0xc0] sm:$0xff]
        %v1217 = vld [vmem:[%s3 + $0xc8] sm:$0xff]
        %v1218 = vld [vmem:[%s3 + $0xd0] sm:$0xff]
        %v1219 = vld [vmem:[%s3 + $0xd8] sm:$0xff]
        %v1220 = vld [vmem:[%s3 + $0xe0] sm:$0xff]
        %v1221 = vld [vmem:[%s3 + $0xe8] sm:$0xff]
        %v1222 = vld [vmem:[%s3 + $0xf0] sm:$0xff]
        %v1223 = vld [vmem:[%s3 + $0xf8] sm:$0xff]
        %v1224 = vld [vmem:[%s3 + $0x100] sm:$0xff]
        %v1225 = vld [vmem:[%s3 + $0x108] sm:$0xff]
        %v1226 = vld [vmem:[%s3 + $0x110] sm:$0xff]
        %v1227 = vld [vmem:[%s3 + $0x118] sm:$0xff]
        %v1228 = vld [vmem:[%s3 + $0x120] sm:$0xff]
        %v1229 = vld [vmem:[%s3 + $0x128] sm:$0xff]
        %v1230 = vld [vmem:[%s3 + $0x130] sm:$0xff]
        %v1231 = vld [vmem:[%s3 + $0x138] sm:$0xff]
        %v1232 = vld [vmem:[%s3 + $0x140] sm:$0xff]
        %v1233 = vld [vmem:[%s3 + $0x148] sm:$0xff]
        %v1234 = vld [vmem:[%s3 + $0x150] sm:$0xff]
        %v1235 = vld [vmem:[%s3 + $0x158] sm:$0xff]
        %v1236 = vld [vmem:[%s3 + $0x160] sm:$0xff]
        %v1237 = vld [vmem:[%s3 + $0x168] sm:$0xff]
        %v1238 = vld [vmem:[%s3 + $0x170] sm:$0xff]
        %v1239 = vld [vmem:[%s3 + $0x178] sm:$0xff]
        %v1240 = vld [vmem:[%s3 + $0x180] sm:$0xff]
        %v1241 = vld [vmem:[%s3 + $0x188] sm:$0xff]
        %v1242 = vld [vmem:[%s3 + $0x190] sm:$0xff]
        %v1243 = vld [vmem:[%s3 + $0x198] sm:$0xff]
        %v1244 = vld [vmem:[%s3 + $0x1a0] sm:$0xff]
        %v1245 = vld [vmem:[%s3 + $0x1a8] sm:$0xff]
        %v1246 = vld [vmem:[%s3 + $0x1b0] sm:$0xff]
        %v1247 = vld [vmem:[%s3 + $0x1b8] sm:$0xff]
        %v1248 = vld [vmem:[%s3 + $0x1c0] sm:$0xff]
        %v1249 = vld [vmem:[%s3 + $0x1c8] sm:$0xff]
        %v1250 = vld [vmem:[%s3 + $0x1d0] sm:$0xff]
        %v1251 = vld [vmem:[%s3 + $0x1d8] sm:$0xff]
        %v1252 = vld [vmem:[%s3 + $0x1e0] sm:$0xff]
        %v1253 = vld [vmem:[%s3 + $0x1e8] sm:$0xff]
        %v1254 = vld [vmem:[%s3 + $0x1f0] sm:$0xff]
        %v1255 = vld [vmem:[%s3 + $0x1f8] sm:$0xff]
        %v1256 = vld [vmem:[%s4] sm:$0xff]
        %v1257 = vld [vmem:[%s4 + $0x8] sm:$0xff]
        %v1258 = vld [vmem:[%s4 + $0x10] sm:$0xff]
        %v1259 = vld [vmem:[%s4 + $0x18] sm:$0xff]
        %v1260 = vld [vmem:[%s4 + $0x20] sm:$0xff]
        %v1261 = vld [vmem:[%s4 + $0x28] sm:$0xff]
        %v1262 = vld [vmem:[%s4 + $0x30] sm:$0xff]
        %v1263 = vld [vmem:[%s4 + $0x38] sm:$0xff]
        %v1264 = vld [vmem:[%s4 + $0x40] sm:$0xff]
        %v1265 = vld [vmem:[%s4 + $0x48] sm:$0xff]
        %v1266 = vld [vmem:[%s4 + $0x50] sm:$0xff]
        %v1267 = vld [vmem:[%s4 + $0x58] sm:$0xff]
        %v1268 = vld [vmem:[%s4 + $0x60] sm:$0xff]
        %v1269 = vld [vmem:[%s4 + $0x68] sm:$0xff]
        %v1270 = vld [vmem:[%s4 + $0x70] sm:$0xff]
        %v1271 = vld [vmem:[%s4 + $0x78] sm:$0xff]
        %v1272 = vld [vmem:[%s4 + $0x80] sm:$0xff]
        %v1273 = vld [vmem:[%s4 + $0x88] sm:$0xff]
        %v1274 = vld [vmem:[%s4 + $0x90] sm:$0xff]
        %v1275 = vld [vmem:[%s4 + $0x98] sm:$0xff]
        %v1276 = vld [vmem:[%s4 + $0xa0] sm:$0xff]
        %v1277 = vld [vmem:[%s4 + $0xa8] sm:$0xff]
        %v1278 = vld [vmem:[%s4 + $0xb0] sm:$0xff]
        %v1279 = vld [vmem:[%s4 + $0xb8] sm:$0xff]
        %v1280 = vld [vmem:[%s4 + $0xc0] sm:$0xff]
        %v1281 = vld [vmem:[%s4 + $0xc8] sm:$0xff]
        %v1282 = vld [vmem:[%s4 + $0xd0] sm:$0xff]
        %v1283 = vld [vmem:[%s4 + $0xd8] sm:$0xff]
        %v1284 = vld [vmem:[%s4 + $0xe0] sm:$0xff]
        %v1285 = vld [vmem:[%s4 + $0xe8] sm:$0xff]
        %v1286 = vld [vmem:[%s4 + $0xf0] sm:$0xff]
        %v1287 = vld [vmem:[%s4 + $0xf8] sm:$0xff]
        %1289 = vset.pattern.permute.xlu0 0
        %1290 = vperm.xlu0 %1289, %v1256
        %v1291 = vpop.permute.xlu0 %1290
        %1294 = vset.pattern.permute.xlu0 0
        %1295 = vperm.xlu0 %1294, %v1257
        %v1296 = vpop.permute.xlu0 %1295
        %1299 = vset.pattern.permute.xlu0 0
        %1300 = vperm.xlu0 %1299, %v1258
        %v1301 = vpop.permute.xlu0 %1300
        %1304 = vset.pattern.permute.xlu0 0
        %1305 = vperm.xlu0 %1304, %v1259
        %v1306 = vpop.permute.xlu0 %1305
        %1309 = vset.pattern.permute.xlu0 0
        %1310 = vperm.xlu0 %1309, %v1260
        %v1311 = vpop.permute.xlu0 %1310
        %1314 = vset.pattern.permute.xlu0 0
        %1315 = vperm.xlu0 %1314, %v1261
        %v1316 = vpop.permute.xlu0 %1315
        %1319 = vset.pattern.permute.xlu0 0
        %1320 = vperm.xlu0 %1319, %v1262
        %v1321 = vpop.permute.xlu0 %1320
        %1324 = vset.pattern.permute.xlu0 0
        %1325 = vperm.xlu0 %1324, %v1263
        %v1326 = vpop.permute.xlu0 %1325
        %1329 = vset.pattern.permute.xlu0 0
        %1330 = vperm.xlu0 %1329, %v1264
        %v1331 = vpop.permute.xlu0 %1330
        %1334 = vset.pattern.permute.xlu0 0
        %1335 = vperm.xlu0 %1334, %v1265
        %v1336 = vpop.permute.xlu0 %1335
        %1339 = vset.pattern.permute.xlu0 0
        %1340 = vperm.xlu0 %1339, %v1266
        %v1341 = vpop.permute.xlu0 %1340
        %1344 = vset.pattern.permute.xlu0 0
        %1345 = vperm.xlu0 %1344, %v1267
        %v1346 = vpop.permute.xlu0 %1345
        %1349 = vset.pattern.permute.xlu0 0
        %1350 = vperm.xlu0 %1349, %v1268
        %v1351 = vpop.permute.xlu0 %1350
        %1354 = vset.pattern.permute.xlu0 0
        %1355 = vperm.xlu0 %1354, %v1269
        %v1356 = vpop.permute.xlu0 %1355
        %1359 = vset.pattern.permute.xlu0 0
        %1360 = vperm.xlu0 %1359, %v1270
        %v1361 = vpop.permute.xlu0 %1360
        %1364 = vset.pattern.permute.xlu0 0
        %1365 = vperm.xlu0 %1364, %v1271
        %v1366 = vpop.permute.xlu0 %1365
        %1369 = vset.pattern.permute.xlu0 0
        %1370 = vperm.xlu0 %1369, %v1272
        %v1371 = vpop.permute.xlu0 %1370
        %1374 = vset.pattern.permute.xlu0 0
        %1375 = vperm.xlu0 %1374, %v1273
        %v1376 = vpop.permute.xlu0 %1375
        %1379 = vset.pattern.permute.xlu0 0
        %1380 = vperm.xlu0 %1379, %v1274
        %v1381 = vpop.permute.xlu0 %1380
        %1384 = vset.pattern.permute.xlu0 0
        %1385 = vperm.xlu0 %1384, %v1275
        %v1386 = vpop.permute.xlu0 %1385
        %1389 = vset.pattern.permute.xlu0 0
        %1390 = vperm.xlu0 %1389, %v1276
        %v1391 = vpop.permute.xlu0 %1390
        %1394 = vset.pattern.permute.xlu0 0
        %1395 = vperm.xlu0 %1394, %v1277
        %v1396 = vpop.permute.xlu0 %1395
        %1399 = vset.pattern.permute.xlu0 0
        %1400 = vperm.xlu0 %1399, %v1278
        %v1401 = vpop.permute.xlu0 %1400
        %1404 = vset.pattern.permute.xlu0 0
        %1405 = vperm.xlu0 %1404, %v1279
        %v1406 = vpop.permute.xlu0 %1405
        %1409 = vset.pattern.permute.xlu0 0
        %1410 = vperm.xlu0 %1409, %v1280
        %v1411 = vpop.permute.xlu0 %1410
        %1414 = vset.pattern.permute.xlu0 0
        %1415 = vperm.xlu0 %1414, %v1281
        %v1416 = vpop.permute.xlu0 %1415
        %1419 = vset.pattern.permute.xlu0 0
        %1420 = vperm.xlu0 %1419, %v1282
        %v1421 = vpop.permute.xlu0 %1420
        %1424 = vset.pattern.permute.xlu0 0
        %1425 = vperm.xlu0 %1424, %v1283
        %v1426 = vpop.permute.xlu0 %1425
        %1429 = vset.pattern.permute.xlu0 0
        %1430 = vperm.xlu0 %1429, %v1284
        %v1431 = vpop.permute.xlu0 %1430
        %1434 = vset.pattern.permute.xlu0 0
        %1435 = vperm.xlu0 %1434, %v1285
        %v1436 = vpop.permute.xlu0 %1435
        %1439 = vset.pattern.permute.xlu0 0
        %1440 = vperm.xlu0 %1439, %v1286
        %v1441 = vpop.permute.xlu0 %1440
        %1444 = vset.pattern.permute.xlu0 0
        %1445 = vperm.xlu0 %1444, %v1287
        %v1446 = vpop.permute.xlu0 %1445
        %1448 = vmatprep.subr.mxu0 %v1065
        %1449 = vmatpush1.msra.mxu0 %v1064
        %1450 = vmatprep.subr.mxu0 %v1069
        %1451 = vmatpush1.msra.mxu0 %v1068
        %1452 = vmatprep.subr.mxu0 %v1073
        %1453 = vmatpush1.msra.mxu0 %v1072
        %1454 = vmatprep.subr.mxu0 %v1077
        %1455 = vmatpush1.msra.mxu0 %v1076
        %1456 = vmatprep.subr.mxu0 %v1081
        %1457 = vmatpush1.msra.mxu0 %v1080
        %1458 = vmatprep.subr.mxu0 %v1085
        %1459 = vmatpush1.msra.mxu0 %v1084
        %1460 = vmatprep.subr.mxu0 %v1089
        %1461 = vmatpush1.msra.mxu0 %v1088
        %1462 = vmatprep.subr.mxu0 %v1093
        %1463 = vmatpush1.msra.mxu0 %v1092
        %1464 = vmatprep.subr.mxu0 %v1097
        %1465 = vmatpush1.msra.mxu0 %v1096
        %1466 = vmatprep.subr.mxu0 %v1101
        %1467 = vmatpush1.msra.mxu0 %v1100
        %1468 = vmatprep.subr.mxu0 %v1105
        %1469 = vmatpush1.msra.mxu0 %v1104
        %1470 = vmatprep.subr.mxu0 %v1109
        %1471 = vmatpush1.msra.mxu0 %v1108
        %1472 = vmatprep.subr.mxu0 %v1113
        %1473 = vmatpush1.msra.mxu0 %v1112
        %1474 = vmatprep.subr.mxu0 %v1117
        %1475 = vmatpush1.msra.mxu0 %v1116
        %1476 = vmatprep.subr.mxu0 %v1121
        %1477 = vmatpush1.msra.mxu0 %v1120
        %1478 = vmatprep.subr.mxu0 %v1125
        %1479 = vmatpush1.msra.mxu0 %v1124
        %1480 = vmatprep.subr.mxu0 %v1129
        %1481 = vmatpush1.msra.mxu0 %v1128
        %1482 = vmatprep.subr.mxu0 %v1133
        %1483 = vmatpush1.msra.mxu0 %v1132
        %1484 = vmatprep.subr.mxu0 %v1137
        %1485 = vmatpush1.msra.mxu0 %v1136
        %1486 = vmatprep.subr.mxu0 %v1141
        %1487 = vmatpush1.msra.mxu0 %v1140
        %1488 = vmatprep.subr.mxu0 %v1145
        %1489 = vmatpush1.msra.mxu0 %v1144
        %1490 = vmatprep.subr.mxu0 %v1149
        %1491 = vmatpush1.msra.mxu0 %v1148
        %1492 = vmatprep.subr.mxu0 %v1153
        %1493 = vmatpush1.msra.mxu0 %v1152
        %1494 = vmatprep.subr.mxu0 %v1157
        %1495 = vmatpush1.msra.mxu0 %v1156
        %1496 = vmatprep.subr.mxu0 %v1161
        %1497 = vmatpush1.msra.mxu0 %v1160
        %1498 = vmatprep.subr.mxu0 %v1165
        %1499 = vmatpush1.msra.mxu0 %v1164
        %1500 = vmatprep.subr.mxu0 %v1169
        %1501 = vmatpush1.msra.mxu0 %v1168
        %1502 = vmatprep.subr.mxu0 %v1173
        %1503 = vmatpush1.msra.mxu0 %v1172
        %1504 = vmatprep.subr.mxu0 %v1177
        %1505 = vmatpush1.msra.mxu0 %v1176
        %1506 = vmatprep.subr.mxu0 %v1181
        %1507 = vmatpush1.msra.mxu0 %v1180
        %1508 = vmatprep.subr.mxu0 %v1185
        %1509 = vmatpush1.msra.mxu0 %v1184
        %1510 = vmatprep.subr.mxu0 %v1189
        %1511 = vmatpush1.msra.mxu0 %v1188
        %1512 = vmatprep.mubr.f32.mxu0 %v1193
        %1513 = vmatmul.mubr.f32.gmra.mrb[0].mxu0 %v1192
        %v1514 = vpop.f32.mrb[0].mxu0
        %v1515 = vadd.f32 %v1291, %v1514
        %v1516 = vpop.f32.mrb[0].mxu0
        %v1517 = vadd.f32 %v1291, %v1516
        %1518 = vmatprep.mubr.f32.mxu0 %v1195
        %1519 = vmatmul.mubr.f32.gmra.mrb[0].mxu0 %v1194
        %v1520 = vpop.f32.mrb[0].mxu0
        %v1521 = vadd.f32 %v1296, %v1520
        %v1522 = vpop.f32.mrb[0].mxu0
        %v1523 = vadd.f32 %v1296, %v1522
        %1524 = vmatprep.mubr.f32.mxu0 %v1197
        %1525 = vmatmul.mubr.f32.gmra.mrb[0].mxu0 %v1196
        %v1526 = vpop.f32.mrb[0].mxu0
        %v1527 = vadd.f32 %v1301, %v1526
        %v1528 = vpop.f32.mrb[0].mxu0
        %v1529 = vadd.f32 %v1301, %v1528
        %1530 = vmatprep.mubr.f32.mxu0 %v1199
        %1531 = vmatmul.mubr.f32.gmra.mrb[0].mxu0 %v1198
        %v1532 = vpop.f32.mrb[0].mxu0
        %v1533 = vadd.f32 %v1306, %v1532
        %v1534 = vpop.f32.mrb[0].mxu0
        %v1535 = vadd.f32 %v1306, %v1534
        %1536 = vmatprep.mubr.f32.mxu0 %v1201
        %1537 = vmatmul.mubr.f32.gmra.mrb[0].mxu0 %v1200
        %v1538 = vpop.f32.mrb[0].mxu0
        %v1539 = vadd.f32 %v1311, %v1538
        %v1540 = vpop.f32.mrb[0].mxu0
        %v1541 = vadd.f32 %v1311, %v1540
        %1542 = vmatprep.mubr.f32.mxu0 %v1203
        %1543 = vmatmul.mubr.f32.gmra.mrb[0].mxu0 %v1202
        %v1544 = vpop.f32.mrb[0].mxu0
        %v1545 = vadd.f32 %v1316, %v1544
        %v1546 = vpop.f32.mrb[0].mxu0
        %v1547 = vadd.f32 %v1316, %v1546
        %1548 = vmatprep.mubr.f32.mxu0 %v1205
        %1549 = vmatmul.mubr.f32.gmra.mrb[0].mxu0 %v1204
        %v1550 = vpop.f32.mrb[0].mxu0
        %v1551 = vadd.f32 %v1321, %v1550
        %v1552 = vpop.f32.mrb[0].mxu0
        %v1553 = vadd.f32 %v1321, %v1552
        %1554 = vmatprep.mubr.f32.mxu0 %v1207
        %1555 = vmatmul.mubr.f32.gmra.mrb[0].mxu0 %v1206
        %v1556 = vpop.f32.mrb[0].mxu0
        %v1557 = vadd.f32 %v1326, %v1556
        %v1558 = vpop.f32.mrb[0].mxu0
        %v1559 = vadd.f32 %v1326, %v1558
        %1560 = vmatprep.mubr.f32.mxu0 %v1209
        %1561 = vmatmul.mubr.f32.gmra.mrb[0].mxu0 %v1208
        %v1562 = vpop.f32.mrb[0].mxu0
        %v1563 = vadd.f32 %v1331, %v1562
        %v1564 = vpop.f32.mrb[0].mxu0
        %v1565 = vadd.f32 %v1331, %v1564
        %1566 = vmatprep.mubr.f32.mxu0 %v1211
        %1567 = vmatmul.mubr.f32.gmra.mrb[0].mxu0 %v1210
        %v1568 = vpop.f32.mrb[0].mxu0
        %v1569 = vadd.f32 %v1336, %v1568
        %v1570 = vpop.f32.mrb[0].mxu0
        %v1571 = vadd.f32 %v1336, %v1570
        %1572 = vmatprep.mubr.f32.mxu0 %v1213
        %1573 = vmatmul.mubr.f32.gmra.mrb[0].mxu0 %v1212
        %v1574 = vpop.f32.mrb[0].mxu0
        %v1575 = vadd.f32 %v1341, %v1574
        %v1576 = vpop.f32.mrb[0].mxu0
        %v1577 = vadd.f32 %v1341, %v1576
        %1578 = vmatprep.mubr.f32.mxu0 %v1215
        %1579 = vmatmul.mubr.f32.gmra.mrb[0].mxu0 %v1214
        %v1580 = vpop.f32.mrb[0].mxu0
        %v1581 = vadd.f32 %v1346, %v1580
        %v1582 = vpop.f32.mrb[0].mxu0
        %v1583 = vadd.f32 %v1346, %v1582
        %1584 = vmatprep.mubr.f32.mxu0 %v1217
        %1585 = vmatmul.mubr.f32.gmra.mrb[0].mxu0 %v1216
        %v1586 = vpop.f32.mrb[0].mxu0
        %v1587 = vadd.f32 %v1351, %v1586
        %v1588 = vpop.f32.mrb[0].mxu0
        %v1589 = vadd.f32 %v1351, %v1588
        %1590 = vmatprep.mubr.f32.mxu0 %v1219
        %1591 = vmatmul.mubr.f32.gmra.mrb[0].mxu0 %v1218
        %v1592 = vpop.f32.mrb[0].mxu0
        %v1593 = vadd.f32 %v1356, %v1592
        %v1594 = vpop.f32.mrb[0].mxu0
        %v1595 = vadd.f32 %v1356, %v1594
        %1596 = vmatprep.mubr.f32.mxu0 %v1221
        %1597 = vmatmul.mubr.f32.gmra.mrb[0].mxu0 %v1220
        %v1598 = vpop.f32.mrb[0].mxu0
        %v1599 = vadd.f32 %v1361, %v1598
        %v1600 = vpop.f32.mrb[0].mxu0
        %v1601 = vadd.f32 %v1361, %v1600
        %1602 = vmatprep.mubr.f32.mxu0 %v1223
        %1603 = vmatmul.mubr.f32.gmra.mrb[0].mxu0 %v1222
        %v1604 = vpop.f32.mrb[0].mxu0
        %v1605 = vadd.f32 %v1366, %v1604
        %v1606 = vpop.f32.mrb[0].mxu0
        %v1607 = vadd.f32 %v1366, %v1606
        %1608 = vmatprep.mubr.f32.mxu0 %v1225
        %1609 = vmatmul.mubr.f32.gmra.mrb[0].mxu0 %v1224
        %v1610 = vpop.f32.mrb[0].mxu0
        %v1611 = vadd.f32 %v1371, %v1610
        %v1612 = vpop.f32.mrb[0].mxu0
        %v1613 = vadd.f32 %v1371, %v1612
        %1614 = vmatprep.mubr.f32.mxu0 %v1227
        %1615 = vmatmul.mubr.f32.gmra.mrb[0].mxu0 %v1226
        %v1616 = vpop.f32.mrb[0].mxu0
        %v1617 = vadd.f32 %v1376, %v1616
        %v1618 = vpop.f32.mrb[0].mxu0
        %v1619 = vadd.f32 %v1376, %v1618
        %1620 = vmatprep.mubr.f32.mxu0 %v1229
        %1621 = vmatmul.mubr.f32.gmra.mrb[0].mxu0 %v1228
        %v1622 = vpop.f32.mrb[0].mxu0
        %v1623 = vadd.f32 %v1381, %v1622
        %v1624 = vpop.f32.mrb[0].mxu0
        %v1625 = vadd.f32 %v1381, %v1624
        %1626 = vmatprep.mubr.f32.mxu0 %v1231
        %1627 = vmatmul.mubr.f32.gmra.mrb[0].mxu0 %v1230
        %v1628 = vpop.f32.mrb[0].mxu0
        %v1629 = vadd.f32 %v1386, %v1628
        %v1630 = vpop.f32.mrb[0].mxu0
        %v1631 = vadd.f32 %v1386, %v1630
        %1632 = vmatprep.mubr.f32.mxu0 %v1233
        %1633 = vmatmul.mubr.f32.gmra.mrb[0].mxu0 %v1232
        %v1634 = vpop.f32.mrb[0].mxu0
        %v1635 = vadd.f32 %v1391, %v1634
        %v1636 = vpop.f32.mrb[0].mxu0
        %v1637 = vadd.f32 %v1391, %v1636
        %1638 = vmatprep.mubr.f32.mxu0 %v1235
        %1639 = vmatmul.mubr.f32.gmra.mrb[0].mxu0 %v1234
        %v1640 = vpop.f32.mrb[0].mxu0
        %v1641 = vadd.f32 %v1396, %v1640
        %v1642 = vpop.f32.mrb[0].mxu0
        %v1643 = vadd.f32 %v1396, %v1642
        %1644 = vmatprep.mubr.f32.mxu0 %v1237
        %1645 = vmatmul.mubr.f32.gmra.mrb[0].mxu0 %v1236
        %v1646 = vpop.f32.mrb[0].mxu0
        %v1647 = vadd.f32 %v1401, %v1646
        %v1648 = vpop.f32.mrb[0].mxu0
        %v1649 = vadd.f32 %v1401, %v1648
        %1650 = vmatprep.mubr.f32.mxu0 %v1239
        %1651 = vmatmul.mubr.f32.gmra.mrb[0].mxu0 %v1238
        %v1652 = vpop.f32.mrb[0].mxu0
        %v1653 = vadd.f32 %v1406, %v1652
        %v1654 = vpop.f32.mrb[0].mxu0
        %v1655 = vadd.f32 %v1406, %v1654
        %1656 = vmatprep.mubr.f32.mxu0 %v1241
        %1657 = vmatmul.mubr.f32.gmra.mrb[0].mxu0 %v1240
        %v1658 = vpop.f32.mrb[0].mxu0
        %v1659 = vadd.f32 %v1411, %v1658
        %v1660 = vpop.f32.mrb[0].mxu0
        %v1661 = vadd.f32 %v1411, %v1660
        %1662 = vmatprep.mubr.f32.mxu0 %v1243
        %1663 = vmatmul.mubr.f32.gmra.mrb[0].mxu0 %v1242
        %v1664 = vpop.f32.mrb[0].mxu0
        %v1665 = vadd.f32 %v1416, %v1664
        %v1666 = vpop.f32.mrb[0].mxu0
        %v1667 = vadd.f32 %v1416, %v1666
        %1668 = vmatprep.mubr.f32.mxu0 %v1245
        %1669 = vmatmul.mubr.f32.gmra.mrb[0].mxu0 %v1244
        %v1670 = vpop.f32.mrb[0].mxu0
        %v1671 = vadd.f32 %v1421, %v1670
        %v1672 = vpop.f32.mrb[0].mxu0
        %v1673 = vadd.f32 %v1421, %v1672
        %1674 = vmatprep.mubr.f32.mxu0 %v1247
        %1675 = vmatmul.mubr.f32.gmra.mrb[0].mxu0 %v1246
        %v1676 = vpop.f32.mrb[0].mxu0
        %v1677 = vadd.f32 %v1426, %v1676
        %v1678 = vpop.f32.mrb[0].mxu0
        %v1679 = vadd.f32 %v1426, %v1678
        %1680 = vmatprep.mubr.f32.mxu0 %v1249
        %1681 = vmatmul.mubr.f32.gmra.mrb[0].mxu0 %v1248
        %v1682 = vpop.f32.mrb[0].mxu0
        %v1683 = vadd.f32 %v1431, %v1682
        %v1684 = vpop.f32.mrb[0].mxu0
        %v1685 = vadd.f32 %v1431, %v1684
        %1686 = vmatprep.mubr.f32.mxu0 %v1251
        %1687 = vmatmul.mubr.f32.gmra.mrb[0].mxu0 %v1250
        %v1688 = vpop.f32.mrb[0].mxu0
        %v1689 = vadd.f32 %v1436, %v1688
        %v1690 = vpop.f32.mrb[0].mxu0
        %v1691 = vadd.f32 %v1436, %v1690
        %1692 = vmatprep.mubr.f32.mxu0 %v1253
        %1693 = vmatmul.mubr.f32.gmra.mrb[0].mxu0 %v1252
        %v1694 = vpop.f32.mrb[0].mxu0
        %v1695 = vadd.f32 %v1441, %v1694
        %v1696 = vpop.f32.mrb[0].mxu0
        %v1697 = vadd.f32 %v1441, %v1696
        %1698 = vmatprep.mubr.f32.mxu0 %v1255
        %1699 = vmatmul.mubr.f32.gmra.mrb[0].mxu0 %v1254
        %v1700 = vpop.f32.mrb[0].mxu0
        %v1701 = vadd.f32 %v1446, %v1700
        %v1702 = vpop.f32.mrb[0].mxu0
        %v1703 = vadd.f32 %v1446, %v1702
        %1704 = vdwg.mxu0
        %1705 = vmatprep.subr.mxu0 %v1067
        %1706 = vmatpush1.msra.mxu0 %v1066
        %1707 = vmatprep.subr.mxu0 %v1071
        %1708 = vmatpush1.msra.mxu0 %v1070
        %1709 = vmatprep.subr.mxu0 %v1075
        %1710 = vmatpush1.msra.mxu0 %v1074
        %1711 = vmatprep.subr.mxu0 %v1079
        %1712 = vmatpush1.msra.mxu0 %v1078
        %1713 = vmatprep.subr.mxu0 %v1083
        %1714 = vmatpush1.msra.mxu0 %v1082
        %1715 = vmatprep.subr.mxu0 %v1087
        %1716 = vmatpush1.msra.mxu0 %v1086
        %1717 = vmatprep.subr.mxu0 %v1091
        %1718 = vmatpush1.msra.mxu0 %v1090
        %1719 = vmatprep.subr.mxu0 %v1095
        %1720 = vmatpush1.msra.mxu0 %v1094
        %1721 = vmatprep.subr.mxu0 %v1099
        %1722 = vmatpush1.msra.mxu0 %v1098
        %1723 = vmatprep.subr.mxu0 %v1103
        %1724 = vmatpush1.msra.mxu0 %v1102
        %1725 = vmatprep.subr.mxu0 %v1107
        %1726 = vmatpush1.msra.mxu0 %v1106
        %1727 = vmatprep.subr.mxu0 %v1111
        %1728 = vmatpush1.msra.mxu0 %v1110
        %1729 = vmatprep.subr.mxu0 %v1115
        %1730 = vmatpush1.msra.mxu0 %v1114
        %1731 = vmatprep.subr.mxu0 %v1119
        %1732 = vmatpush1.msra.mxu0 %v1118
        %1733 = vmatprep.subr.mxu0 %v1123
        %1734 = vmatpush1.msra.mxu0 %v1122
        %1735 = vmatprep.subr.mxu0 %v1127
        %1736 = vmatpush1.msra.mxu0 %v1126
        %1737 = vmatprep.subr.mxu0 %v1131
        %1738 = vmatpush1.msra.mxu0 %v1130
        %1739 = vmatprep.subr.mxu0 %v1135
        %1740 = vmatpush1.msra.mxu0 %v1134
        %1741 = vmatprep.subr.mxu0 %v1139
        %1742 = vmatpush1.msra.mxu0 %v1138
        %1743 = vmatprep.subr.mxu0 %v1143
        %1744 = vmatpush1.msra.mxu0 %v1142
        %1745 = vmatprep.subr.mxu0 %v1147
        %1746 = vmatpush1.msra.mxu0 %v1146
        %1747 = vmatprep.subr.mxu0 %v1151
        %1748 = vmatpush1.msra.mxu0 %v1150
        %1749 = vmatprep.subr.mxu0 %v1155
        %1750 = vmatpush1.msra.mxu0 %v1154
        %1751 = vmatprep.subr.mxu0 %v1159
        %1752 = vmatpush1.msra.mxu0 %v1158
        %1753 = vmatprep.subr.mxu0 %v1163
        %1754 = vmatpush1.msra.mxu0 %v1162
        %1755 = vmatprep.subr.mxu0 %v1167
        %1756 = vmatpush1.msra.mxu0 %v1166
        %1757 = vmatprep.subr.mxu0 %v1171
        %1758 = vmatpush1.msra.mxu0 %v1170
        %1759 = vmatprep.subr.mxu0 %v1175
        %1760 = vmatpush1.msra.mxu0 %v1174
        %1761 = vmatprep.subr.mxu0 %v1179
        %1762 = vmatpush1.msra.mxu0 %v1178
        %1763 = vmatprep.subr.mxu0 %v1183
        %1764 = vmatpush1.msra.mxu0 %v1182
        %1765 = vmatprep.subr.mxu0 %v1187
        %1766 = vmatpush1.msra.mxu0 %v1186
        %1767 = vmatprep.subr.mxu0 %v1191
        %1768 = vmatpush1.msra.mxu0 %v1190
        %1769 = vmatprep.mubr.f32.mxu0 %v1193
        %1770 = vmatmul.mubr.f32.gmra.mrb[0].mxu0 %v1192
        %v1771 = vpop.f32.mrb[0].mxu0
        %v1772 = vadd.f32 %v1291, %v1771
        %v1773 = vpop.f32.mrb[0].mxu0
        %v1774 = vadd.f32 %v1291, %v1773
        %1775 = vmatprep.mubr.f32.mxu0 %v1195
        %1776 = vmatmul.mubr.f32.gmra.mrb[0].mxu0 %v1194
        %v1777 = vpop.f32.mrb[0].mxu0
        %v1778 = vadd.f32 %v1296, %v1777
        %v1779 = vpop.f32.mrb[0].mxu0
        %v1780 = vadd.f32 %v1296, %v1779
        %1781 = vmatprep.mubr.f32.mxu0 %v1197
        %1782 = vmatmul.mubr.f32.gmra.mrb[0].mxu0 %v1196
        %v1783 = vpop.f32.mrb[0].mxu0
        %v1784 = vadd.f32 %v1301, %v1783
        %v1785 = vpop.f32.mrb[0].mxu0
        %v1786 = vadd.f32 %v1301, %v1785
        %1787 = vmatprep.mubr.f32.mxu0 %v1199
        %1788 = vmatmul.mubr.f32.gmra.mrb[0].mxu0 %v1198
        %v1789 = vpop.f32.mrb[0].mxu0
        %v1790 = vadd.f32 %v1306, %v1789
        %v1791 = vpop.f32.mrb[0].mxu0
        %v1792 = vadd.f32 %v1306, %v1791
        %1793 = vmatprep.mubr.f32.mxu0 %v1201
        %1794 = vmatmul.mubr.f32.gmra.mrb[0].mxu0 %v1200
        %v1795 = vpop.f32.mrb[0].mxu0
        %v1796 = vadd.f32 %v1311, %v1795
        %v1797 = vpop.f32.mrb[0].mxu0
        %v1798 = vadd.f32 %v1311, %v1797
        %1799 = vmatprep.mubr.f32.mxu0 %v1203
        %1800 = vmatmul.mubr.f32.gmra.mrb[0].mxu0 %v1202
        %v1801 = vpop.f32.mrb[0].mxu0
        %v1802 = vadd.f32 %v1316, %v1801
        %v1803 = vpop.f32.mrb[0].mxu0
        %v1804 = vadd.f32 %v1316, %v1803
        %1805 = vmatprep.mubr.f32.mxu0 %v1205
        %1806 = vmatmul.mubr.f32.gmra.mrb[0].mxu0 %v1204
        %v1807 = vpop.f32.mrb[0].mxu0
        %v1808 = vadd.f32 %v1321, %v1807
        %v1809 = vpop.f32.mrb[0].mxu0
        %v1810 = vadd.f32 %v1321, %v1809
        %1811 = vmatprep.mubr.f32.mxu0 %v1207
        %1812 = vmatmul.mubr.f32.gmra.mrb[0].mxu0 %v1206
        %v1813 = vpop.f32.mrb[0].mxu0
        %v1814 = vadd.f32 %v1326, %v1813
        %v1815 = vpop.f32.mrb[0].mxu0
        %v1816 = vadd.f32 %v1326, %v1815
        %1817 = vmatprep.mubr.f32.mxu0 %v1209
        %1818 = vmatmul.mubr.f32.gmra.mrb[0].mxu0 %v1208
        %v1819 = vpop.f32.mrb[0].mxu0
        %v1820 = vadd.f32 %v1331, %v1819
        %v1821 = vpop.f32.mrb[0].mxu0
        %v1822 = vadd.f32 %v1331, %v1821
        %1823 = vmatprep.mubr.f32.mxu0 %v1211
        %1824 = vmatmul.mubr.f32.gmra.mrb[0].mxu0 %v1210
        %v1825 = vpop.f32.mrb[0].mxu0
        %v1826 = vadd.f32 %v1336, %v1825
        %v1827 = vpop.f32.mrb[0].mxu0
        %v1828 = vadd.f32 %v1336, %v1827
        %1829 = vmatprep.mubr.f32.mxu0 %v1213
        %1830 = vmatmul.mubr.f32.gmra.mrb[0].mxu0 %v1212
        %v1831 = vpop.f32.mrb[0].mxu0
        %v1832 = vadd.f32 %v1341, %v1831
        %v1833 = vpop.f32.mrb[0].mxu0
        %v1834 = vadd.f32 %v1341, %v1833
        %1835 = vmatprep.mubr.f32.mxu0 %v1215
        %1836 = vmatmul.mubr.f32.gmra.mrb[0].mxu0 %v1214
        %v1837 = vpop.f32.mrb[0].mxu0
        %v1838 = vadd.f32 %v1346, %v1837
        %v1839 = vpop.f32.mrb[0].mxu0
        %v1840 = vadd.f32 %v1346, %v1839
        %1841 = vmatprep.mubr.f32.mxu0 %v1217
        %1842 = vmatmul.mubr.f32.gmra.mrb[0].mxu0 %v1216
        %v1843 = vpop.f32.mrb[0].mxu0
        %v1844 = vadd.f32 %v1351, %v1843
        %v1845 = vpop.f32.mrb[0].mxu0
        %v1846 = vadd.f32 %v1351, %v1845
        %1847 = vmatprep.mubr.f32.mxu0 %v1219
        %1848 = vmatmul.mubr.f32.gmra.mrb[0].mxu0 %v1218
        %v1849 = vpop.f32.mrb[0].mxu0
        %v1850 = vadd.f32 %v1356, %v1849
        %v1851 = vpop.f32.mrb[0].mxu0
        %v1852 = vadd.f32 %v1356, %v1851
        %1853 = vmatprep.mubr.f32.mxu0 %v1221
        %1854 = vmatmul.mubr.f32.gmra.mrb[0].mxu0 %v1220
        %v1855 = vpop.f32.mrb[0].mxu0
        %v1856 = vadd.f32 %v1361, %v1855
        %v1857 = vpop.f32.mrb[0].mxu0
        %v1858 = vadd.f32 %v1361, %v1857
        %1859 = vmatprep.mubr.f32.mxu0 %v1223
        %1860 = vmatmul.mubr.f32.gmra.mrb[0].mxu0 %v1222
        %v1861 = vpop.f32.mrb[0].mxu0
        %v1862 = vadd.f32 %v1366, %v1861
        %v1863 = vpop.f32.mrb[0].mxu0
        %v1864 = vadd.f32 %v1366, %v1863
        %1865 = vmatprep.mubr.f32.mxu0 %v1225
        %1866 = vmatmul.mubr.f32.gmra.mrb[0].mxu0 %v1224
        %v1867 = vpop.f32.mrb[0].mxu0
        %v1868 = vadd.f32 %v1371, %v1867
        %v1869 = vpop.f32.mrb[0].mxu0
        %v1870 = vadd.f32 %v1371, %v1869
        %1871 = vmatprep.mubr.f32.mxu0 %v1227
        %1872 = vmatmul.mubr.f32.gmra.mrb[0].mxu0 %v1226
        %v1873 = vpop.f32.mrb[0].mxu0
        %v1874 = vadd.f32 %v1376, %v1873
        %v1875 = vpop.f32.mrb[0].mxu0
        %v1876 = vadd.f32 %v1376, %v1875
        %1877 = vmatprep.mubr.f32.mxu0 %v1229
        %1878 = vmatmul.mubr.f32.gmra.mrb[0].mxu0 %v1228
        %v1879 = vpop.f32.mrb[0].mxu0
        %v1880 = vadd.f32 %v1381, %v1879
        %v1881 = vpop.f32.mrb[0].mxu0
        %v1882 = vadd.f32 %v1381, %v1881
        %1883 = vmatprep.mubr.f32.mxu0 %v1231
        %1884 = vmatmul.mubr.f32.gmra.mrb[0].mxu0 %v1230
        %v1885 = vpop.f32.mrb[0].mxu0
        %v1886 = vadd.f32 %v1386, %v1885
        %v1887 = vpop.f32.mrb[0].mxu0
        %v1888 = vadd.f32 %v1386, %v1887
        %1889 = vmatprep.mubr.f32.mxu0 %v1233
        %1890 = vmatmul.mubr.f32.gmra.mrb[0].mxu0 %v1232
        %v1891 = vpop.f32.mrb[0].mxu0
        %v1892 = vadd.f32 %v1391, %v1891
        %v1893 = vpop.f32.mrb[0].mxu0
        %v1894 = vadd.f32 %v1391, %v1893
        %1895 = vmatprep.mubr.f32.mxu0 %v1235
        %1896 = vmatmul.mubr.f32.gmra.mrb[0].mxu0 %v1234
        %v1897 = vpop.f32.mrb[0].mxu0
        %v1898 = vadd.f32 %v1396, %v1897
        %v1899 = vpop.f32.mrb[0].mxu0
        %v1900 = vadd.f32 %v1396, %v1899
        %1901 = vmatprep.mubr.f32.mxu0 %v1237
        %1902 = vmatmul.mubr.f32.gmra.mrb[0].mxu0 %v1236
        %v1903 = vpop.f32.mrb[0].mxu0
        %v1904 = vadd.f32 %v1401, %v1903
        %v1905 = vpop.f32.mrb[0].mxu0
        %v1906 = vadd.f32 %v1401, %v1905
        %1907 = vmatprep.mubr.f32.mxu0 %v1239
        %1908 = vmatmul.mubr.f32.gmra.mrb[0].mxu0 %v1238
        %v1909 = vpop.f32.mrb[0].mxu0
        %v1910 = vadd.f32 %v1406, %v1909
        %v1911 = vpop.f32.mrb[0].mxu0
        %v1912 = vadd.f32 %v1406, %v1911
        %1913 = vmatprep.mubr.f32.mxu0 %v1241
        %1914 = vmatmul.mubr.f32.gmra.mrb[0].mxu0 %v1240
        %v1915 = vpop.f32.mrb[0].mxu0
        %v1916 = vadd.f32 %v1411, %v1915
        %v1917 = vpop.f32.mrb[0].mxu0
        %v1918 = vadd.f32 %v1411, %v1917
        %1919 = vmatprep.mubr.f32.mxu0 %v1243
        %1920 = vmatmul.mubr.f32.gmra.mrb[0].mxu0 %v1242
        %v1921 = vpop.f32.mrb[0].mxu0
        %v1922 = vadd.f32 %v1416, %v1921
        %v1923 = vpop.f32.mrb[0].mxu0
        %v1924 = vadd.f32 %v1416, %v1923
        %1925 = vmatprep.mubr.f32.mxu0 %v1245
        %1926 = vmatmul.mubr.f32.gmra.mrb[0].mxu0 %v1244
        %v1927 = vpop.f32.mrb[0].mxu0
        %v1928 = vadd.f32 %v1421, %v1927
        %v1929 = vpop.f32.mrb[0].mxu0
        %v1930 = vadd.f32 %v1421, %v1929
        %1931 = vmatprep.mubr.f32.mxu0 %v1247
        %1932 = vmatmul.mubr.f32.gmra.mrb[0].mxu0 %v1246
        %v1933 = vpop.f32.mrb[0].mxu0
        %v1934 = vadd.f32 %v1426, %v1933
        %v1935 = vpop.f32.mrb[0].mxu0
        %v1936 = vadd.f32 %v1426, %v1935
        %1937 = vmatprep.mubr.f32.mxu0 %v1249
        %1938 = vmatmul.mubr.f32.gmra.mrb[0].mxu0 %v1248
        %v1939 = vpop.f32.mrb[0].mxu0
        %v1940 = vadd.f32 %v1431, %v1939
        %v1941 = vpop.f32.mrb[0].mxu0
        %v1942 = vadd.f32 %v1431, %v1941
        %1943 = vmatprep.mubr.f32.mxu0 %v1251
        %1944 = vmatmul.mubr.f32.gmra.mrb[0].mxu0 %v1250
        %v1945 = vpop.f32.mrb[0].mxu0
        %v1946 = vadd.f32 %v1436, %v1945
        %v1947 = vpop.f32.mrb[0].mxu0
        %v1948 = vadd.f32 %v1436, %v1947
        %1949 = vmatprep.mubr.f32.mxu0 %v1253
        %1950 = vmatmul.mubr.f32.gmra.mrb[0].mxu0 %v1252
        %v1951 = vpop.f32.mrb[0].mxu0
        %v1952 = vadd.f32 %v1441, %v1951
        %v1953 = vpop.f32.mrb[0].mxu0
        %v1954 = vadd.f32 %v1441, %v1953
        %1955 = vmatprep.mubr.f32.mxu0 %v1255
        %1956 = vmatmul.mubr.f32.gmra.mrb[0].mxu0 %v1254
        %v1957 = vpop.f32.mrb[0].mxu0
        %v1958 = vadd.f32 %v1446, %v1957
        %v1959 = vpop.f32.mrb[0].mxu0
        %v1960 = vadd.f32 %v1446, %v1959
        %1961 = vdwg.mxu0
        %v1962 = vmax.f32 %v1515, 0.0
        %v1963 = vmax.f32 %v1517, 0.0
        %v1964 = vmax.f32 %v1772, 0.0
        %v1965 = vmax.f32 %v1774, 0.0
        %v1966 = vmax.f32 %v1521, 0.0
        %v1967 = vmax.f32 %v1523, 0.0
        %v1968 = vmax.f32 %v1778, 0.0
        %v1969 = vmax.f32 %v1780, 0.0
        %v1970 = vmax.f32 %v1527, 0.0
        %v1971 = vmax.f32 %v1529, 0.0
        %v1972 = vmax.f32 %v1784, 0.0
        %v1973 = vmax.f32 %v1786, 0.0
        %v1974 = vmax.f32 %v1533, 0.0
        %v1975 = vmax.f32 %v1535, 0.0
        %v1976 = vmax.f32 %v1790, 0.0
        %v1977 = vmax.f32 %v1792, 0.0
        %v1978 = vmax.f32 %v1539, 0.0
        %v1979 = vmax.f32 %v1541, 0.0
        %v1980 = vmax.f32 %v1796, 0.0
        %v1981 = vmax.f32 %v1798, 0.0
        %v1982 = vmax.f32 %v1545, 0.0
        %v1983 = vmax.f32 %v1547, 0.0
        %v1984 = vmax.f32 %v1802, 0.0
        %v1985 = vmax.f32 %v1804, 0.0
        %v1986 = vmax.f32 %v1551, 0.0
        %v1987 = vmax.f32 %v1553, 0.0
        %v1988 = vmax.f32 %v1808, 0.0
        %v1989 = vmax.f32 %v1810, 0.0
        %v1990 = vmax.f32 %v1557, 0.0
        %v1991 = vmax.f32 %v1559, 0.0
        %v1992 = vmax.f32 %v1814, 0.0
        %v1993 = vmax.f32 %v1816, 0.0
        %v1994 = vmax.f32 %v1563, 0.0
        %v1995 = vmax.f32 %v1565, 0.0
        %v1996 = vmax.f32 %v1820, 0.0
        %v1997 = vmax.f32 %v1822, 0.0
        %v1998 = vmax.f32 %v1569, 0.0
        %v1999 = vmax.f32 %v1571, 0.0
        %v2000 = vmax.f32 %v1826, 0.0
        %v2001 = vmax.f32 %v1828, 0.0
        %v2002 = vmax.f32 %v1575, 0.0
        %v2003 = vmax.f32 %v1577, 0.0
        %v2004 = vmax.f32 %v1832, 0.0
        %v2005 = vmax.f32 %v1834, 0.0
        %v2006 = vmax.f32 %v1581, 0.0
        %v2007 = vmax.f32 %v1583, 0.0
        %v2008 = vmax.f32 %v1838, 0.0
        %v2009 = vmax.f32 %v1840, 0.0
        %v2010 = vmax.f32 %v1587, 0.0
        %v2011 = vmax.f32 %v1589, 0.0
        %v2012 = vmax.f32 %v1844, 0.0
        %v2013 = vmax.f32 %v1846, 0.0
        %v2014 = vmax.f32 %v1593, 0.0
        %v2015 = vmax.f32 %v1595, 0.0
        %v2016 = vmax.f32 %v1850, 0.0
        %v2017 = vmax.f32 %v1852, 0.0
        %v2018 = vmax.f32 %v1599, 0.0
        %v2019 = vmax.f32 %v1601, 0.0
        %v2020 = vmax.f32 %v1856, 0.0
        %v2021 = vmax.f32 %v1858, 0.0
        %v2022 = vmax.f32 %v1605, 0.0
        %v2023 = vmax.f32 %v1607, 0.0
        %v2024 = vmax.f32 %v1862, 0.0
        %v2025 = vmax.f32 %v1864, 0.0
        %v2026 = vmax.f32 %v1611, 0.0
        %v2027 = vmax.f32 %v1613, 0.0
        %v2028 = vmax.f32 %v1868, 0.0
        %v2029 = vmax.f32 %v1870, 0.0
        %v2030 = vmax.f32 %v1617, 0.0
        %v2031 = vmax.f32 %v1619, 0.0
        %v2032 = vmax.f32 %v1874, 0.0
        %v2033 = vmax.f32 %v1876, 0.0
        %v2034 = vmax.f32 %v1623, 0.0
        %v2035 = vmax.f32 %v1625, 0.0
        %v2036 = vmax.f32 %v1880, 0.0
        %v2037 = vmax.f32 %v1882, 0.0
        %v2038 = vmax.f32 %v1629, 0.0
        %v2039 = vmax.f32 %v1631, 0.0
        %v2040 = vmax.f32 %v1886, 0.0
        %v2041 = vmax.f32 %v1888, 0.0
        %v2042 = vmax.f32 %v1635, 0.0
        %v2043 = vmax.f32 %v1637, 0.0
        %v2044 = vmax.f32 %v1892, 0.0
        %v2045 = vmax.f32 %v1894, 0.0
        %v2046 = vmax.f32 %v1641, 0.0
        %v2047 = vmax.f32 %v1643, 0.0
        %v2048 = vmax.f32 %v1898, 0.0
        %v2049 = vmax.f32 %v1900, 0.0
        %v2050 = vmax.f32 %v1647, 0.0
        %v2051 = vmax.f32 %v1649, 0.0
        %v2052 = vmax.f32 %v1904, 0.0
        %v2053 = vmax.f32 %v1906, 0.0
        %v2054 = vmax.f32 %v1653, 0.0
        %v2055 = vmax.f32 %v1655, 0.0
        %v2056 = vmax.f32 %v1910, 0.0
        %v2057 = vmax.f32 %v1912, 0.0
        %v2058 = vmax.f32 %v1659, 0.0
        %v2059 = vmax.f32 %v1661, 0.0
        %v2060 = vmax.f32 %v1916, 0.0
        %v2061 = vmax.f32 %v1918, 0.0
        %v2062 = vmax.f32 %v1665, 0.0
        %v2063 = vmax.f32 %v1667, 0.0
        %v2064 = vmax.f32 %v1922, 0.0
        %v2065 = vmax.f32 %v1924, 0.0
        %v2066 = vmax.f32 %v1671, 0.0
        %v2067 = vmax.f32 %v1673, 0.0
        %v2068 = vmax.f32 %v1928, 0.0
        %v2069 = vmax.f32 %v1930, 0.0
        %v2070 = vmax.f32 %v1677, 0.0
        %v2071 = vmax.f32 %v1679, 0.0
        %v2072 = vmax.f32 %v1934, 0.0
        %v2073 = vmax.f32 %v1936, 0.0
        %v2074 = vmax.f32 %v1683, 0.0
        %v2075 = vmax.f32 %v1685, 0.0
        %v2076 = vmax.f32 %v1940, 0.0
        %v2077 = vmax.f32 %v1942, 0.0
        %v2078 = vmax.f32 %v1689, 0.0
        %v2079 = vmax.f32 %v1691, 0.0
        %v2080 = vmax.f32 %v1946, 0.0
        %v2081 = vmax.f32 %v1948, 0.0
        %v2082 = vmax.f32 %v1695, 0.0
        %v2083 = vmax.f32 %v1697, 0.0
        %v2084 = vmax.f32 %v1952, 0.0
        %v2085 = vmax.f32 %v1954, 0.0
        %v2086 = vmax.f32 %v1701, 0.0
        %v2087 = vmax.f32 %v1703, 0.0
        %v2088 = vmax.f32 %v1958, 0.0
        %v2089 = vmax.f32 %v1960, 0.0
        %v2090 = vld [vmem:[%s5] sm:$0xff]
        %v2091 = vld [vmem:[%s5 + $0x8] sm:$0xff]
        %v2092 = vld [vmem:[%s5 + $0x10] sm:$0xff]
        %v2093 = vld [vmem:[%s5 + $0x18] sm:$0xff]
        %v2094 = vld [vmem:[%s5 + $0x20] sm:$0xff]
        %v2095 = vld [vmem:[%s5 + $0x28] sm:$0xff]
        %v2096 = vld [vmem:[%s5 + $0x30] sm:$0xff]
        %v2097 = vld [vmem:[%s5 + $0x38] sm:$0xff]
        %v2098 = vld [vmem:[%s5 + $0x40] sm:$0xff]
        %v2099 = vld [vmem:[%s5 + $0x48] sm:$0xff]
        %v2100 = vld [vmem:[%s5 + $0x50] sm:$0xff]
        %v2101 = vld [vmem:[%s5 + $0x58] sm:$0xff]
        %v2102 = vld [vmem:[%s5 + $0x60] sm:$0xff]
        %v2103 = vld [vmem:[%s5 + $0x68] sm:$0xff]
        %v2104 = vld [vmem:[%s5 + $0x70] sm:$0xff]
        %v2105 = vld [vmem:[%s5 + $0x78] sm:$0xff]
        %v2106 = vld [vmem:[%s5 + $0x80] sm:$0xff]
        %v2107 = vld [vmem:[%s5 + $0x88] sm:$0xff]
        %v2108 = vld [vmem:[%s5 + $0x90] sm:$0xff]
        %v2109 = vld [vmem:[%s5 + $0x98] sm:$0xff]
        %v2110 = vld [vmem:[%s5 + $0xa0] sm:$0xff]
        %v2111 = vld [vmem:[%s5 + $0xa8] sm:$0xff]
        %v2112 = vld [vmem:[%s5 + $0xb0] sm:$0xff]
        %v2113 = vld [vmem:[%s5 + $0xb8] sm:$0xff]
        %v2114 = vld [vmem:[%s5 + $0xc0] sm:$0xff]
        %v2115 = vld [vmem:[%s5 + $0xc8] sm:$0xff]
        %v2116 = vld [vmem:[%s5 + $0xd0] sm:$0xff]
        %v2117 = vld [vmem:[%s5 + $0xd8] sm:$0xff]
        %v2118 = vld [vmem:[%s5 + $0xe0] sm:$0xff]
        %v2119 = vld [vmem:[%s5 + $0xe8] sm:$0xff]
        %v2120 = vld [vmem:[%s5 + $0xf0] sm:$0xff]
        %v2121 = vld [vmem:[%s5 + $0xf8] sm:$0xff]
        %v2122 = vld [vmem:[%s5 + $0x100] sm:$0xff]
        %v2123 = vld [vmem:[%s5 + $0x108] sm:$0xff]
        %v2124 = vld [vmem:[%s5 + $0x110] sm:$0xff]
        %v2125 = vld [vmem:[%s5 + $0x118] sm:$0xff]
        %v2126 = vld [vmem:[%s5 + $0x120] sm:$0xff]
        %v2127 = vld [vmem:[%s5 + $0x128] sm:$0xff]
        %v2128 = vld [vmem:[%s5 + $0x130] sm:$0xff]
        %v2129 = vld [vmem:[%s5 + $0x138] sm:$0xff]
        %v2130 = vld [vmem:[%s5 + $0x140] sm:$0xff]
        %v2131 = vld [vmem:[%s5 + $0x148] sm:$0xff]
        %v2132 = vld [vmem:[%s5 + $0x150] sm:$0xff]
        %v2133 = vld [vmem:[%s5 + $0x158] sm:$0xff]
        %v2134 = vld [vmem:[%s5 + $0x160] sm:$0xff]
        %v2135 = vld [vmem:[%s5 + $0x168] sm:$0xff]
        %v2136 = vld [vmem:[%s5 + $0x170] sm:$0xff]
        %v2137 = vld [vmem:[%s5 + $0x178] sm:$0xff]
        %v2138 = vld [vmem:[%s5 + $0x180] sm:$0xff]
        %v2139 = vld [vmem:[%s5 + $0x188] sm:$0xff]
        %v2140 = vld [vmem:[%s5 + $0x190] sm:$0xff]
        %v2141 = vld [vmem:[%s5 + $0x198] sm:$0xff]
        %v2142 = vld [vmem:[%s5 + $0x1a0] sm:$0xff]
        %v2143 = vld [vmem:[%s5 + $0x1a8] sm:$0xff]
        %v2144 = vld [vmem:[%s5 + $0x1b0] sm:$0xff]
        %v2145 = vld [vmem:[%s5 + $0x1b8] sm:$0xff]
        %v2146 = vld [vmem:[%s5 + $0x1c0] sm:$0xff]
        %v2147 = vld [vmem:[%s5 + $0x1c8] sm:$0xff]
        %v2148 = vld [vmem:[%s5 + $0x1d0] sm:$0xff]
        %v2149 = vld [vmem:[%s5 + $0x1d8] sm:$0xff]
        %v2150 = vld [vmem:[%s5 + $0x1e0] sm:$0xff]
        %v2151 = vld [vmem:[%s5 + $0x1e8] sm:$0xff]
        %v2152 = vld [vmem:[%s5 + $0x1f0] sm:$0xff]
        %v2153 = vld [vmem:[%s5 + $0x1f8] sm:$0xff]
        %v2154 = vld [vmem:[%s6] sm:$0xff]
        %v2155 = vld [vmem:[%s6 + $0x8] sm:$0xff]
        %v2156 = vld [vmem:[%s6 + $0x10] sm:$0xff]
        %v2157 = vld [vmem:[%s6 + $0x18] sm:$0xff]
        %v2158 = vld [vmem:[%s6 + $0x20] sm:$0xff]
        %v2159 = vld [vmem:[%s6 + $0x28] sm:$0xff]
        %v2160 = vld [vmem:[%s6 + $0x30] sm:$0xff]
        %v2161 = vld [vmem:[%s6 + $0x38] sm:$0xff]
        %v2162 = vld [vmem:[%s6 + $0x40] sm:$0xff]
        %v2163 = vld [vmem:[%s6 + $0x48] sm:$0xff]
        %v2164 = vld [vmem:[%s6 + $0x50] sm:$0xff]
        %v2165 = vld [vmem:[%s6 + $0x58] sm:$0xff]
        %v2166 = vld [vmem:[%s6 + $0x60] sm:$0xff]
        %v2167 = vld [vmem:[%s6 + $0x68] sm:$0xff]
        %v2168 = vld [vmem:[%s6 + $0x70] sm:$0xff]
        %v2169 = vld [vmem:[%s6 + $0x78] sm:$0xff]
        %v2170 = vld [vmem:[%s6 + $0x80] sm:$0xff]
        %v2171 = vld [vmem:[%s6 + $0x88] sm:$0xff]
        %v2172 = vld [vmem:[%s6 + $0x90] sm:$0xff]
        %v2173 = vld [vmem:[%s6 + $0x98] sm:$0xff]
        %v2174 = vld [vmem:[%s6 + $0xa0] sm:$0xff]
        %v2175 = vld [vmem:[%s6 + $0xa8] sm:$0xff]
        %v2176 = vld [vmem:[%s6 + $0xb0] sm:$0xff]
        %v2177 = vld [vmem:[%s6 + $0xb8] sm:$0xff]
        %v2178 = vld [vmem:[%s6 + $0xc0] sm:$0xff]
        %v2179 = vld [vmem:[%s6 + $0xc8] sm:$0xff]
        %v2180 = vld [vmem:[%s6 + $0xd0] sm:$0xff]
        %v2181 = vld [vmem:[%s6 + $0xd8] sm:$0xff]
        %v2182 = vld [vmem:[%s6 + $0xe0] sm:$0xff]
        %v2183 = vld [vmem:[%s6 + $0xe8] sm:$0xff]
        %v2184 = vld [vmem:[%s6 + $0xf0] sm:$0xff]
        %v2185 = vld [vmem:[%s6 + $0xf8] sm:$0xff]
        %2187 = vset.pattern.permute.xlu0 0
        %2188 = vperm.xlu0 %2187, %v2154
        %v2189 = vpop.permute.xlu0 %2188
        %2192 = vset.pattern.permute.xlu0 0
        %2193 = vperm.xlu0 %2192, %v2155
        %v2194 = vpop.permute.xlu0 %2193
        %2197 = vset.pattern.permute.xlu0 0
        %2198 = vperm.xlu0 %2197, %v2156
        %v2199 = vpop.permute.xlu0 %2198
        %2202 = vset.pattern.permute.xlu0 0
        %2203 = vperm.xlu0 %2202, %v2157
        %v2204 = vpop.permute.xlu0 %2203
        %2207 = vset.pattern.permute.xlu0 0
        %2208 = vperm.xlu0 %2207, %v2158
        %v2209 = vpop.permute.xlu0 %2208
        %2212 = vset.pattern.permute.xlu0 0
        %2213 = vperm.xlu0 %2212, %v2159
        %v2214 = vpop.permute.xlu0 %2213
        %2217 = vset.pattern.permute.xlu0 0
        %2218 = vperm.xlu0 %2217, %v2160
        %v2219 = vpop.permute.xlu0 %2218
        %2222 = vset.pattern.permute.xlu0 0
        %2223 = vperm.xlu0 %2222, %v2161
        %v2224 = vpop.permute.xlu0 %2223
        %2227 = vset.pattern.permute.xlu0 0
        %2228 = vperm.xlu0 %2227, %v2162
        %v2229 = vpop.permute.xlu0 %2228
        %2232 = vset.pattern.permute.xlu0 0
        %2233 = vperm.xlu0 %2232, %v2163
        %v2234 = vpop.permute.xlu0 %2233
        %2237 = vset.pattern.permute.xlu0 0
        %2238 = vperm.xlu0 %2237, %v2164
        %v2239 = vpop.permute.xlu0 %2238
        %2242 = vset.pattern.permute.xlu0 0
        %2243 = vperm.xlu0 %2242, %v2165
        %v2244 = vpop.permute.xlu0 %2243
        %2247 = vset.pattern.permute.xlu0 0
        %2248 = vperm.xlu0 %2247, %v2166
        %v2249 = vpop.permute.xlu0 %2248
        %2252 = vset.pattern.permute.xlu0 0
        %2253 = vperm.xlu0 %2252, %v2167
        %v2254 = vpop.permute.xlu0 %2253
        %2257 = vset.pattern.permute.xlu0 0
        %2258 = vperm.xlu0 %2257, %v2168
        %v2259 = vpop.permute.xlu0 %2258
        %2262 = vset.pattern.permute.xlu0 0
        %2263 = vperm.xlu0 %2262, %v2169
        %v2264 = vpop.permute.xlu0 %2263
        %2267 = vset.pattern.permute.xlu0 0
        %2268 = vperm.xlu0 %2267, %v2170
        %v2269 = vpop.permute.xlu0 %2268
        %2272 = vset.pattern.permute.xlu0 0
        %2273 = vperm.xlu0 %2272, %v2171
        %v2274 = vpop.permute.xlu0 %2273
        %2277 = vset.pattern.permute.xlu0 0
        %2278 = vperm.xlu0 %2277, %v2172
        %v2279 = vpop.permute.xlu0 %2278
        %2282 = vset.pattern.permute.xlu0 0
        %2283 = vperm.xlu0 %2282, %v2173
        %v2284 = vpop.permute.xlu0 %2283
        %2287 = vset.pattern.permute.xlu0 0
        %2288 = vperm.xlu0 %2287, %v2174
        %v2289 = vpop.permute.xlu0 %2288
        %2292 = vset.pattern.permute.xlu0 0
        %2293 = vperm.xlu0 %2292, %v2175
        %v2294 = vpop.permute.xlu0 %2293
        %2297 = vset.pattern.permute.xlu0 0
        %2298 = vperm.xlu0 %2297, %v2176
        %v2299 = vpop.permute.xlu0 %2298
        %2302 = vset.pattern.permute.xlu0 0
        %2303 = vperm.xlu0 %2302, %v2177
        %v2304 = vpop.permute.xlu0 %2303
        %2307 = vset.pattern.permute.xlu0 0
        %2308 = vperm.xlu0 %2307, %v2178
        %v2309 = vpop.permute.xlu0 %2308
        %2312 = vset.pattern.permute.xlu0 0
        %2313 = vperm.xlu0 %2312, %v2179
        %v2314 = vpop.permute.xlu0 %2313
        %2317 = vset.pattern.permute.xlu0 0
        %2318 = vperm.xlu0 %2317, %v2180
        %v2319 = vpop.permute.xlu0 %2318
        %2322 = vset.pattern.permute.xlu0 0
        %2323 = vperm.xlu0 %2322, %v2181
        %v2324 = vpop.permute.xlu0 %2323
        %2327 = vset.pattern.permute.xlu0 0
        %2328 = vperm.xlu0 %2327, %v2182
        %v2329 = vpop.permute.xlu0 %2328
        %2332 = vset.pattern.permute.xlu0 0
        %2333 = vperm.xlu0 %2332, %v2183
        %v2334 = vpop.permute.xlu0 %2333
        %2337 = vset.pattern.permute.xlu0 0
        %2338 = vperm.xlu0 %2337, %v2184
        %v2339 = vpop.permute.xlu0 %2338
        %2342 = vset.pattern.permute.xlu0 0
        %2343 = vperm.xlu0 %2342, %v2185
        %v2344 = vpop.permute.xlu0 %2343
        %2346 = vmatprep.subr.mxu0 %v1963
        %2347 = vmatpush1.msra.mxu0 %v1962
        %2348 = vmatprep.subr.mxu0 %v1967
        %2349 = vmatpush1.msra.mxu0 %v1966
        %2350 = vmatprep.subr.mxu0 %v1971
        %2351 = vmatpush1.msra.mxu0 %v1970
        %2352 = vmatprep.subr.mxu0 %v1975
        %2353 = vmatpush1.msra.mxu0 %v1974
        %2354 = vmatprep.subr.mxu0 %v1979
        %2355 = vmatpush1.msra.mxu0 %v1978
        %2356 = vmatprep.subr.mxu0 %v1983
        %2357 = vmatpush1.msra.mxu0 %v1982
        %2358 = vmatprep.subr.mxu0 %v1987
        %2359 = vmatpush1.msra.mxu0 %v1986
        %2360 = vmatprep.subr.mxu0 %v1991
        %2361 = vmatpush1.msra.mxu0 %v1990
        %2362 = vmatprep.subr.mxu0 %v1995
        %2363 = vmatpush1.msra.mxu0 %v1994
        %2364 = vmatprep.subr.mxu0 %v1999
        %2365 = vmatpush1.msra.mxu0 %v1998
        %2366 = vmatprep.subr.mxu0 %v2003
        %2367 = vmatpush1.msra.mxu0 %v2002
        %2368 = vmatprep.subr.mxu0 %v2007
        %2369 = vmatpush1.msra.mxu0 %v2006
        %2370 = vmatprep.subr.mxu0 %v2011
        %2371 = vmatpush1.msra.mxu0 %v2010
        %2372 = vmatprep.subr.mxu0 %v2015
        %2373 = vmatpush1.msra.mxu0 %v2014
        %2374 = vmatprep.subr.mxu0 %v2019
        %2375 = vmatpush1.msra.mxu0 %v2018
        %2376 = vmatprep.subr.mxu0 %v2023
        %2377 = vmatpush1.msra.mxu0 %v2022
        %2378 = vmatprep.subr.mxu0 %v2027
        %2379 = vmatpush1.msra.mxu0 %v2026
        %2380 = vmatprep.subr.mxu0 %v2031
        %2381 = vmatpush1.msra.mxu0 %v2030
        %2382 = vmatprep.subr.mxu0 %v2035
        %2383 = vmatpush1.msra.mxu0 %v2034
        %2384 = vmatprep.subr.mxu0 %v2039
        %2385 = vmatpush1.msra.mxu0 %v2038
        %2386 = vmatprep.subr.mxu0 %v2043
        %2387 = vmatpush1.msra.mxu0 %v2042
        %2388 = vmatprep.subr.mxu0 %v2047
        %2389 = vmatpush1.msra.mxu0 %v2046
        %2390 = vmatprep.subr.mxu0 %v2051
        %2391 = vmatpush1.msra.mxu0 %v2050
        %2392 = vmatprep.subr.mxu0 %v2055
        %2393 = vmatpush1.msra.mxu0 %v2054
        %2394 = vmatprep.subr.mxu0 %v2059
        %2395 = vmatpush1.msra.mxu0 %v2058
        %2396 = vmatprep.subr.mxu0 %v2063
        %2397 = vmatpush1.msra.mxu0 %v2062
        %2398 = vmatprep.subr.mxu0 %v2067
        %2399 = vmatpush1.msra.mxu0 %v2066
        %2400 = vmatprep.subr.mxu0 %v2071
        %2401 = vmatpush1.msra.mxu0 %v2070
        %2402 = vmatprep.subr.mxu0 %v2075
        %2403 = vmatpush1.msra.mxu0 %v2074
        %2404 = vmatprep.subr.mxu0 %v2079
        %2405 = vmatpush1.msra.mxu0 %v2078
        %2406 = vmatprep.subr.mxu0 %v2083
        %2407 = vmatpush1.msra.mxu0 %v2082
        %2408 = vmatprep.subr.mxu0 %v2087
        %2409 = vmatpush1.msra.mxu0 %v2086
        %2410 = vmatprep.mubr.f32.mxu0 %v2091
        %2411 = vmatmul.mubr.f32.gmra.mrb[0].mxu0 %v2090
        %v2412 = vpop.f32.mrb[0].mxu0
        %v2413 = vadd.f32 %v2189, %v2412
        %v2414 = vpop.f32.mrb[0].mxu0
        %v2415 = vadd.f32 %v2189, %v2414
        %2416 = vmatprep.mubr.f32.mxu0 %v2093
        %2417 = vmatmul.mubr.f32.gmra.mrb[0].mxu0 %v2092
        %v2418 = vpop.f32.mrb[0].mxu0
        %v2419 = vadd.f32 %v2194, %v2418
        %v2420 = vpop.f32.mrb[0].mxu0
        %v2421 = vadd.f32 %v2194, %v2420
        %2422 = vmatprep.mubr.f32.mxu0 %v2095
        %2423 = vmatmul.mubr.f32.gmra.mrb[0].mxu0 %v2094
        %v2424 = vpop.f32.mrb[0].mxu0
        %v2425 = vadd.f32 %v2199, %v2424
        %v2426 = vpop.f32.mrb[0].mxu0
        %v2427 = vadd.f32 %v2199, %v2426
        %2428 = vmatprep.mubr.f32.mxu0 %v2097
        %2429 = vmatmul.mubr.f32.gmra.mrb[0].mxu0 %v2096
        %v2430 = vpop.f32.mrb[0].mxu0
        %v2431 = vadd.f32 %v2204, %v2430
        %v2432 = vpop.f32.mrb[0].mxu0
        %v2433 = vadd.f32 %v2204, %v2432
        %2434 = vmatprep.mubr.f32.mxu0 %v2099
        %2435 = vmatmul.mubr.f32.gmra.mrb[0].mxu0 %v2098
        %v2436 = vpop.f32.mrb[0].mxu0
        %v2437 = vadd.f32 %v2209, %v2436
        %v2438 = vpop.f32.mrb[0].mxu0
        %v2439 = vadd.f32 %v2209, %v2438
        %2440 = vmatprep.mubr.f32.mxu0 %v2101
        %2441 = vmatmul.mubr.f32.gmra.mrb[0].mxu0 %v2100
        %v2442 = vpop.f32.mrb[0].mxu0
        %v2443 = vadd.f32 %v2214, %v2442
        %v2444 = vpop.f32.mrb[0].mxu0
        %v2445 = vadd.f32 %v2214, %v2444
        %2446 = vmatprep.mubr.f32.mxu0 %v2103
        %2447 = vmatmul.mubr.f32.gmra.mrb[0].mxu0 %v2102
        %v2448 = vpop.f32.mrb[0].mxu0
        %v2449 = vadd.f32 %v2219, %v2448
        %v2450 = vpop.f32.mrb[0].mxu0
        %v2451 = vadd.f32 %v2219, %v2450
        %2452 = vmatprep.mubr.f32.mxu0 %v2105
        %2453 = vmatmul.mubr.f32.gmra.mrb[0].mxu0 %v2104
        %v2454 = vpop.f32.mrb[0].mxu0
        %v2455 = vadd.f32 %v2224, %v2454
        %v2456 = vpop.f32.mrb[0].mxu0
        %v2457 = vadd.f32 %v2224, %v2456
        %2458 = vmatprep.mubr.f32.mxu0 %v2107
        %2459 = vmatmul.mubr.f32.gmra.mrb[0].mxu0 %v2106
        %v2460 = vpop.f32.mrb[0].mxu0
        %v2461 = vadd.f32 %v2229, %v2460
        %v2462 = vpop.f32.mrb[0].mxu0
        %v2463 = vadd.f32 %v2229, %v2462
        %2464 = vmatprep.mubr.f32.mxu0 %v2109
        %2465 = vmatmul.mubr.f32.gmra.mrb[0].mxu0 %v2108
        %v2466 = vpop.f32.mrb[0].mxu0
        %v2467 = vadd.f32 %v2234, %v2466
        %v2468 = vpop.f32.mrb[0].mxu0
        %v2469 = vadd.f32 %v2234, %v2468
        %2470 = vmatprep.mubr.f32.mxu0 %v2111
        %2471 = vmatmul.mubr.f32.gmra.mrb[0].mxu0 %v2110
        %v2472 = vpop.f32.mrb[0].mxu0
        %v2473 = vadd.f32 %v2239, %v2472
        %v2474 = vpop.f32.mrb[0].mxu0
        %v2475 = vadd.f32 %v2239, %v2474
        %2476 = vmatprep.mubr.f32.mxu0 %v2113
        %2477 = vmatmul.mubr.f32.gmra.mrb[0].mxu0 %v2112
        %v2478 = vpop.f32.mrb[0].mxu0
        %v2479 = vadd.f32 %v2244, %v2478
        %v2480 = vpop.f32.mrb[0].mxu0
        %v2481 = vadd.f32 %v2244, %v2480
        %2482 = vmatprep.mubr.f32.mxu0 %v2115
        %2483 = vmatmul.mubr.f32.gmra.mrb[0].mxu0 %v2114
        %v2484 = vpop.f32.mrb[0].mxu0
        %v2485 = vadd.f32 %v2249, %v2484
        %v2486 = vpop.f32.mrb[0].mxu0
        %v2487 = vadd.f32 %v2249, %v2486
        %2488 = vmatprep.mubr.f32.mxu0 %v2117
        %2489 = vmatmul.mubr.f32.gmra.mrb[0].mxu0 %v2116
        %v2490 = vpop.f32.mrb[0].mxu0
        %v2491 = vadd.f32 %v2254, %v2490
        %v2492 = vpop.f32.mrb[0].mxu0
        %v2493 = vadd.f32 %v2254, %v2492
        %2494 = vmatprep.mubr.f32.mxu0 %v2119
        %2495 = vmatmul.mubr.f32.gmra.mrb[0].mxu0 %v2118
        %v2496 = vpop.f32.mrb[0].mxu0
        %v2497 = vadd.f32 %v2259, %v2496
        %v2498 = vpop.f32.mrb[0].mxu0
        %v2499 = vadd.f32 %v2259, %v2498
        %2500 = vmatprep.mubr.f32.mxu0 %v2121
        %2501 = vmatmul.mubr.f32.gmra.mrb[0].mxu0 %v2120
        %v2502 = vpop.f32.mrb[0].mxu0
        %v2503 = vadd.f32 %v2264, %v2502
        %v2504 = vpop.f32.mrb[0].mxu0
        %v2505 = vadd.f32 %v2264, %v2504
        %2506 = vmatprep.mubr.f32.mxu0 %v2123
        %2507 = vmatmul.mubr.f32.gmra.mrb[0].mxu0 %v2122
        %v2508 = vpop.f32.mrb[0].mxu0
        %v2509 = vadd.f32 %v2269, %v2508
        %v2510 = vpop.f32.mrb[0].mxu0
        %v2511 = vadd.f32 %v2269, %v2510
        %2512 = vmatprep.mubr.f32.mxu0 %v2125
        %2513 = vmatmul.mubr.f32.gmra.mrb[0].mxu0 %v2124
        %v2514 = vpop.f32.mrb[0].mxu0
        %v2515 = vadd.f32 %v2274, %v2514
        %v2516 = vpop.f32.mrb[0].mxu0
        %v2517 = vadd.f32 %v2274, %v2516
        %2518 = vmatprep.mubr.f32.mxu0 %v2127
        %2519 = vmatmul.mubr.f32.gmra.mrb[0].mxu0 %v2126
        %v2520 = vpop.f32.mrb[0].mxu0
        %v2521 = vadd.f32 %v2279, %v2520
        %v2522 = vpop.f32.mrb[0].mxu0
        %v2523 = vadd.f32 %v2279, %v2522
        %2524 = vmatprep.mubr.f32.mxu0 %v2129
        %2525 = vmatmul.mubr.f32.gmra.mrb[0].mxu0 %v2128
        %v2526 = vpop.f32.mrb[0].mxu0
        %v2527 = vadd.f32 %v2284, %v2526
        %v2528 = vpop.f32.mrb[0].mxu0
        %v2529 = vadd.f32 %v2284, %v2528
        %2530 = vmatprep.mubr.f32.mxu0 %v2131
        %2531 = vmatmul.mubr.f32.gmra.mrb[0].mxu0 %v2130
        %v2532 = vpop.f32.mrb[0].mxu0
        %v2533 = vadd.f32 %v2289, %v2532
        %v2534 = vpop.f32.mrb[0].mxu0
        %v2535 = vadd.f32 %v2289, %v2534
        %2536 = vmatprep.mubr.f32.mxu0 %v2133
        %2537 = vmatmul.mubr.f32.gmra.mrb[0].mxu0 %v2132
        %v2538 = vpop.f32.mrb[0].mxu0
        %v2539 = vadd.f32 %v2294, %v2538
        %v2540 = vpop.f32.mrb[0].mxu0
        %v2541 = vadd.f32 %v2294, %v2540
        %2542 = vmatprep.mubr.f32.mxu0 %v2135
        %2543 = vmatmul.mubr.f32.gmra.mrb[0].mxu0 %v2134
        %v2544 = vpop.f32.mrb[0].mxu0
        %v2545 = vadd.f32 %v2299, %v2544
        %v2546 = vpop.f32.mrb[0].mxu0
        %v2547 = vadd.f32 %v2299, %v2546
        %2548 = vmatprep.mubr.f32.mxu0 %v2137
        %2549 = vmatmul.mubr.f32.gmra.mrb[0].mxu0 %v2136
        %v2550 = vpop.f32.mrb[0].mxu0
        %v2551 = vadd.f32 %v2304, %v2550
        %v2552 = vpop.f32.mrb[0].mxu0
        %v2553 = vadd.f32 %v2304, %v2552
        %2554 = vmatprep.mubr.f32.mxu0 %v2139
        %2555 = vmatmul.mubr.f32.gmra.mrb[0].mxu0 %v2138
        %v2556 = vpop.f32.mrb[0].mxu0
        %v2557 = vadd.f32 %v2309, %v2556
        %v2558 = vpop.f32.mrb[0].mxu0
        %v2559 = vadd.f32 %v2309, %v2558
        %2560 = vmatprep.mubr.f32.mxu0 %v2141
        %2561 = vmatmul.mubr.f32.gmra.mrb[0].mxu0 %v2140
        %v2562 = vpop.f32.mrb[0].mxu0
        %v2563 = vadd.f32 %v2314, %v2562
        %v2564 = vpop.f32.mrb[0].mxu0
        %v2565 = vadd.f32 %v2314, %v2564
        %2566 = vmatprep.mubr.f32.mxu0 %v2143
        %2567 = vmatmul.mubr.f32.gmra.mrb[0].mxu0 %v2142
        %v2568 = vpop.f32.mrb[0].mxu0
        %v2569 = vadd.f32 %v2319, %v2568
        %v2570 = vpop.f32.mrb[0].mxu0
        %v2571 = vadd.f32 %v2319, %v2570
        %2572 = vmatprep.mubr.f32.mxu0 %v2145
        %2573 = vmatmul.mubr.f32.gmra.mrb[0].mxu0 %v2144
        %v2574 = vpop.f32.mrb[0].mxu0
        %v2575 = vadd.f32 %v2324, %v2574
        %v2576 = vpop.f32.mrb[0].mxu0
        %v2577 = vadd.f32 %v2324, %v2576
        %2578 = vmatprep.mubr.f32.mxu0 %v2147
        %2579 = vmatmul.mubr.f32.gmra.mrb[0].mxu0 %v2146
        %v2580 = vpop.f32.mrb[0].mxu0
        %v2581 = vadd.f32 %v2329, %v2580
        %v2582 = vpop.f32.mrb[0].mxu0
        %v2583 = vadd.f32 %v2329, %v2582
        %2584 = vmatprep.mubr.f32.mxu0 %v2149
        %2585 = vmatmul.mubr.f32.gmra.mrb[0].mxu0 %v2148
        %v2586 = vpop.f32.mrb[0].mxu0
        %v2587 = vadd.f32 %v2334, %v2586
        %v2588 = vpop.f32.mrb[0].mxu0
        %v2589 = vadd.f32 %v2334, %v2588
        %2590 = vmatprep.mubr.f32.mxu0 %v2151
        %2591 = vmatmul.mubr.f32.gmra.mrb[0].mxu0 %v2150
        %v2592 = vpop.f32.mrb[0].mxu0
        %v2593 = vadd.f32 %v2339, %v2592
        %v2594 = vpop.f32.mrb[0].mxu0
        %v2595 = vadd.f32 %v2339, %v2594
        %2596 = vmatprep.mubr.f32.mxu0 %v2153
        %2597 = vmatmul.mubr.f32.gmra.mrb[0].mxu0 %v2152
        %v2598 = vpop.f32.mrb[0].mxu0
        %v2599 = vadd.f32 %v2344, %v2598
        %v2600 = vpop.f32.mrb[0].mxu0
        %v2601 = vadd.f32 %v2344, %v2600
        %2602 = vdwg.mxu0
        %2603 = vmatprep.subr.mxu0 %v1965
        %2604 = vmatpush1.msra.mxu0 %v1964
        %2605 = vmatprep.subr.mxu0 %v1969
        %2606 = vmatpush1.msra.mxu0 %v1968
        %2607 = vmatprep.subr.mxu0 %v1973
        %2608 = vmatpush1.msra.mxu0 %v1972
        %2609 = vmatprep.subr.mxu0 %v1977
        %2610 = vmatpush1.msra.mxu0 %v1976
        %2611 = vmatprep.subr.mxu0 %v1981
        %2612 = vmatpush1.msra.mxu0 %v1980
        %2613 = vmatprep.subr.mxu0 %v1985
        %2614 = vmatpush1.msra.mxu0 %v1984
        %2615 = vmatprep.subr.mxu0 %v1989
        %2616 = vmatpush1.msra.mxu0 %v1988
        %2617 = vmatprep.subr.mxu0 %v1993
        %2618 = vmatpush1.msra.mxu0 %v1992
        %2619 = vmatprep.subr.mxu0 %v1997
        %2620 = vmatpush1.msra.mxu0 %v1996
        %2621 = vmatprep.subr.mxu0 %v2001
        %2622 = vmatpush1.msra.mxu0 %v2000
        %2623 = vmatprep.subr.mxu0 %v2005
        %2624 = vmatpush1.msra.mxu0 %v2004
        %2625 = vmatprep.subr.mxu0 %v2009
        %2626 = vmatpush1.msra.mxu0 %v2008
        %2627 = vmatprep.subr.mxu0 %v2013
        %2628 = vmatpush1.msra.mxu0 %v2012
        %2629 = vmatprep.subr.mxu0 %v2017
        %2630 = vmatpush1.msra.mxu0 %v2016
        %2631 = vmatprep.subr.mxu0 %v2021
        %2632 = vmatpush1.msra.mxu0 %v2020
        %2633 = vmatprep.subr.mxu0 %v2025
        %2634 = vmatpush1.msra.mxu0 %v2024
        %2635 = vmatprep.subr.mxu0 %v2029
        %2636 = vmatpush1.msra.mxu0 %v2028
        %2637 = vmatprep.subr.mxu0 %v2033
        %2638 = vmatpush1.msra.mxu0 %v2032
        %2639 = vmatprep.subr.mxu0 %v2037
        %2640 = vmatpush1.msra.mxu0 %v2036
        %2641 = vmatprep.subr.mxu0 %v2041
        %2642 = vmatpush1.msra.mxu0 %v2040
        %2643 = vmatprep.subr.mxu0 %v2045
        %2644 = vmatpush1.msra.mxu0 %v2044
        %2645 = vmatprep.subr.mxu0 %v2049
        %2646 = vmatpush1.msra.mxu0 %v2048
        %2647 = vmatprep.subr.mxu0 %v2053
        %2648 = vmatpush1.msra.mxu0 %v2052
        %2649 = vmatprep.subr.mxu0 %v2057
        %2650 = vmatpush1.msra.mxu0 %v2056
        %2651 = vmatprep.subr.mxu0 %v2061
        %2652 = vmatpush1.msra.mxu0 %v2060
        %2653 = vmatprep.subr.mxu0 %v2065
        %2654 = vmatpush1.msra.mxu0 %v2064
        %2655 = vmatprep.subr.mxu0 %v2069
        %2656 = vmatpush1.msra.mxu0 %v2068
        %2657 = vmatprep.subr.mxu0 %v2073
        %2658 = vmatpush1.msra.mxu0 %v2072
        %2659 = vmatprep.subr.mxu0 %v2077
        %2660 = vmatpush1.msra.mxu0 %v2076
        %2661 = vmatprep.subr.mxu0 %v2081
        %2662 = vmatpush1.msra.mxu0 %v2080
        %2663 = vmatprep.subr.mxu0 %v2085
        %2664 = vmatpush1.msra.mxu0 %v2084
        %2665 = vmatprep.subr.mxu0 %v2089
        %2666 = vmatpush1.msra.mxu0 %v2088
        %2667 = vmatprep.mubr.f32.mxu0 %v2091
        %2668 = vmatmul.mubr.f32.gmra.mrb[0].mxu0 %v2090
        %v2669 = vpop.f32.mrb[0].mxu0
        %v2670 = vadd.f32 %v2189, %v2669
        %v2671 = vpop.f32.mrb[0].mxu0
        %v2672 = vadd.f32 %v2189, %v2671
        %2673 = vmatprep.mubr.f32.mxu0 %v2093
        %2674 = vmatmul.mubr.f32.gmra.mrb[0].mxu0 %v2092
        %v2675 = vpop.f32.mrb[0].mxu0
        %v2676 = vadd.f32 %v2194, %v2675
        %v2677 = vpop.f32.mrb[0].mxu0
        %v2678 = vadd.f32 %v2194, %v2677
        %2679 = vmatprep.mubr.f32.mxu0 %v2095
        %2680 = vmatmul.mubr.f32.gmra.mrb[0].mxu0 %v2094
        %v2681 = vpop.f32.mrb[0].mxu0
        %v2682 = vadd.f32 %v2199, %v2681
        %v2683 = vpop.f32.mrb[0].mxu0
        %v2684 = vadd.f32 %v2199, %v2683
        %2685 = vmatprep.mubr.f32.mxu0 %v2097
        %2686 = vmatmul.mubr.f32.gmra.mrb[0].mxu0 %v2096
        %v2687 = vpop.f32.mrb[0].mxu0
        %v2688 = vadd.f32 %v2204, %v2687
        %v2689 = vpop.f32.mrb[0].mxu0
        %v2690 = vadd.f32 %v2204, %v2689
        %2691 = vmatprep.mubr.f32.mxu0 %v2099
        %2692 = vmatmul.mubr.f32.gmra.mrb[0].mxu0 %v2098
        %v2693 = vpop.f32.mrb[0].mxu0
        %v2694 = vadd.f32 %v2209, %v2693
        %v2695 = vpop.f32.mrb[0].mxu0
        %v2696 = vadd.f32 %v2209, %v2695
        %2697 = vmatprep.mubr.f32.mxu0 %v2101
        %2698 = vmatmul.mubr.f32.gmra.mrb[0].mxu0 %v2100
        %v2699 = vpop.f32.mrb[0].mxu0
        %v2700 = vadd.f32 %v2214, %v2699
        %v2701 = vpop.f32.mrb[0].mxu0
        %v2702 = vadd.f32 %v2214, %v2701
        %2703 = vmatprep.mubr.f32.mxu0 %v2103
        %2704 = vmatmul.mubr.f32.gmra.mrb[0].mxu0 %v2102
        %v2705 = vpop.f32.mrb[0].mxu0
        %v2706 = vadd.f32 %v2219, %v2705
        %v2707 = vpop.f32.mrb[0].mxu0
        %v2708 = vadd.f32 %v2219, %v2707
        %2709 = vmatprep.mubr.f32.mxu0 %v2105
        %2710 = vmatmul.mubr.f32.gmra.mrb[0].mxu0 %v2104
        %v2711 = vpop.f32.mrb[0].mxu0
        %v2712 = vadd.f32 %v2224, %v2711
        %v2713 = vpop.f32.mrb[0].mxu0
        %v2714 = vadd.f32 %v2224, %v2713
        %2715 = vmatprep.mubr.f32.mxu0 %v2107
        %2716 = vmatmul.mubr.f32.gmra.mrb[0].mxu0 %v2106
        %v2717 = vpop.f32.mrb[0].mxu0
        %v2718 = vadd.f32 %v2229, %v2717
        %v2719 = vpop.f32.mrb[0].mxu0
        %v2720 = vadd.f32 %v2229, %v2719
        %2721 = vmatprep.mubr.f32.mxu0 %v2109
        %2722 = vmatmul.mubr.f32.gmra.mrb[0].mxu0 %v2108
        %v2723 = vpop.f32.mrb[0].mxu0
        %v2724 = vadd.f32 %v2234, %v2723
        %v2725 = vpop.f32.mrb[0].mxu0
        %v2726 = vadd.f32 %v2234, %v2725
        %2727 = vmatprep.mubr.f32.mxu0 %v2111
        %2728 = vmatmul.mubr.f32.gmra.mrb[0].mxu0 %v2110
        %v2729 = vpop.f32.mrb[0].mxu0
        %v2730 = vadd.f32 %v2239, %v2729
        %v2731 = vpop.f32.mrb[0].mxu0
        %v2732 = vadd.f32 %v2239, %v2731
        %2733 = vmatprep.mubr.f32.mxu0 %v2113
        %2734 = vmatmul.mubr.f32.gmra.mrb[0].mxu0 %v2112
        %v2735 = vpop.f32.mrb[0].mxu0
        %v2736 = vadd.f32 %v2244, %v2735
        %v2737 = vpop.f32.mrb[0].mxu0
        %v2738 = vadd.f32 %v2244, %v2737
        %2739 = vmatprep.mubr.f32.mxu0 %v2115
        %2740 = vmatmul.mubr.f32.gmra.mrb[0].mxu0 %v2114
        %v2741 = vpop.f32.mrb[0].mxu0
        %v2742 = vadd.f32 %v2249, %v2741
        %v2743 = vpop.f32.mrb[0].mxu0
        %v2744 = vadd.f32 %v2249, %v2743
        %2745 = vmatprep.mubr.f32.mxu0 %v2117
        %2746 = vmatmul.mubr.f32.gmra.mrb[0].mxu0 %v2116
        %v2747 = vpop.f32.mrb[0].mxu0
        %v2748 = vadd.f32 %v2254, %v2747
        %v2749 = vpop.f32.mrb[0].mxu0
        %v2750 = vadd.f32 %v2254, %v2749
        %2751 = vmatprep.mubr.f32.mxu0 %v2119
        %2752 = vmatmul.mubr.f32.gmra.mrb[0].mxu0 %v2118
        %v2753 = vpop.f32.mrb[0].mxu0
        %v2754 = vadd.f32 %v2259, %v2753
        %v2755 = vpop.f32.mrb[0].mxu0
        %v2756 = vadd.f32 %v2259, %v2755
        %2757 = vmatprep.mubr.f32.mxu0 %v2121
        %2758 = vmatmul.mubr.f32.gmra.mrb[0].mxu0 %v2120
        %v2759 = vpop.f32.mrb[0].mxu0
        %v2760 = vadd.f32 %v2264, %v2759
        %v2761 = vpop.f32.mrb[0].mxu0
        %v2762 = vadd.f32 %v2264, %v2761
        %2763 = vmatprep.mubr.f32.mxu0 %v2123
        %2764 = vmatmul.mubr.f32.gmra.mrb[0].mxu0 %v2122
        %v2765 = vpop.f32.mrb[0].mxu0
        %v2766 = vadd.f32 %v2269, %v2765
        %v2767 = vpop.f32.mrb[0].mxu0
        %v2768 = vadd.f32 %v2269, %v2767
        %2769 = vmatprep.mubr.f32.mxu0 %v2125
        %2770 = vmatmul.mubr.f32.gmra.mrb[0].mxu0 %v2124
        %v2771 = vpop.f32.mrb[0].mxu0
        %v2772 = vadd.f32 %v2274, %v2771
        %v2773 = vpop.f32.mrb[0].mxu0
        %v2774 = vadd.f32 %v2274, %v2773
        %2775 = vmatprep.mubr.f32.mxu0 %v2127
        %2776 = vmatmul.mubr.f32.gmra.mrb[0].mxu0 %v2126
        %v2777 = vpop.f32.mrb[0].mxu0
        %v2778 = vadd.f32 %v2279, %v2777
        %v2779 = vpop.f32.mrb[0].mxu0
        %v2780 = vadd.f32 %v2279, %v2779
        %2781 = vmatprep.mubr.f32.mxu0 %v2129
        %2782 = vmatmul.mubr.f32.gmra.mrb[0].mxu0 %v2128
        %v2783 = vpop.f32.mrb[0].mxu0
        %v2784 = vadd.f32 %v2284, %v2783
        %v2785 = vpop.f32.mrb[0].mxu0
        %v2786 = vadd.f32 %v2284, %v2785
        %2787 = vmatprep.mubr.f32.mxu0 %v2131
        %2788 = vmatmul.mubr.f32.gmra.mrb[0].mxu0 %v2130
        %v2789 = vpop.f32.mrb[0].mxu0
        %v2790 = vadd.f32 %v2289, %v2789
        %v2791 = vpop.f32.mrb[0].mxu0
        %v2792 = vadd.f32 %v2289, %v2791
        %2793 = vmatprep.mubr.f32.mxu0 %v2133
        %2794 = vmatmul.mubr.f32.gmra.mrb[0].mxu0 %v2132
        %v2795 = vpop.f32.mrb[0].mxu0
        %v2796 = vadd.f32 %v2294, %v2795
        %v2797 = vpop.f32.mrb[0].mxu0
        %v2798 = vadd.f32 %v2294, %v2797
        %2799 = vmatprep.mubr.f32.mxu0 %v2135
        %2800 = vmatmul.mubr.f32.gmra.mrb[0].mxu0 %v2134
        %v2801 = vpop.f32.mrb[0].mxu0
        %v2802 = vadd.f32 %v2299, %v2801
        %v2803 = vpop.f32.mrb[0].mxu0
        %v2804 = vadd.f32 %v2299, %v2803
        %2805 = vmatprep.mubr.f32.mxu0 %v2137
        %2806 = vmatmul.mubr.f32.gmra.mrb[0].mxu0 %v2136
        %v2807 = vpop.f32.mrb[0].mxu0
        %v2808 = vadd.f32 %v2304, %v2807
        %v2809 = vpop.f32.mrb[0].mxu0
        %v2810 = vadd.f32 %v2304, %v2809
        %2811 = vmatprep.mubr.f32.mxu0 %v2139
        %2812 = vmatmul.mubr.f32.gmra.mrb[0].mxu0 %v2138
        %v2813 = vpop.f32.mrb[0].mxu0
        %v2814 = vadd.f32 %v2309, %v2813
        %v2815 = vpop.f32.mrb[0].mxu0
        %v2816 = vadd.f32 %v2309, %v2815
        %2817 = vmatprep.mubr.f32.mxu0 %v2141
        %2818 = vmatmul.mubr.f32.gmra.mrb[0].mxu0 %v2140
        %v2819 = vpop.f32.mrb[0].mxu0
        %v2820 = vadd.f32 %v2314, %v2819
        %v2821 = vpop.f32.mrb[0].mxu0
        %v2822 = vadd.f32 %v2314, %v2821
        %2823 = vmatprep.mubr.f32.mxu0 %v2143
        %2824 = vmatmul.mubr.f32.gmra.mrb[0].mxu0 %v2142
        %v2825 = vpop.f32.mrb[0].mxu0
        %v2826 = vadd.f32 %v2319, %v2825
        %v2827 = vpop.f32.mrb[0].mxu0
        %v2828 = vadd.f32 %v2319, %v2827
        %2829 = vmatprep.mubr.f32.mxu0 %v2145
        %2830 = vmatmul.mubr.f32.gmra.mrb[0].mxu0 %v2144
        %v2831 = vpop.f32.mrb[0].mxu0
        %v2832 = vadd.f32 %v2324, %v2831
        %v2833 = vpop.f32.mrb[0].mxu0
        %v2834 = vadd.f32 %v2324, %v2833
        %2835 = vmatprep.mubr.f32.mxu0 %v2147
        %2836 = vmatmul.mubr.f32.gmra.mrb[0].mxu0 %v2146
        %v2837 = vpop.f32.mrb[0].mxu0
        %v2838 = vadd.f32 %v2329, %v2837
        %v2839 = vpop.f32.mrb[0].mxu0
        %v2840 = vadd.f32 %v2329, %v2839
        %2841 = vmatprep.mubr.f32.mxu0 %v2149
        %2842 = vmatmul.mubr.f32.gmra.mrb[0].mxu0 %v2148
        %v2843 = vpop.f32.mrb[0].mxu0
        %v2844 = vadd.f32 %v2334, %v2843
        %v2845 = vpop.f32.mrb[0].mxu0
        %v2846 = vadd.f32 %v2334, %v2845
        %2847 = vmatprep.mubr.f32.mxu0 %v2151
        %2848 = vmatmul.mubr.f32.gmra.mrb[0].mxu0 %v2150
        %v2849 = vpop.f32.mrb[0].mxu0
        %v2850 = vadd.f32 %v2339, %v2849
        %v2851 = vpop.f32.mrb[0].mxu0
        %v2852 = vadd.f32 %v2339, %v2851
        %2853 = vmatprep.mubr.f32.mxu0 %v2153
        %2854 = vmatmul.mubr.f32.gmra.mrb[0].mxu0 %v2152
        %v2855 = vpop.f32.mrb[0].mxu0
        %v2856 = vadd.f32 %v2344, %v2855
        %v2857 = vpop.f32.mrb[0].mxu0
        %v2858 = vadd.f32 %v2344, %v2857
        %2859 = vdwg.mxu0
        %v2860 = vmax.f32 %v2413, 0.0
        %v2861 = vmax.f32 %v2415, 0.0
        %v2862 = vmax.f32 %v2670, 0.0
        %v2863 = vmax.f32 %v2672, 0.0
        %v2864 = vmax.f32 %v2419, 0.0
        %v2865 = vmax.f32 %v2421, 0.0
        %v2866 = vmax.f32 %v2676, 0.0
        %v2867 = vmax.f32 %v2678, 0.0
        %v2868 = vmax.f32 %v2425, 0.0
        %v2869 = vmax.f32 %v2427, 0.0
        %v2870 = vmax.f32 %v2682, 0.0
        %v2871 = vmax.f32 %v2684, 0.0
        %v2872 = vmax.f32 %v2431, 0.0
        %v2873 = vmax.f32 %v2433, 0.0
        %v2874 = vmax.f32 %v2688, 0.0
        %v2875 = vmax.f32 %v2690, 0.0
        %v2876 = vmax.f32 %v2437, 0.0
        %v2877 = vmax.f32 %v2439, 0.0
        %v2878 = vmax.f32 %v2694, 0.0
        %v2879 = vmax.f32 %v2696, 0.0
        %v2880 = vmax.f32 %v2443, 0.0
        %v2881 = vmax.f32 %v2445, 0.0
        %v2882 = vmax.f32 %v2700, 0.0
        %v2883 = vmax.f32 %v2702, 0.0
        %v2884 = vmax.f32 %v2449, 0.0
        %v2885 = vmax.f32 %v2451, 0.0
        %v2886 = vmax.f32 %v2706, 0.0
        %v2887 = vmax.f32 %v2708, 0.0
        %v2888 = vmax.f32 %v2455, 0.0
        %v2889 = vmax.f32 %v2457, 0.0
        %v2890 = vmax.f32 %v2712, 0.0
        %v2891 = vmax.f32 %v2714, 0.0
        %v2892 = vmax.f32 %v2461, 0.0
        %v2893 = vmax.f32 %v2463, 0.0
        %v2894 = vmax.f32 %v2718, 0.0
        %v2895 = vmax.f32 %v2720, 0.0
        %v2896 = vmax.f32 %v2467, 0.0
        %v2897 = vmax.f32 %v2469, 0.0
        %v2898 = vmax.f32 %v2724, 0.0
        %v2899 = vmax.f32 %v2726, 0.0
        %v2900 = vmax.f32 %v2473, 0.0
        %v2901 = vmax.f32 %v2475, 0.0
        %v2902 = vmax.f32 %v2730, 0.0
        %v2903 = vmax.f32 %v2732, 0.0
        %v2904 = vmax.f32 %v2479, 0.0
        %v2905 = vmax.f32 %v2481, 0.0
        %v2906 = vmax.f32 %v2736, 0.0
        %v2907 = vmax.f32 %v2738, 0.0
        %v2908 = vmax.f32 %v2485, 0.0
        %v2909 = vmax.f32 %v2487, 0.0
        %v2910 = vmax.f32 %v2742, 0.0
        %v2911 = vmax.f32 %v2744, 0.0
        %v2912 = vmax.f32 %v2491, 0.0
        %v2913 = vmax.f32 %v2493, 0.0
        %v2914 = vmax.f32 %v2748, 0.0
        %v2915 = vmax.f32 %v2750, 0.0
        %v2916 = vmax.f32 %v2497, 0.0
        %v2917 = vmax.f32 %v2499, 0.0
        %v2918 = vmax.f32 %v2754, 0.0
        %v2919 = vmax.f32 %v2756, 0.0
        %v2920 = vmax.f32 %v2503, 0.0
        %v2921 = vmax.f32 %v2505, 0.0
        %v2922 = vmax.f32 %v2760, 0.0
        %v2923 = vmax.f32 %v2762, 0.0
        %v2924 = vmax.f32 %v2509, 0.0
        %v2925 = vmax.f32 %v2511, 0.0
        %v2926 = vmax.f32 %v2766, 0.0
        %v2927 = vmax.f32 %v2768, 0.0
        %v2928 = vmax.f32 %v2515, 0.0
        %v2929 = vmax.f32 %v2517, 0.0
        %v2930 = vmax.f32 %v2772, 0.0
        %v2931 = vmax.f32 %v2774, 0.0
        %v2932 = vmax.f32 %v2521, 0.0
        %v2933 = vmax.f32 %v2523, 0.0
        %v2934 = vmax.f32 %v2778, 0.0
        %v2935 = vmax.f32 %v2780, 0.0
        %v2936 = vmax.f32 %v2527, 0.0
        %v2937 = vmax.f32 %v2529, 0.0
        %v2938 = vmax.f32 %v2784, 0.0
        %v2939 = vmax.f32 %v2786, 0.0
        %v2940 = vmax.f32 %v2533, 0.0
        %v2941 = vmax.f32 %v2535, 0.0
        %v2942 = vmax.f32 %v2790, 0.0
        %v2943 = vmax.f32 %v2792, 0.0
        %v2944 = vmax.f32 %v2539, 0.0
        %v2945 = vmax.f32 %v2541, 0.0
        %v2946 = vmax.f32 %v2796, 0.0
        %v2947 = vmax.f32 %v2798, 0.0
        %v2948 = vmax.f32 %v2545, 0.0
        %v2949 = vmax.f32 %v2547, 0.0
        %v2950 = vmax.f32 %v2802, 0.0
        %v2951 = vmax.f32 %v2804, 0.0
        %v2952 = vmax.f32 %v2551, 0.0
        %v2953 = vmax.f32 %v2553, 0.0
        %v2954 = vmax.f32 %v2808, 0.0
        %v2955 = vmax.f32 %v2810, 0.0
        %v2956 = vmax.f32 %v2557, 0.0
        %v2957 = vmax.f32 %v2559, 0.0
        %v2958 = vmax.f32 %v2814, 0.0
        %v2959 = vmax.f32 %v2816, 0.0
        %v2960 = vmax.f32 %v2563, 0.0
        %v2961 = vmax.f32 %v2565, 0.0
        %v2962 = vmax.f32 %v2820, 0.0
        %v2963 = vmax.f32 %v2822, 0.0
        %v2964 = vmax.f32 %v2569, 0.0
        %v2965 = vmax.f32 %v2571, 0.0
        %v2966 = vmax.f32 %v2826, 0.0
        %v2967 = vmax.f32 %v2828, 0.0
        %v2968 = vmax.f32 %v2575, 0.0
        %v2969 = vmax.f32 %v2577, 0.0
        %v2970 = vmax.f32 %v2832, 0.0
        %v2971 = vmax.f32 %v2834, 0.0
        %v2972 = vmax.f32 %v2581, 0.0
        %v2973 = vmax.f32 %v2583, 0.0
        %v2974 = vmax.f32 %v2838, 0.0
        %v2975 = vmax.f32 %v2840, 0.0
        %v2976 = vmax.f32 %v2587, 0.0
        %v2977 = vmax.f32 %v2589, 0.0
        %v2978 = vmax.f32 %v2844, 0.0
        %v2979 = vmax.f32 %v2846, 0.0
        %v2980 = vmax.f32 %v2593, 0.0
        %v2981 = vmax.f32 %v2595, 0.0
        %v2982 = vmax.f32 %v2850, 0.0
        %v2983 = vmax.f32 %v2852, 0.0
        %v2984 = vmax.f32 %v2599, 0.0
        %v2985 = vmax.f32 %v2601, 0.0
        %v2986 = vmax.f32 %v2856, 0.0
        %v2987 = vmax.f32 %v2858, 0.0
        %v2988 = vld [vmem:[#allocation3] sm:$0xff]
        %v2989 = vld [vmem:[#allocation3 + $0x8] sm:$0xff]
        %v2990 = vld [vmem:[#allocation3 + $0x10] sm:$0xff]
        %v2991 = vld [vmem:[#allocation3 + $0x18] sm:$0xff]
        %v2992 = vld [vmem:[#allocation3 + $0x20] sm:$0xff]
        %v2993 = vld [vmem:[#allocation3 + $0x28] sm:$0xff]
        %v2994 = vld [vmem:[#allocation3 + $0x30] sm:$0xff]
        %v2995 = vld [vmem:[#allocation3 + $0x38] sm:$0xff]
        %v2996 = vld [vmem:[#allocation3 + $0x40] sm:$0xff]
        %v2997 = vld [vmem:[#allocation3 + $0x48] sm:$0xff]
        %v2998 = vld [vmem:[#allocation3 + $0x50] sm:$0xff]
        %v2999 = vld [vmem:[#allocation3 + $0x58] sm:$0xff]
        %v3000 = vld [vmem:[#allocation3 + $0x60] sm:$0xff]
        %v3001 = vld [vmem:[#allocation3 + $0x68] sm:$0xff]
        %v3002 = vld [vmem:[#allocation3 + $0x70] sm:$0xff]
        %v3003 = vld [vmem:[#allocation3 + $0x78] sm:$0xff]
        %v3004 = vld [vmem:[#allocation3 + $0x80] sm:$0xff]
        %v3005 = vld [vmem:[#allocation3 + $0x88] sm:$0xff]
        %v3006 = vld [vmem:[#allocation3 + $0x90] sm:$0xff]
        %v3007 = vld [vmem:[#allocation3 + $0x98] sm:$0xff]
        %v3008 = vld [vmem:[#allocation3 + $0xa0] sm:$0xff]
        %v3009 = vld [vmem:[#allocation3 + $0xa8] sm:$0xff]
        %v3010 = vld [vmem:[#allocation3 + $0xb0] sm:$0xff]
        %v3011 = vld [vmem:[#allocation3 + $0xb8] sm:$0xff]
        %v3012 = vld [vmem:[#allocation3 + $0xc0] sm:$0xff]
        %v3013 = vld [vmem:[#allocation3 + $0xc8] sm:$0xff]
        %v3014 = vld [vmem:[#allocation3 + $0xd0] sm:$0xff]
        %v3015 = vld [vmem:[#allocation3 + $0xd8] sm:$0xff]
        %v3016 = vld [vmem:[#allocation3 + $0xe0] sm:$0xff]
        %v3017 = vld [vmem:[#allocation3 + $0xe8] sm:$0xff]
        %v3018 = vld [vmem:[#allocation3 + $0xf0] sm:$0xff]
        %v3019 = vld [vmem:[#allocation3 + $0xf8] sm:$0xff]
        %v3020 = vld [vmem:[#allocation3 + $0x100] sm:$0xff]
        %v3021 = vld [vmem:[#allocation3 + $0x108] sm:$0xff]
        %v3022 = vld [vmem:[#allocation3 + $0x110] sm:$0xff]
        %v3023 = vld [vmem:[#allocation3 + $0x118] sm:$0xff]
        %v3024 = vld [vmem:[#allocation3 + $0x120] sm:$0xff]
        %v3025 = vld [vmem:[#allocation3 + $0x128] sm:$0xff]
        %v3026 = vld [vmem:[#allocation3 + $0x130] sm:$0xff]
        %v3027 = vld [vmem:[#allocation3 + $0x138] sm:$0xff]
        %v3028 = vld [vmem:[#allocation3 + $0x140] sm:$0xff]
        %v3029 = vld [vmem:[#allocation3 + $0x148] sm:$0xff]
        %v3030 = vld [vmem:[#allocation3 + $0x150] sm:$0xff]
        %v3031 = vld [vmem:[#allocation3 + $0x158] sm:$0xff]
        %v3032 = vld [vmem:[#allocation3 + $0x160] sm:$0xff]
        %v3033 = vld [vmem:[#allocation3 + $0x168] sm:$0xff]
        %v3034 = vld [vmem:[#allocation3 + $0x170] sm:$0xff]
        %v3035 = vld [vmem:[#allocation3 + $0x178] sm:$0xff]
        %v3036 = vld [vmem:[#allocation3 + $0x180] sm:$0xff]
        %v3037 = vld [vmem:[#allocation3 + $0x188] sm:$0xff]
        %v3038 = vld [vmem:[#allocation3 + $0x190] sm:$0xff]
        %v3039 = vld [vmem:[#allocation3 + $0x198] sm:$0xff]
        %v3040 = vld [vmem:[#allocation3 + $0x1a0] sm:$0xff]
        %v3041 = vld [vmem:[#allocation3 + $0x1a8] sm:$0xff]
        %v3042 = vld [vmem:[#allocation3 + $0x1b0] sm:$0xff]
        %v3043 = vld [vmem:[#allocation3 + $0x1b8] sm:$0xff]
        %v3044 = vld [vmem:[#allocation3 + $0x1c0] sm:$0xff]
        %v3045 = vld [vmem:[#allocation3 + $0x1c8] sm:$0xff]
        %v3046 = vld [vmem:[#allocation3 + $0x1d0] sm:$0xff]
        %v3047 = vld [vmem:[#allocation3 + $0x1d8] sm:$0xff]
        %v3048 = vld [vmem:[#allocation3 + $0x1e0] sm:$0xff]
        %v3049 = vld [vmem:[#allocation3 + $0x1e8] sm:$0xff]
        %v3050 = vld [vmem:[#allocation3 + $0x1f0] sm:$0xff]
        %v3051 = vld [vmem:[#allocation3 + $0x1f8] sm:$0xff]
        %v3052 = vld [vmem:[%s8] sm:$0xff]
        %v3053 = vld [vmem:[%s8 + $0x8] sm:$0xff]
        %v3054 = vld [vmem:[%s8 + $0x10] sm:$0xff]
        %v3055 = vld [vmem:[%s8 + $0x18] sm:$0xff]
        %v3056 = vld [vmem:[%s8 + $0x20] sm:$0xff]
        %v3057 = vld [vmem:[%s8 + $0x28] sm:$0xff]
        %v3058 = vld [vmem:[%s8 + $0x30] sm:$0xff]
        %v3059 = vld [vmem:[%s8 + $0x38] sm:$0xff]
        %v3060 = vld [vmem:[%s8 + $0x40] sm:$0xff]
        %v3061 = vld [vmem:[%s8 + $0x48] sm:$0xff]
        %v3062 = vld [vmem:[%s8 + $0x50] sm:$0xff]
        %v3063 = vld [vmem:[%s8 + $0x58] sm:$0xff]
        %v3064 = vld [vmem:[%s8 + $0x60] sm:$0xff]
        %v3065 = vld [vmem:[%s8 + $0x68] sm:$0xff]
        %v3066 = vld [vmem:[%s8 + $0x70] sm:$0xff]
        %v3067 = vld [vmem:[%s8 + $0x78] sm:$0xff]
        %v3068 = vld [vmem:[%s8 + $0x80] sm:$0xff]
        %v3069 = vld [vmem:[%s8 + $0x88] sm:$0xff]
        %v3070 = vld [vmem:[%s8 + $0x90] sm:$0xff]
        %v3071 = vld [vmem:[%s8 + $0x98] sm:$0xff]
        %v3072 = vld [vmem:[%s8 + $0xa0] sm:$0xff]
        %v3073 = vld [vmem:[%s8 + $0xa8] sm:$0xff]
        %v3074 = vld [vmem:[%s8 + $0xb0] sm:$0xff]
        %v3075 = vld [vmem:[%s8 + $0xb8] sm:$0xff]
        %v3076 = vld [vmem:[%s8 + $0xc0] sm:$0xff]
        %v3077 = vld [vmem:[%s8 + $0xc8] sm:$0xff]
        %v3078 = vld [vmem:[%s8 + $0xd0] sm:$0xff]
        %v3079 = vld [vmem:[%s8 + $0xd8] sm:$0xff]
        %v3080 = vld [vmem:[%s8 + $0xe0] sm:$0xff]
        %v3081 = vld [vmem:[%s8 + $0xe8] sm:$0xff]
        %v3082 = vld [vmem:[%s8 + $0xf0] sm:$0xff]
        %v3083 = vld [vmem:[%s8 + $0xf8] sm:$0xff]
        %3085 = vset.pattern.permute.xlu0 0
        %3086 = vperm.xlu0 %3085, %v3052
        %v3087 = vpop.permute.xlu0 %3086
        %3090 = vset.pattern.permute.xlu0 0
        %3091 = vperm.xlu0 %3090, %v3053
        %v3092 = vpop.permute.xlu0 %3091
        %3095 = vset.pattern.permute.xlu0 0
        %3096 = vperm.xlu0 %3095, %v3054
        %v3097 = vpop.permute.xlu0 %3096
        %3100 = vset.pattern.permute.xlu0 0
        %3101 = vperm.xlu0 %3100, %v3055
        %v3102 = vpop.permute.xlu0 %3101
        %3105 = vset.pattern.permute.xlu0 0
        %3106 = vperm.xlu0 %3105, %v3056
        %v3107 = vpop.permute.xlu0 %3106
        %3110 = vset.pattern.permute.xlu0 0
        %3111 = vperm.xlu0 %3110, %v3057
        %v3112 = vpop.permute.xlu0 %3111
        %3115 = vset.pattern.permute.xlu0 0
        %3116 = vperm.xlu0 %3115, %v3058
        %v3117 = vpop.permute.xlu0 %3116
        %3120 = vset.pattern.permute.xlu0 0
        %3121 = vperm.xlu0 %3120, %v3059
        %v3122 = vpop.permute.xlu0 %3121
        %3125 = vset.pattern.permute.xlu0 0
        %3126 = vperm.xlu0 %3125, %v3060
        %v3127 = vpop.permute.xlu0 %3126
        %3130 = vset.pattern.permute.xlu0 0
        %3131 = vperm.xlu0 %3130, %v3061
        %v3132 = vpop.permute.xlu0 %3131
        %3135 = vset.pattern.permute.xlu0 0
        %3136 = vperm.xlu0 %3135, %v3062
        %v3137 = vpop.permute.xlu0 %3136
        %3140 = vset.pattern.permute.xlu0 0
        %3141 = vperm.xlu0 %3140, %v3063
        %v3142 = vpop.permute.xlu0 %3141
        %3145 = vset.pattern.permute.xlu0 0
        %3146 = vperm.xlu0 %3145, %v3064
        %v3147 = vpop.permute.xlu0 %3146
        %3150 = vset.pattern.permute.xlu0 0
        %3151 = vperm.xlu0 %3150, %v3065
        %v3152 = vpop.permute.xlu0 %3151
        %3155 = vset.pattern.permute.xlu0 0
        %3156 = vperm.xlu0 %3155, %v3066
        %v3157 = vpop.permute.xlu0 %3156
        %3160 = vset.pattern.permute.xlu0 0
        %3161 = vperm.xlu0 %3160, %v3067
        %v3162 = vpop.permute.xlu0 %3161
        %3165 = vset.pattern.permute.xlu0 0
        %3166 = vperm.xlu0 %3165, %v3068
        %v3167 = vpop.permute.xlu0 %3166
        %3170 = vset.pattern.permute.xlu0 0
        %3171 = vperm.xlu0 %3170, %v3069
        %v3172 = vpop.permute.xlu0 %3171
        %3175 = vset.pattern.permute.xlu0 0
        %3176 = vperm.xlu0 %3175, %v3070
        %v3177 = vpop.permute.xlu0 %3176
        %3180 = vset.pattern.permute.xlu0 0
        %3181 = vperm.xlu0 %3180, %v3071
        %v3182 = vpop.permute.xlu0 %3181
        %3185 = vset.pattern.permute.xlu0 0
        %3186 = vperm.xlu0 %3185, %v3072
        %v3187 = vpop.permute.xlu0 %3186
        %3190 = vset.pattern.permute.xlu0 0
        %3191 = vperm.xlu0 %3190, %v3073
        %v3192 = vpop.permute.xlu0 %3191
        %3195 = vset.pattern.permute.xlu0 0
        %3196 = vperm.xlu0 %3195, %v3074
        %v3197 = vpop.permute.xlu0 %3196
        %3200 = vset.pattern.permute.xlu0 0
        %3201 = vperm.xlu0 %3200, %v3075
        %v3202 = vpop.permute.xlu0 %3201
        %3205 = vset.pattern.permute.xlu0 0
        %3206 = vperm.xlu0 %3205, %v3076
        %v3207 = vpop.permute.xlu0 %3206
        %3210 = vset.pattern.permute.xlu0 0
        %3211 = vperm.xlu0 %3210, %v3077
        %v3212 = vpop.permute.xlu0 %3211
        %3215 = vset.pattern.permute.xlu0 0
        %3216 = vperm.xlu0 %3215, %v3078
        %v3217 = vpop.permute.xlu0 %3216
        %3220 = vset.pattern.permute.xlu0 0
        %3221 = vperm.xlu0 %3220, %v3079
        %v3222 = vpop.permute.xlu0 %3221
        %3225 = vset.pattern.permute.xlu0 0
        %3226 = vperm.xlu0 %3225, %v3080
        %v3227 = vpop.permute.xlu0 %3226
        %3230 = vset.pattern.permute.xlu0 0
        %3231 = vperm.xlu0 %3230, %v3081
        %v3232 = vpop.permute.xlu0 %3231
        %3235 = vset.pattern.permute.xlu0 0
        %3236 = vperm.xlu0 %3235, %v3082
        %v3237 = vpop.permute.xlu0 %3236
        %3240 = vset.pattern.permute.xlu0 0
        %3241 = vperm.xlu0 %3240, %v3083
        %v3242 = vpop.permute.xlu0 %3241
        %3244 = vmatprep.subr.mxu0 %v2861
        %3245 = vmatpush1.msra.mxu0 %v2860
        %3246 = vmatprep.subr.mxu0 %v2865
        %3247 = vmatpush1.msra.mxu0 %v2864
        %3248 = vmatprep.subr.mxu0 %v2869
        %3249 = vmatpush1.msra.mxu0 %v2868
        %3250 = vmatprep.subr.mxu0 %v2873
        %3251 = vmatpush1.msra.mxu0 %v2872
        %3252 = vmatprep.subr.mxu0 %v2877
        %3253 = vmatpush1.msra.mxu0 %v2876
        %3254 = vmatprep.subr.mxu0 %v2881
        %3255 = vmatpush1.msra.mxu0 %v2880
        %3256 = vmatprep.subr.mxu0 %v2885
        %3257 = vmatpush1.msra.mxu0 %v2884
        %3258 = vmatprep.subr.mxu0 %v2889
        %3259 = vmatpush1.msra.mxu0 %v2888
        %3260 = vmatprep.subr.mxu0 %v2893
        %3261 = vmatpush1.msra.mxu0 %v2892
        %3262 = vmatprep.subr.mxu0 %v2897
        %3263 = vmatpush1.msra.mxu0 %v2896
        %3264 = vmatprep.subr.mxu0 %v2901
        %3265 = vmatpush1.msra.mxu0 %v2900
        %3266 = vmatprep.subr.mxu0 %v2905
        %3267 = vmatpush1.msra.mxu0 %v2904
        %3268 = vmatprep.subr.mxu0 %v2909
        %3269 = vmatpush1.msra.mxu0 %v2908
        %3270 = vmatprep.subr.mxu0 %v2913
        %3271 = vmatpush1.msra.mxu0 %v2912
        %3272 = vmatprep.subr.mxu0 %v2917
        %3273 = vmatpush1.msra.mxu0 %v2916
        %3274 = vmatprep.subr.mxu0 %v2921
        %3275 = vmatpush1.msra.mxu0 %v2920
        %3276 = vmatprep.subr.mxu0 %v2925
        %3277 = vmatpush1.msra.mxu0 %v2924
        %3278 = vmatprep.subr.mxu0 %v2929
        %3279 = vmatpush1.msra.mxu0 %v2928
        %3280 = vmatprep.subr.mxu0 %v2933
        %3281 = vmatpush1.msra.mxu0 %v2932
        %3282 = vmatprep.subr.mxu0 %v2937
        %3283 = vmatpush1.msra.mxu0 %v2936
        %3284 = vmatprep.subr.mxu0 %v2941
        %3285 = vmatpush1.msra.mxu0 %v2940
        %3286 = vmatprep.subr.mxu0 %v2945
        %3287 = vmatpush1.msra.mxu0 %v2944
        %3288 = vmatprep.subr.mxu0 %v2949
        %3289 = vmatpush1.msra.mxu0 %v2948
        %3290 = vmatprep.subr.mxu0 %v2953
        %3291 = vmatpush1.msra.mxu0 %v2952
        %3292 = vmatprep.subr.mxu0 %v2957
        %3293 = vmatpush1.msra.mxu0 %v2956
        %3294 = vmatprep.subr.mxu0 %v2961
        %3295 = vmatpush1.msra.mxu0 %v2960
        %3296 = vmatprep.subr.mxu0 %v2965
        %3297 = vmatpush1.msra.mxu0 %v2964
        %3298 = vmatprep.subr.mxu0 %v2969
        %3299 = vmatpush1.msra.mxu0 %v2968
        %3300 = vmatprep.subr.mxu0 %v2973
        %3301 = vmatpush1.msra.mxu0 %v2972
        %3302 = vmatprep.subr.mxu0 %v2977
        %3303 = vmatpush1.msra.mxu0 %v2976
        %3304 = vmatprep.subr.mxu0 %v2981
        %3305 = vmatpush1.msra.mxu0 %v2980
        %3306 = vmatprep.subr.mxu0 %v2985
        %3307 = vmatpush1.msra.mxu0 %v2984
        %3308 = vmatprep.mubr.f32.mxu0 %v2989
        %3309 = vmatmul.mubr.f32.gmra.mrb[0].mxu0 %v2988
        %v3310 = vpop.f32.mrb[0].mxu0
        %v3311 = vadd.f32 %v3087, %v3310
        %v3312 = vpop.f32.mrb[0].mxu0
        %v3313 = vadd.f32 %v3087, %v3312
        %3314 = vmatprep.mubr.f32.mxu0 %v2991
        %3315 = vmatmul.mubr.f32.gmra.mrb[0].mxu0 %v2990
        %v3316 = vpop.f32.mrb[0].mxu0
        %v3317 = vadd.f32 %v3092, %v3316
        %v3318 = vpop.f32.mrb[0].mxu0
        %v3319 = vadd.f32 %v3092, %v3318
        %3320 = vmatprep.mubr.f32.mxu0 %v2993
        %3321 = vmatmul.mubr.f32.gmra.mrb[0].mxu0 %v2992
        %v3322 = vpop.f32.mrb[0].mxu0
        %v3323 = vadd.f32 %v3097, %v3322
        %v3324 = vpop.f32.mrb[0].mxu0
        %v3325 = vadd.f32 %v3097, %v3324
        %3326 = vmatprep.mubr.f32.mxu0 %v2995
        %3327 = vmatmul.mubr.f32.gmra.mrb[0].mxu0 %v2994
        %v3328 = vpop.f32.mrb[0].mxu0
        %v3329 = vadd.f32 %v3102, %v3328
        %v3330 = vpop.f32.mrb[0].mxu0
        %v3331 = vadd.f32 %v3102, %v3330
        %3332 = vmatprep.mubr.f32.mxu0 %v2997
        %3333 = vmatmul.mubr.f32.gmra.mrb[0].mxu0 %v2996
        %v3334 = vpop.f32.mrb[0].mxu0
        %v3335 = vadd.f32 %v3107, %v3334
        %v3336 = vpop.f32.mrb[0].mxu0
        %v3337 = vadd.f32 %v3107, %v3336
        %3338 = vmatprep.mubr.f32.mxu0 %v2999
        %3339 = vmatmul.mubr.f32.gmra.mrb[0].mxu0 %v2998
        %v3340 = vpop.f32.mrb[0].mxu0
        %v3341 = vadd.f32 %v3112, %v3340
        %v3342 = vpop.f32.mrb[0].mxu0
        %v3343 = vadd.f32 %v3112, %v3342
        %3344 = vmatprep.mubr.f32.mxu0 %v3001
        %3345 = vmatmul.mubr.f32.gmra.mrb[0].mxu0 %v3000
        %v3346 = vpop.f32.mrb[0].mxu0
        %v3347 = vadd.f32 %v3117, %v3346
        %v3348 = vpop.f32.mrb[0].mxu0
        %v3349 = vadd.f32 %v3117, %v3348
        %3350 = vmatprep.mubr.f32.mxu0 %v3003
        %3351 = vmatmul.mubr.f32.gmra.mrb[0].mxu0 %v3002
        %v3352 = vpop.f32.mrb[0].mxu0
        %v3353 = vadd.f32 %v3122, %v3352
        %v3354 = vpop.f32.mrb[0].mxu0
        %v3355 = vadd.f32 %v3122, %v3354
        %3356 = vmatprep.mubr.f32.mxu0 %v3005
        %3357 = vmatmul.mubr.f32.gmra.mrb[0].mxu0 %v3004
        %v3358 = vpop.f32.mrb[0].mxu0
        %v3359 = vadd.f32 %v3127, %v3358
        %v3360 = vpop.f32.mrb[0].mxu0
        %v3361 = vadd.f32 %v3127, %v3360
        %3362 = vmatprep.mubr.f32.mxu0 %v3007
        %3363 = vmatmul.mubr.f32.gmra.mrb[0].mxu0 %v3006
        %v3364 = vpop.f32.mrb[0].mxu0
        %v3365 = vadd.f32 %v3132, %v3364
        %v3366 = vpop.f32.mrb[0].mxu0
        %v3367 = vadd.f32 %v3132, %v3366
        %3368 = vmatprep.mubr.f32.mxu0 %v3009
        %3369 = vmatmul.mubr.f32.gmra.mrb[0].mxu0 %v3008
        %v3370 = vpop.f32.mrb[0].mxu0
        %v3371 = vadd.f32 %v3137, %v3370
        %v3372 = vpop.f32.mrb[0].mxu0
        %v3373 = vadd.f32 %v3137, %v3372
        %3374 = vmatprep.mubr.f32.mxu0 %v3011
        %3375 = vmatmul.mubr.f32.gmra.mrb[0].mxu0 %v3010
        %v3376 = vpop.f32.mrb[0].mxu0
        %v3377 = vadd.f32 %v3142, %v3376
        %v3378 = vpop.f32.mrb[0].mxu0
        %v3379 = vadd.f32 %v3142, %v3378
        %3380 = vmatprep.mubr.f32.mxu0 %v3013
        %3381 = vmatmul.mubr.f32.gmra.mrb[0].mxu0 %v3012
        %v3382 = vpop.f32.mrb[0].mxu0
        %v3383 = vadd.f32 %v3147, %v3382
        %v3384 = vpop.f32.mrb[0].mxu0
        %v3385 = vadd.f32 %v3147, %v3384
        %3386 = vmatprep.mubr.f32.mxu0 %v3015
        %3387 = vmatmul.mubr.f32.gmra.mrb[0].mxu0 %v3014
        %v3388 = vpop.f32.mrb[0].mxu0
        %v3389 = vadd.f32 %v3152, %v3388
        %v3390 = vpop.f32.mrb[0].mxu0
        %v3391 = vadd.f32 %v3152, %v3390
        %3392 = vmatprep.mubr.f32.mxu0 %v3017
        %3393 = vmatmul.mubr.f32.gmra.mrb[0].mxu0 %v3016
        %v3394 = vpop.f32.mrb[0].mxu0
        %v3395 = vadd.f32 %v3157, %v3394
        %v3396 = vpop.f32.mrb[0].mxu0
        %v3397 = vadd.f32 %v3157, %v3396
        %3398 = vmatprep.mubr.f32.mxu0 %v3019
        %3399 = vmatmul.mubr.f32.gmra.mrb[0].mxu0 %v3018
        %v3400 = vpop.f32.mrb[0].mxu0
        %v3401 = vadd.f32 %v3162, %v3400
        %v3402 = vpop.f32.mrb[0].mxu0
        %v3403 = vadd.f32 %v3162, %v3402
        %3404 = vmatprep.mubr.f32.mxu0 %v3021
        %3405 = vmatmul.mubr.f32.gmra.mrb[0].mxu0 %v3020
        %v3406 = vpop.f32.mrb[0].mxu0
        %v3407 = vadd.f32 %v3167, %v3406
        %v3408 = vpop.f32.mrb[0].mxu0
        %v3409 = vadd.f32 %v3167, %v3408
        %3410 = vmatprep.mubr.f32.mxu0 %v3023
        %3411 = vmatmul.mubr.f32.gmra.mrb[0].mxu0 %v3022
        %v3412 = vpop.f32.mrb[0].mxu0
        %v3413 = vadd.f32 %v3172, %v3412
        %v3414 = vpop.f32.mrb[0].mxu0
        %v3415 = vadd.f32 %v3172, %v3414
        %3416 = vmatprep.mubr.f32.mxu0 %v3025
        %3417 = vmatmul.mubr.f32.gmra.mrb[0].mxu0 %v3024
        %v3418 = vpop.f32.mrb[0].mxu0
        %v3419 = vadd.f32 %v3177, %v3418
        %v3420 = vpop.f32.mrb[0].mxu0
        %v3421 = vadd.f32 %v3177, %v3420
        %3422 = vmatprep.mubr.f32.mxu0 %v3027
        %3423 = vmatmul.mubr.f32.gmra.mrb[0].mxu0 %v3026
        %v3424 = vpop.f32.mrb[0].mxu0
        %v3425 = vadd.f32 %v3182, %v3424
        %v3426 = vpop.f32.mrb[0].mxu0
        %v3427 = vadd.f32 %v3182, %v3426
        %3428 = vmatprep.mubr.f32.mxu0 %v3029
        %3429 = vmatmul.mubr.f32.gmra.mrb[0].mxu0 %v3028
        %v3430 = vpop.f32.mrb[0].mxu0
        %v3431 = vadd.f32 %v3187, %v3430
        %v3432 = vpop.f32.mrb[0].mxu0
        %v3433 = vadd.f32 %v3187, %v3432
        %3434 = vmatprep.mubr.f32.mxu0 %v3031
        %3435 = vmatmul.mubr.f32.gmra.mrb[0].mxu0 %v3030
        %v3436 = vpop.f32.mrb[0].mxu0
        %v3437 = vadd.f32 %v3192, %v3436
        %v3438 = vpop.f32.mrb[0].mxu0
        %v3439 = vadd.f32 %v3192, %v3438
        %3440 = vmatprep.mubr.f32.mxu0 %v3033
        %3441 = vmatmul.mubr.f32.gmra.mrb[0].mxu0 %v3032
        %v3442 = vpop.f32.mrb[0].mxu0
        %v3443 = vadd.f32 %v3197, %v3442
        %v3444 = vpop.f32.mrb[0].mxu0
        %v3445 = vadd.f32 %v3197, %v3444
        %3446 = vmatprep.mubr.f32.mxu0 %v3035
        %3447 = vmatmul.mubr.f32.gmra.mrb[0].mxu0 %v3034
        %v3448 = vpop.f32.mrb[0].mxu0
        %v3449 = vadd.f32 %v3202, %v3448
        %v3450 = vpop.f32.mrb[0].mxu0
        %v3451 = vadd.f32 %v3202, %v3450
        %3452 = vmatprep.mubr.f32.mxu0 %v3037
        %3453 = vmatmul.mubr.f32.gmra.mrb[0].mxu0 %v3036
        %v3454 = vpop.f32.mrb[0].mxu0
        %v3455 = vadd.f32 %v3207, %v3454
        %v3456 = vpop.f32.mrb[0].mxu0
        %v3457 = vadd.f32 %v3207, %v3456
        %3458 = vmatprep.mubr.f32.mxu0 %v3039
        %3459 = vmatmul.mubr.f32.gmra.mrb[0].mxu0 %v3038
        %v3460 = vpop.f32.mrb[0].mxu0
        %v3461 = vadd.f32 %v3212, %v3460
        %v3462 = vpop.f32.mrb[0].mxu0
        %v3463 = vadd.f32 %v3212, %v3462
        %3464 = vmatprep.mubr.f32.mxu0 %v3041
        %3465 = vmatmul.mubr.f32.gmra.mrb[0].mxu0 %v3040
        %v3466 = vpop.f32.mrb[0].mxu0
        %v3467 = vadd.f32 %v3217, %v3466
        %v3468 = vpop.f32.mrb[0].mxu0
        %v3469 = vadd.f32 %v3217, %v3468
        %3470 = vmatprep.mubr.f32.mxu0 %v3043
        %3471 = vmatmul.mubr.f32.gmra.mrb[0].mxu0 %v3042
        %v3472 = vpop.f32.mrb[0].mxu0
        %v3473 = vadd.f32 %v3222, %v3472
        %v3474 = vpop.f32.mrb[0].mxu0
        %v3475 = vadd.f32 %v3222, %v3474
        %3476 = vmatprep.mubr.f32.mxu0 %v3045
        %3477 = vmatmul.mubr.f32.gmra.mrb[0].mxu0 %v3044
        %v3478 = vpop.f32.mrb[0].mxu0
        %v3479 = vadd.f32 %v3227, %v3478
        %v3480 = vpop.f32.mrb[0].mxu0
        %v3481 = vadd.f32 %v3227, %v3480
        %3482 = vmatprep.mubr.f32.mxu0 %v3047
        %3483 = vmatmul.mubr.f32.gmra.mrb[0].mxu0 %v3046
        %v3484 = vpop.f32.mrb[0].mxu0
        %v3485 = vadd.f32 %v3232, %v3484
        %v3486 = vpop.f32.mrb[0].mxu0
        %v3487 = vadd.f32 %v3232, %v3486
        %3488 = vmatprep.mubr.f32.mxu0 %v3049
        %3489 = vmatmul.mubr.f32.gmra.mrb[0].mxu0 %v3048
        %v3490 = vpop.f32.mrb[0].mxu0
        %v3491 = vadd.f32 %v3237, %v3490
        %v3492 = vpop.f32.mrb[0].mxu0
        %v3493 = vadd.f32 %v3237, %v3492
        %3494 = vmatprep.mubr.f32.mxu0 %v3051
        %3495 = vmatmul.mubr.f32.gmra.mrb[0].mxu0 %v3050
        %v3496 = vpop.f32.mrb[0].mxu0
        %v3497 = vadd.f32 %v3242, %v3496
        %v3498 = vpop.f32.mrb[0].mxu0
        %v3499 = vadd.f32 %v3242, %v3498
        %3500 = vdwg.mxu0
        %3501 = vmatprep.subr.mxu0 %v2863
        %3502 = vmatpush1.msra.mxu0 %v2862
        %3503 = vmatprep.subr.mxu0 %v2867
        %3504 = vmatpush1.msra.mxu0 %v2866
        %3505 = vmatprep.subr.mxu0 %v2871
        %3506 = vmatpush1.msra.mxu0 %v2870
        %3507 = vmatprep.subr.mxu0 %v2875
        %3508 = vmatpush1.msra.mxu0 %v2874
        %3509 = vmatprep.subr.mxu0 %v2879
        %3510 = vmatpush1.msra.mxu0 %v2878
        %3511 = vmatprep.subr.mxu0 %v2883
        %3512 = vmatpush1.msra.mxu0 %v2882
        %3513 = vmatprep.subr.mxu0 %v2887
        %3514 = vmatpush1.msra.mxu0 %v2886
        %3515 = vmatprep.subr.mxu0 %v2891
        %3516 = vmatpush1.msra.mxu0 %v2890
        %3517 = vmatprep.subr.mxu0 %v2895
        %3518 = vmatpush1.msra.mxu0 %v2894
        %3519 = vmatprep.subr.mxu0 %v2899
        %3520 = vmatpush1.msra.mxu0 %v2898
        %3521 = vmatprep.subr.mxu0 %v2903
        %3522 = vmatpush1.msra.mxu0 %v2902
        %3523 = vmatprep.subr.mxu0 %v2907
        %3524 = vmatpush1.msra.mxu0 %v2906
        %3525 = vmatprep.subr.mxu0 %v2911
        %3526 = vmatpush1.msra.mxu0 %v2910
        %3527 = vmatprep.subr.mxu0 %v2915
        %3528 = vmatpush1.msra.mxu0 %v2914
        %3529 = vmatprep.subr.mxu0 %v2919
        %3530 = vmatpush1.msra.mxu0 %v2918
        %3531 = vmatprep.subr.mxu0 %v2923
        %3532 = vmatpush1.msra.mxu0 %v2922
        %3533 = vmatprep.subr.mxu0 %v2927
        %3534 = vmatpush1.msra.mxu0 %v2926
        %3535 = vmatprep.subr.mxu0 %v2931
        %3536 = vmatpush1.msra.mxu0 %v2930
        %3537 = vmatprep.subr.mxu0 %v2935
        %3538 = vmatpush1.msra.mxu0 %v2934
        %3539 = vmatprep.subr.mxu0 %v2939
        %3540 = vmatpush1.msra.mxu0 %v2938
        %3541 = vmatprep.subr.mxu0 %v2943
        %3542 = vmatpush1.msra.mxu0 %v2942
        %3543 = vmatprep.subr.mxu0 %v2947
        %3544 = vmatpush1.msra.mxu0 %v2946
        %3545 = vmatprep.subr.mxu0 %v2951
        %3546 = vmatpush1.msra.mxu0 %v2950
        %3547 = vmatprep.subr.mxu0 %v2955
        %3548 = vmatpush1.msra.mxu0 %v2954
        %3549 = vmatprep.subr.mxu0 %v2959
        %3550 = vmatpush1.msra.mxu0 %v2958
        %3551 = vmatprep.subr.mxu0 %v2963
        %3552 = vmatpush1.msra.mxu0 %v2962
        %3553 = vmatprep.subr.mxu0 %v2967
        %3554 = vmatpush1.msra.mxu0 %v2966
        %3555 = vmatprep.subr.mxu0 %v2971
        %3556 = vmatpush1.msra.mxu0 %v2970
        %3557 = vmatprep.subr.mxu0 %v2975
        %3558 = vmatpush1.msra.mxu0 %v2974
        %3559 = vmatprep.subr.mxu0 %v2979
        %3560 = vmatpush1.msra.mxu0 %v2978
        %3561 = vmatprep.subr.mxu0 %v2983
        %3562 = vmatpush1.msra.mxu0 %v2982
        %3563 = vmatprep.subr.mxu0 %v2987
        %3564 = vmatpush1.msra.mxu0 %v2986
        %3565 = vmatprep.mubr.f32.mxu0 %v2989
        %3566 = vmatmul.mubr.f32.gmra.mrb[0].mxu0 %v2988
        %v3567 = vpop.f32.mrb[0].mxu0
        %v3568 = vadd.f32 %v3087, %v3567
        %v3569 = vpop.f32.mrb[0].mxu0
        %v3570 = vadd.f32 %v3087, %v3569
        %3571 = vmatprep.mubr.f32.mxu0 %v2991
        %3572 = vmatmul.mubr.f32.gmra.mrb[0].mxu0 %v2990
        %v3573 = vpop.f32.mrb[0].mxu0
        %v3574 = vadd.f32 %v3092, %v3573
        %v3575 = vpop.f32.mrb[0].mxu0
        %v3576 = vadd.f32 %v3092, %v3575
        %3577 = vmatprep.mubr.f32.mxu0 %v2993
        %3578 = vmatmul.mubr.f32.gmra.mrb[0].mxu0 %v2992
        %v3579 = vpop.f32.mrb[0].mxu0
        %v3580 = vadd.f32 %v3097, %v3579
        %v3581 = vpop.f32.mrb[0].mxu0
        %v3582 = vadd.f32 %v3097, %v3581
        %3583 = vmatprep.mubr.f32.mxu0 %v2995
        %3584 = vmatmul.mubr.f32.gmra.mrb[0].mxu0 %v2994
        %v3585 = vpop.f32.mrb[0].mxu0
        %v3586 = vadd.f32 %v3102, %v3585
        %v3587 = vpop.f32.mrb[0].mxu0
        %v3588 = vadd.f32 %v3102, %v3587
        %3589 = vmatprep.mubr.f32.mxu0 %v2997
        %3590 = vmatmul.mubr.f32.gmra.mrb[0].mxu0 %v2996
        %v3591 = vpop.f32.mrb[0].mxu0
        %v3592 = vadd.f32 %v3107, %v3591
        %v3593 = vpop.f32.mrb[0].mxu0
        %v3594 = vadd.f32 %v3107, %v3593
        %3595 = vmatprep.mubr.f32.mxu0 %v2999
        %3596 = vmatmul.mubr.f32.gmra.mrb[0].mxu0 %v2998
        %v3597 = vpop.f32.mrb[0].mxu0
        %v3598 = vadd.f32 %v3112, %v3597
        %v3599 = vpop.f32.mrb[0].mxu0
        %v3600 = vadd.f32 %v3112, %v3599
        %3601 = vmatprep.mubr.f32.mxu0 %v3001
        %3602 = vmatmul.mubr.f32.gmra.mrb[0].mxu0 %v3000
        %v3603 = vpop.f32.mrb[0].mxu0
        %v3604 = vadd.f32 %v3117, %v3603
        %v3605 = vpop.f32.mrb[0].mxu0
        %v3606 = vadd.f32 %v3117, %v3605
        %3607 = vmatprep.mubr.f32.mxu0 %v3003
        %3608 = vmatmul.mubr.f32.gmra.mrb[0].mxu0 %v3002
        %v3609 = vpop.f32.mrb[0].mxu0
        %v3610 = vadd.f32 %v3122, %v3609
        %v3611 = vpop.f32.mrb[0].mxu0
        %v3612 = vadd.f32 %v3122, %v3611
        %3613 = vmatprep.mubr.f32.mxu0 %v3005
        %3614 = vmatmul.mubr.f32.gmra.mrb[0].mxu0 %v3004
        %v3615 = vpop.f32.mrb[0].mxu0
        %v3616 = vadd.f32 %v3127, %v3615
        %v3617 = vpop.f32.mrb[0].mxu0
        %v3618 = vadd.f32 %v3127, %v3617
        %3619 = vmatprep.mubr.f32.mxu0 %v3007
        %3620 = vmatmul.mubr.f32.gmra.mrb[0].mxu0 %v3006
        %v3621 = vpop.f32.mrb[0].mxu0
        %v3622 = vadd.f32 %v3132, %v3621
        %v3623 = vpop.f32.mrb[0].mxu0
        %v3624 = vadd.f32 %v3132, %v3623
        %3625 = vmatprep.mubr.f32.mxu0 %v3009
        %3626 = vmatmul.mubr.f32.gmra.mrb[0].mxu0 %v3008
        %v3627 = vpop.f32.mrb[0].mxu0
        %v3628 = vadd.f32 %v3137, %v3627
        %v3629 = vpop.f32.mrb[0].mxu0
        %v3630 = vadd.f32 %v3137, %v3629
        %3631 = vmatprep.mubr.f32.mxu0 %v3011
        %3632 = vmatmul.mubr.f32.gmra.mrb[0].mxu0 %v3010
        %v3633 = vpop.f32.mrb[0].mxu0
        %v3634 = vadd.f32 %v3142, %v3633
        %v3635 = vpop.f32.mrb[0].mxu0
        %v3636 = vadd.f32 %v3142, %v3635
        %3637 = vmatprep.mubr.f32.mxu0 %v3013
        %3638 = vmatmul.mubr.f32.gmra.mrb[0].mxu0 %v3012
        %v3639 = vpop.f32.mrb[0].mxu0
        %v3640 = vadd.f32 %v3147, %v3639
        %v3641 = vpop.f32.mrb[0].mxu0
        %v3642 = vadd.f32 %v3147, %v3641
        %3643 = vmatprep.mubr.f32.mxu0 %v3015
        %3644 = vmatmul.mubr.f32.gmra.mrb[0].mxu0 %v3014
        %v3645 = vpop.f32.mrb[0].mxu0
        %v3646 = vadd.f32 %v3152, %v3645
        %v3647 = vpop.f32.mrb[0].mxu0
        %v3648 = vadd.f32 %v3152, %v3647
        %3649 = vmatprep.mubr.f32.mxu0 %v3017
        %3650 = vmatmul.mubr.f32.gmra.mrb[0].mxu0 %v3016
        %v3651 = vpop.f32.mrb[0].mxu0
        %v3652 = vadd.f32 %v3157, %v3651
        %v3653 = vpop.f32.mrb[0].mxu0
        %v3654 = vadd.f32 %v3157, %v3653
        %3655 = vmatprep.mubr.f32.mxu0 %v3019
        %3656 = vmatmul.mubr.f32.gmra.mrb[0].mxu0 %v3018
        %v3657 = vpop.f32.mrb[0].mxu0
        %v3658 = vadd.f32 %v3162, %v3657
        %v3659 = vpop.f32.mrb[0].mxu0
        %v3660 = vadd.f32 %v3162, %v3659
        %3661 = vmatprep.mubr.f32.mxu0 %v3021
        %3662 = vmatmul.mubr.f32.gmra.mrb[0].mxu0 %v3020
        %v3663 = vpop.f32.mrb[0].mxu0
        %v3664 = vadd.f32 %v3167, %v3663
        %v3665 = vpop.f32.mrb[0].mxu0
        %v3666 = vadd.f32 %v3167, %v3665
        %3667 = vmatprep.mubr.f32.mxu0 %v3023
        %3668 = vmatmul.mubr.f32.gmra.mrb[0].mxu0 %v3022
        %v3669 = vpop.f32.mrb[0].mxu0
        %v3670 = vadd.f32 %v3172, %v3669
        %v3671 = vpop.f32.mrb[0].mxu0
        %v3672 = vadd.f32 %v3172, %v3671
        %3673 = vmatprep.mubr.f32.mxu0 %v3025
        %3674 = vmatmul.mubr.f32.gmra.mrb[0].mxu0 %v3024
        %v3675 = vpop.f32.mrb[0].mxu0
        %v3676 = vadd.f32 %v3177, %v3675
        %v3677 = vpop.f32.mrb[0].mxu0
        %v3678 = vadd.f32 %v3177, %v3677
        %3679 = vmatprep.mubr.f32.mxu0 %v3027
        %3680 = vmatmul.mubr.f32.gmra.mrb[0].mxu0 %v3026
        %v3681 = vpop.f32.mrb[0].mxu0
        %v3682 = vadd.f32 %v3182, %v3681
        %v3683 = vpop.f32.mrb[0].mxu0
        %v3684 = vadd.f32 %v3182, %v3683
        %3685 = vmatprep.mubr.f32.mxu0 %v3029
        %3686 = vmatmul.mubr.f32.gmra.mrb[0].mxu0 %v3028
        %v3687 = vpop.f32.mrb[0].mxu0
        %v3688 = vadd.f32 %v3187, %v3687
        %v3689 = vpop.f32.mrb[0].mxu0
        %v3690 = vadd.f32 %v3187, %v3689
        %3691 = vmatprep.mubr.f32.mxu0 %v3031
        %3692 = vmatmul.mubr.f32.gmra.mrb[0].mxu0 %v3030
        %v3693 = vpop.f32.mrb[0].mxu0
        %v3694 = vadd.f32 %v3192, %v3693
        %v3695 = vpop.f32.mrb[0].mxu0
        %v3696 = vadd.f32 %v3192, %v3695
        %3697 = vmatprep.mubr.f32.mxu0 %v3033
        %3698 = vmatmul.mubr.f32.gmra.mrb[0].mxu0 %v3032
        %v3699 = vpop.f32.mrb[0].mxu0
        %v3700 = vadd.f32 %v3197, %v3699
        %v3701 = vpop.f32.mrb[0].mxu0
        %v3702 = vadd.f32 %v3197, %v3701
        %3703 = vmatprep.mubr.f32.mxu0 %v3035
        %3704 = vmatmul.mubr.f32.gmra.mrb[0].mxu0 %v3034
        %v3705 = vpop.f32.mrb[0].mxu0
        %v3706 = vadd.f32 %v3202, %v3705
        %v3707 = vpop.f32.mrb[0].mxu0
        %v3708 = vadd.f32 %v3202, %v3707
        %3709 = vmatprep.mubr.f32.mxu0 %v3037
        %3710 = vmatmul.mubr.f32.gmra.mrb[0].mxu0 %v3036
        %v3711 = vpop.f32.mrb[0].mxu0
        %v3712 = vadd.f32 %v3207, %v3711
        %v3713 = vpop.f32.mrb[0].mxu0
        %v3714 = vadd.f32 %v3207, %v3713
        %3715 = vmatprep.mubr.f32.mxu0 %v3039
        %3716 = vmatmul.mubr.f32.gmra.mrb[0].mxu0 %v3038
        %v3717 = vpop.f32.mrb[0].mxu0
        %v3718 = vadd.f32 %v3212, %v3717
        %v3719 = vpop.f32.mrb[0].mxu0
        %v3720 = vadd.f32 %v3212, %v3719
        %3721 = vmatprep.mubr.f32.mxu0 %v3041
        %3722 = vmatmul.mubr.f32.gmra.mrb[0].mxu0 %v3040
        %v3723 = vpop.f32.mrb[0].mxu0
        %v3724 = vadd.f32 %v3217, %v3723
        %v3725 = vpop.f32.mrb[0].mxu0
        %v3726 = vadd.f32 %v3217, %v3725
        %3727 = vmatprep.mubr.f32.mxu0 %v3043
        %3728 = vmatmul.mubr.f32.gmra.mrb[0].mxu0 %v3042
        %v3729 = vpop.f32.mrb[0].mxu0
        %v3730 = vadd.f32 %v3222, %v3729
        %v3731 = vpop.f32.mrb[0].mxu0
        %v3732 = vadd.f32 %v3222, %v3731
        %3733 = vmatprep.mubr.f32.mxu0 %v3045
        %3734 = vmatmul.mubr.f32.gmra.mrb[0].mxu0 %v3044
        %v3735 = vpop.f32.mrb[0].mxu0
        %v3736 = vadd.f32 %v3227, %v3735
        %v3737 = vpop.f32.mrb[0].mxu0
        %v3738 = vadd.f32 %v3227, %v3737
        %3739 = vmatprep.mubr.f32.mxu0 %v3047
        %3740 = vmatmul.mubr.f32.gmra.mrb[0].mxu0 %v3046
        %v3741 = vpop.f32.mrb[0].mxu0
        %v3742 = vadd.f32 %v3232, %v3741
        %v3743 = vpop.f32.mrb[0].mxu0
        %v3744 = vadd.f32 %v3232, %v3743
        %3745 = vmatprep.mubr.f32.mxu0 %v3049
        %3746 = vmatmul.mubr.f32.gmra.mrb[0].mxu0 %v3048
        %v3747 = vpop.f32.mrb[0].mxu0
        %v3748 = vadd.f32 %v3237, %v3747
        %v3749 = vpop.f32.mrb[0].mxu0
        %v3750 = vadd.f32 %v3237, %v3749
        %3751 = vmatprep.mubr.f32.mxu0 %v3051
        %3752 = vmatmul.mubr.f32.gmra.mrb[0].mxu0 %v3050
        %v3753 = vpop.f32.mrb[0].mxu0
        %v3754 = vadd.f32 %v3242, %v3753
        %v3755 = vpop.f32.mrb[0].mxu0
        %v3756 = vadd.f32 %v3242, %v3755
        %3757 = vdwg.mxu0
        %v3758 = vmax.f32 %v3311, 0.0
        %v3759 = vmax.f32 %v3313, 0.0
        %v3760 = vmax.f32 %v3568, 0.0
        %v3761 = vmax.f32 %v3570, 0.0
        %v3762 = vmax.f32 %v3317, 0.0
        %v3763 = vmax.f32 %v3319, 0.0
        %v3764 = vmax.f32 %v3574, 0.0
        %v3765 = vmax.f32 %v3576, 0.0
        %v3766 = vmax.f32 %v3323, 0.0
        %v3767 = vmax.f32 %v3325, 0.0
        %v3768 = vmax.f32 %v3580, 0.0
        %v3769 = vmax.f32 %v3582, 0.0
        %v3770 = vmax.f32 %v3329, 0.0
        %v3771 = vmax.f32 %v3331, 0.0
        %v3772 = vmax.f32 %v3586, 0.0
        %v3773 = vmax.f32 %v3588, 0.0
        %v3774 = vmax.f32 %v3335, 0.0
        %v3775 = vmax.f32 %v3337, 0.0
        %v3776 = vmax.f32 %v3592, 0.0
        %v3777 = vmax.f32 %v3594, 0.0
        %v3778 = vmax.f32 %v3341, 0.0
        %v3779 = vmax.f32 %v3343, 0.0
        %v3780 = vmax.f32 %v3598, 0.0
        %v3781 = vmax.f32 %v3600, 0.0
        %v3782 = vmax.f32 %v3347, 0.0
        %v3783 = vmax.f32 %v3349, 0.0
        %v3784 = vmax.f32 %v3604, 0.0
        %v3785 = vmax.f32 %v3606, 0.0
        %v3786 = vmax.f32 %v3353, 0.0
        %v3787 = vmax.f32 %v3355, 0.0
        %v3788 = vmax.f32 %v3610, 0.0
        %v3789 = vmax.f32 %v3612, 0.0
        %v3790 = vmax.f32 %v3359, 0.0
        %v3791 = vmax.f32 %v3361, 0.0
        %v3792 = vmax.f32 %v3616, 0.0
        %v3793 = vmax.f32 %v3618, 0.0
        %v3794 = vmax.f32 %v3365, 0.0
        %v3795 = vmax.f32 %v3367, 0.0
        %v3796 = vmax.f32 %v3622, 0.0
        %v3797 = vmax.f32 %v3624, 0.0
        %v3798 = vmax.f32 %v3371, 0.0
        %v3799 = vmax.f32 %v3373, 0.0
        %v3800 = vmax.f32 %v3628, 0.0
        %v3801 = vmax.f32 %v3630, 0.0
        %v3802 = vmax.f32 %v3377, 0.0
        %v3803 = vmax.f32 %v3379, 0.0
        %v3804 = vmax.f32 %v3634, 0.0
        %v3805 = vmax.f32 %v3636, 0.0
        %v3806 = vmax.f32 %v3383, 0.0
        %v3807 = vmax.f32 %v3385, 0.0
        %v3808 = vmax.f32 %v3640, 0.0
        %v3809 = vmax.f32 %v3642, 0.0
        %v3810 = vmax.f32 %v3389, 0.0
        %v3811 = vmax.f32 %v3391, 0.0
        %v3812 = vmax.f32 %v3646, 0.0
        %v3813 = vmax.f32 %v3648, 0.0
        %v3814 = vmax.f32 %v3395, 0.0
        %v3815 = vmax.f32 %v3397, 0.0
        %v3816 = vmax.f32 %v3652, 0.0
        %v3817 = vmax.f32 %v3654, 0.0
        %v3818 = vmax.f32 %v3401, 0.0
        %v3819 = vmax.f32 %v3403, 0.0
        %v3820 = vmax.f32 %v3658, 0.0
        %v3821 = vmax.f32 %v3660, 0.0
        %v3822 = vmax.f32 %v3407, 0.0
        %v3823 = vmax.f32 %v3409, 0.0
        %v3824 = vmax.f32 %v3664, 0.0
        %v3825 = vmax.f32 %v3666, 0.0
        %v3826 = vmax.f32 %v3413, 0.0
        %v3827 = vmax.f32 %v3415, 0.0
        %v3828 = vmax.f32 %v3670, 0.0
        %v3829 = vmax.f32 %v3672, 0.0
        %v3830 = vmax.f32 %v3419, 0.0
        %v3831 = vmax.f32 %v3421, 0.0
        %v3832 = vmax.f32 %v3676, 0.0
        %v3833 = vmax.f32 %v3678, 0.0
        %v3834 = vmax.f32 %v3425, 0.0
        %v3835 = vmax.f32 %v3427, 0.0
        %v3836 = vmax.f32 %v3682, 0.0
        %v3837 = vmax.f32 %v3684, 0.0
        %v3838 = vmax.f32 %v3431, 0.0
        %v3839 = vmax.f32 %v3433, 0.0
        %v3840 = vmax.f32 %v3688, 0.0
        %v3841 = vmax.f32 %v3690, 0.0
        %v3842 = vmax.f32 %v3437, 0.0
        %v3843 = vmax.f32 %v3439, 0.0
        %v3844 = vmax.f32 %v3694, 0.0
        %v3845 = vmax.f32 %v3696, 0.0
        %v3846 = vmax.f32 %v3443, 0.0
        %v3847 = vmax.f32 %v3445, 0.0
        %v3848 = vmax.f32 %v3700, 0.0
        %v3849 = vmax.f32 %v3702, 0.0
        %v3850 = vmax.f32 %v3449, 0.0
        %v3851 = vmax.f32 %v3451, 0.0
        %v3852 = vmax.f32 %v3706, 0.0
        %v3853 = vmax.f32 %v3708, 0.0
        %v3854 = vmax.f32 %v3455, 0.0
        %v3855 = vmax.f32 %v3457, 0.0
        %v3856 = vmax.f32 %v3712, 0.0
        %v3857 = vmax.f32 %v3714, 0.0
        %v3858 = vmax.f32 %v3461, 0.0
        %v3859 = vmax.f32 %v3463, 0.0
        %v3860 = vmax.f32 %v3718, 0.0
        %v3861 = vmax.f32 %v3720, 0.0
        %v3862 = vmax.f32 %v3467, 0.0
        %v3863 = vmax.f32 %v3469, 0.0
        %v3864 = vmax.f32 %v3724, 0.0
        %v3865 = vmax.f32 %v3726, 0.0
        %v3866 = vmax.f32 %v3473, 0.0
        %v3867 = vmax.f32 %v3475, 0.0
        %v3868 = vmax.f32 %v3730, 0.0
        %v3869 = vmax.f32 %v3732, 0.0
        %v3870 = vmax.f32 %v3479, 0.0
        %v3871 = vmax.f32 %v3481, 0.0
        %v3872 = vmax.f32 %v3736, 0.0
        %v3873 = vmax.f32 %v3738, 0.0
        %v3874 = vmax.f32 %v3485, 0.0
        %v3875 = vmax.f32 %v3487, 0.0
        %v3876 = vmax.f32 %v3742, 0.0
        %v3877 = vmax.f32 %v3744, 0.0
        %v3878 = vmax.f32 %v3491, 0.0
        %v3879 = vmax.f32 %v3493, 0.0
        %v3880 = vmax.f32 %v3748, 0.0
        %v3881 = vmax.f32 %v3750, 0.0
        %v3882 = vmax.f32 %v3497, 0.0
        %v3883 = vmax.f32 %v3499, 0.0
        %v3884 = vmax.f32 %v3754, 0.0
        %v3885 = vmax.f32 %v3756, 0.0
        %v3886 = vld [vmem:[%s9] sm:$0x3]
        %v3887 = vld [vmem:[#allocation2] sm:$0x1]
        %3889 = vset.pattern.permute.xlu0 0
        %3890 = vperm.xlu0 %3889, %v3887
        %v3891 = vpop.permute.xlu0 %3890
        %v3893 = vlaneseq
        %v3894 = vshrl.u32 %v3893, 7
        %v3895 = vsub.s32 0, %v3894
        %v3896 = vrot.slane %v3891, %v3895
        %v3898 = vlaneseq
        %v3899 = vshrl.u32 %v3898, 7
        %v3900 = vsub.s32 0, %v3899
        %v3901 = vrot.slane %v3886, %v3900
        %v3902 = vlaneseq
        %v3903 = vshrl.u32 %v3902, 7
        %v3904 = vsub.s32 1, %v3903
        %v3905 = vrot.slane %v3886, %v3904
        %3908 = vmatprep.subr.mxu0 %v3759
        %3909 = vmatpush1.msra.mxu0 %v3758
        %3910 = vmatprep.subr.mxu0 %v3763
        %3911 = vmatpush1.msra.mxu0 %v3762
        %3912 = vmatprep.subr.mxu0 %v3767
        %3913 = vmatpush1.msra.mxu0 %v3766
        %3914 = vmatprep.subr.mxu0 %v3771
        %3915 = vmatpush1.msra.mxu0 %v3770
        %3916 = vmatprep.subr.mxu0 %v3775
        %3917 = vmatpush1.msra.mxu0 %v3774
        %3918 = vmatprep.subr.mxu0 %v3779
        %3919 = vmatpush1.msra.mxu0 %v3778
        %3920 = vmatprep.subr.mxu0 %v3783
        %3921 = vmatpush1.msra.mxu0 %v3782
        %3922 = vmatprep.subr.mxu0 %v3787
        %3923 = vmatpush1.msra.mxu0 %v3786
        %3924 = vmatprep.subr.mxu0 %v3791
        %3925 = vmatpush1.msra.mxu0 %v3790
        %3926 = vmatprep.subr.mxu0 %v3795
        %3927 = vmatpush1.msra.mxu0 %v3794
        %3928 = vmatprep.subr.mxu0 %v3799
        %3929 = vmatpush1.msra.mxu0 %v3798
        %3930 = vmatprep.subr.mxu0 %v3803
        %3931 = vmatpush1.msra.mxu0 %v3802
        %3932 = vmatprep.subr.mxu0 %v3807
        %3933 = vmatpush1.msra.mxu0 %v3806
        %3934 = vmatprep.subr.mxu0 %v3811
        %3935 = vmatpush1.msra.mxu0 %v3810
        %3936 = vmatprep.subr.mxu0 %v3815
        %3937 = vmatpush1.msra.mxu0 %v3814
        %3938 = vmatprep.subr.mxu0 %v3819
        %3939 = vmatpush1.msra.mxu0 %v3818
        %3940 = vmatprep.subr.mxu0 %v3823
        %3941 = vmatpush1.msra.mxu0 %v3822
        %3942 = vmatprep.subr.mxu0 %v3827
        %3943 = vmatpush1.msra.mxu0 %v3826
        %3944 = vmatprep.subr.mxu0 %v3831
        %3945 = vmatpush1.msra.mxu0 %v3830
        %3946 = vmatprep.subr.mxu0 %v3835
        %3947 = vmatpush1.msra.mxu0 %v3834
        %3948 = vmatprep.subr.mxu0 %v3839
        %3949 = vmatpush1.msra.mxu0 %v3838
        %3950 = vmatprep.subr.mxu0 %v3843
        %3951 = vmatpush1.msra.mxu0 %v3842
        %3952 = vmatprep.subr.mxu0 %v3847
        %3953 = vmatpush1.msra.mxu0 %v3846
        %3954 = vmatprep.subr.mxu0 %v3851
        %3955 = vmatpush1.msra.mxu0 %v3850
        %3956 = vmatprep.subr.mxu0 %v3855
        %3957 = vmatpush1.msra.mxu0 %v3854
        %3958 = vmatprep.subr.mxu0 %v3859
        %3959 = vmatpush1.msra.mxu0 %v3858
        %3960 = vmatprep.subr.mxu0 %v3863
        %3961 = vmatpush1.msra.mxu0 %v3862
        %3962 = vmatprep.subr.mxu0 %v3867
        %3963 = vmatpush1.msra.mxu0 %v3866
        %3964 = vmatprep.subr.mxu0 %v3871
        %3965 = vmatpush1.msra.mxu0 %v3870
        %3966 = vmatprep.subr.mxu0 %v3875
        %3967 = vmatpush1.msra.mxu0 %v3874
        %3968 = vmatprep.subr.mxu0 %v3879
        %3969 = vmatpush1.msra.mxu0 %v3878
        %3970 = vmatprep.subr.mxu0 %v3883
        %3971 = vmatpush1.msra.mxu0 %v3882
        %3972 = vmatprep.mubr.f32.mxu0 %v3905
        %3973 = vmatmul.mubr.f32.gmra.mrb[0].mxu0 %v3901
        %v3974 = vpop.f32.mrb[0].mxu0
        %v3975 = vadd.f32 %v3896, %v3974
        %v3976 = vpop.f32.mrb[0].mxu0
        %v3977 = vadd.f32 %v3896, %v3976
        %3978 = vdwg.mxu0
        %3979 = vmatprep.subr.mxu0 %v3761
        %3980 = vmatpush1.msra.mxu0 %v3760
        %3981 = vmatprep.subr.mxu0 %v3765
        %3982 = vmatpush1.msra.mxu0 %v3764
        %3983 = vmatprep.subr.mxu0 %v3769
        %3984 = vmatpush1.msra.mxu0 %v3768
        %3985 = vmatprep.subr.mxu0 %v3773
        %3986 = vmatpush1.msra.mxu0 %v3772
        %3987 = vmatprep.subr.mxu0 %v3777
        %3988 = vmatpush1.msra.mxu0 %v3776
        %3989 = vmatprep.subr.mxu0 %v3781
        %3990 = vmatpush1.msra.mxu0 %v3780
        %3991 = vmatprep.subr.mxu0 %v3785
        %3992 = vmatpush1.msra.mxu0 %v3784
        %3993 = vmatprep.subr.mxu0 %v3789
        %3994 = vmatpush1.msra.mxu0 %v3788
        %3995 = vmatprep.subr.mxu0 %v3793
        %3996 = vmatpush1.msra.mxu0 %v3792
        %3997 = vmatprep.subr.mxu0 %v3797
        %3998 = vmatpush1.msra.mxu0 %v3796
        %3999 = vmatprep.subr.mxu0 %v3801
        %4000 = vmatpush1.msra.mxu0 %v3800
        %4001 = vmatprep.subr.mxu0 %v3805
        %4002 = vmatpush1.msra.mxu0 %v3804
        %4003 = vmatprep.subr.mxu0 %v3809
        %4004 = vmatpush1.msra.mxu0 %v3808
        %4005 = vmatprep.subr.mxu0 %v3813
        %4006 = vmatpush1.msra.mxu0 %v3812
        %4007 = vmatprep.subr.mxu0 %v3817
        %4008 = vmatpush1.msra.mxu0 %v3816
        %4009 = vmatprep.subr.mxu0 %v3821
        %4010 = vmatpush1.msra.mxu0 %v3820
        %4011 = vmatprep.subr.mxu0 %v3825
        %4012 = vmatpush1.msra.mxu0 %v3824
        %4013 = vmatprep.subr.mxu0 %v3829
        %4014 = vmatpush1.msra.mxu0 %v3828
        %4015 = vmatprep.subr.mxu0 %v3833
        %4016 = vmatpush1.msra.mxu0 %v3832
        %4017 = vmatprep.subr.mxu0 %v3837
        %4018 = vmatpush1.msra.mxu0 %v3836
        %4019 = vmatprep.subr.mxu0 %v3841
        %4020 = vmatpush1.msra.mxu0 %v3840
        %4021 = vmatprep.subr.mxu0 %v3845
        %4022 = vmatpush1.msra.mxu0 %v3844
        %4023 = vmatprep.subr.mxu0 %v3849
        %4024 = vmatpush1.msra.mxu0 %v3848
        %4025 = vmatprep.subr.mxu0 %v3853
        %4026 = vmatpush1.msra.mxu0 %v3852
        %4027 = vmatprep.subr.mxu0 %v3857
        %4028 = vmatpush1.msra.mxu0 %v3856
        %4029 = vmatprep.subr.mxu0 %v3861
        %4030 = vmatpush1.msra.mxu0 %v3860
        %4031 = vmatprep.subr.mxu0 %v3865
        %4032 = vmatpush1.msra.mxu0 %v3864
        %4033 = vmatprep.subr.mxu0 %v3869
        %4034 = vmatpush1.msra.mxu0 %v3868
        %4035 = vmatprep.subr.mxu0 %v3873
        %4036 = vmatpush1.msra.mxu0 %v3872
        %4037 = vmatprep.subr.mxu0 %v3877
        %4038 = vmatpush1.msra.mxu0 %v3876
        %4039 = vmatprep.subr.mxu0 %v3881
        %4040 = vmatpush1.msra.mxu0 %v3880
        %4041 = vmatprep.subr.mxu0 %v3885
        %4042 = vmatpush1.msra.mxu0 %v3884
        %4043 = vmatprep.mubr.f32.mxu0 %v3905
        %4044 = vmatmul.mubr.f32.gmra.mrb[0].mxu0 %v3901
        %v4045 = vpop.f32.mrb[0].mxu0
        %v4046 = vadd.f32 %v3896, %v4045
        %v4047 = vpop.f32.mrb[0].mxu0
        %v4048 = vadd.f32 %v3896, %v4047
        %4049 = vdwg.mxu0
        %v4054 = vcombine.low %v3975, %v3977
        %v4055 = vcombine.low %v4046, %v4048
        %v4057 = vunpack.c.l.s4 1966171168
        %v4058 = vunpack.c.0.s8 %v4057
        %v4059 = vlaneseq
        %v4060 = vshrl.u32 %v4059, 7
        %v4061 = vsub.s32 %v4058, %v4060
        %v4062 = vrot.slane %v4054, %v4061
        %v4064 = vunpack.c.l.s4 1966171168
        %v4065 = vunpack.c.0.s8 %v4064
        %v4066 = vlaneseq
        %v4067 = vshrl.u32 %v4066, 7
        %v4068 = vsub.s32 %v4065, %v4067
        %v4069 = vrot.slane %v4055, %v4068
        %v4070 = vcombine.low %v4062, %v4069
        %v4072 = vunpack.c.l.s4 1966171168
        %v4073 = vunpack.c.0.s8 %v4072
        %v4074 = vlaneseq
        %v4075 = vshrl.u32 %v4074, 7
        %v4076 = vsub.s32 %v4073, %v4075
        %v4077 = vrot.slane %v4070, %v4076
        %v4079 = vlaneseq
        %vm4080 = vcmp.ge.s32.totalorder %v4079, 0
        %vm4081 = vcmp.lt.s32.totalorder %v4079, 512
        %vm4082 = vmand %vm4080, %vm4081
        %4083 = vst.msk [vmem:[%s395] sm:$0xf] %vm4082, %v4077
        %s4084 = sand.u32 %s272, 1
        %s4085 = scalar_lea.sflag [#allocation5], %s4084
        %s4086 = sand.u32 %s272, 1
        %s4087 = smul.addr %s4086, 4
        %s4088 = scalar_lea.vmem [#allocation6], %s4087
        // Predicated region
        $region69: #{mlp2_forward.1} parent=63 // pred_check
          %p4089 = pneg %p282
        $region70: #{mlp2_forward.1} parent=63 // pred_check_branch
          %4091 = sbr.rel (%p4089) target = $region72
        $region71: #{mlp2_forward.1} parent=63 // pred_region
          %s4092 = smul.u32 4, %s28
          %s4094 = ssub.s32 64, 64
          %4095 = vsyncadd %s4085, %s4094
          %s4096 = smul.addr %s4092, 16
          %s4097 = scalar_lea.hbm %s11, %s4096
          %s4099 = sshll.u32 %s4088, 4
          %s4100 = int_to_ptr.vmem [resolvable:$true] %s4099
          %4102 = dma.vmem_to_hbm [thread:$0]  %s4100, 64, %s4097, %s4085
        $region72: #{mlp2_forward.1} parent=63 // pred_fallthru
          _
      $region64: #{mlp2_forward.1} parent=5 // pred_fallthru
        _
      %p4103 = scmp.le.s32.totalorder 2, %s23
      // Predicated region
      $region73: #{mlp2_forward.1} parent=5 // pred_check
        %p4104 = pneg %p4103
      $region74: #{mlp2_forward.1} parent=5 // pred_check_branch
        %4106 = sbr.rel (%p4104) target = $region76
      $region75: #{mlp2_forward.1} parent=5 // pred_region
        %s4107 = ssub.s32 %s23, 2
        // Predicated region
        $region77: #{mlp2_forward.1} parent=75 // pred_check
          %p4108 = pneg %p288
        $region78: #{mlp2_forward.1} parent=75 // pred_check_branch
          %4110 = sbr.rel (%p4108) target = $region80
        $region79: #{mlp2_forward.1} parent=75 // pred_region
          %s4111 = sand.u32 %s273, 1
          %s4112 = scalar_lea.sflag [#allocation5], %s4111
          %s4113 = sand.u32 %s273, 1
          %s4114 = smul.addr %s4113, 4
          %s4115 = scalar_lea.vmem [#allocation6], %s4114
          %4116 = dma.done %s4112, 64
        $region80: #{mlp2_forward.1} parent=75 // pred_fallthru
          _
      $region76: #{mlp2_forward.1} parent=5 // pred_fallthru
        _
    $region6: #{mlp2_forward.1} parent=1 // loop_footer
      %s27 = sadd.s32 1, %s23
    $region7: #{mlp2_forward.1} parent=1 // loop_footer_branch
      %22 = sbr.rel target = $region3
    $region8: #{mlp2_forward.1} parent=1 // loop_exit
      _
    %4117 = vsyncpa [#allocation4], 1
    %s4118 = scalar_lea.sflag [#allocation4], 1
    %4119 = vsyncpa %s4118, 1
    %4120 = vsyncpa [#allocation5], 1
    %s4121 = scalar_lea.sflag [#allocation5], 1
    %4122 = vsyncpa %s4121, 1

</llo_original>
